<compile_context>
chip_gen: v5e
topology: v5e:2x2
jax: 0.10.0
libtpu: 0.0.40
codegen_flags: <defaults>
</compile_context>

<pallas_src>
import functools

import jax
import jax.numpy as jnp
from jax import lax
from jax.experimental import pallas as pl
from jax.experimental.pallas import tpu as pltpu


# ------------------------------ fused Pallas kernel -------------------------------

def _fused_unet_inner_kernel(xph_ref, wd_ref, wu_ref, g_ref, b_ref,   # inputs
                             out_ref,                                  # output
                             h_acc_ref, hp_ref,                        # VMEM scratch
                             *, N, Cin, inner, Cout, Ho, Wo, transpose_out):
    S = N * Ho * Wo
    p = pl.program_id(0)          # input parity phase: 2*(row % 2) + (col % 2)

    @pl.when(p == 0)
    def _():
        h_acc_ref[...] = jnp.zeros_like(h_acc_ref)

    # ---- down path: LeakyReLU(0.2) folded into the tap reads, 4 accumulating dots -----
    # This grid step owns the 4 conv taps whose (kh%2, kw%2) parity equals this phase;
    # their weights are this step's wd tile (streamed / double-buffered by BlockSpec).
    acc = h_acc_ref[...]
    for off in range(4):                         # (dh, dw) offset inside the phase plane
        dh, dw = off // 2, off % 2
        t = xph_ref[0, :, dh:dh + Ho, dw:dw + Wo, :]           # (N, Ho, Wo, Cin) f32
        t = jnp.where(t > 0, t, 0.2 * t)                        # LeakyReLU in f32 (VPU)
        t = t.reshape(S, Cin).astype(jnp.bfloat16)              # cast only at the MXU input
        acc = acc + jnp.dot(t, wd_ref[0, off],
                            preferred_element_type=jnp.float32)
    h_acc_ref[...] = acc                                        # (S, inner) f32

    # ---- last step: ReLU -> sub-pixel ConvTranspose2d -> fused BatchNorm -> store -----
    @pl.when(p == pl.num_programs(0) - 1)
    def _():
        h = jnp.maximum(h_acc_ref[...], 0.0).reshape(N, Ho, Wo, inner)
        # Zero only the 1-wide halo ring of hp, then write the interior exactly once.
        zr = jnp.zeros((N, Wo + 2, inner), jnp.float32)
        zc = jnp.zeros((N, Ho + 2, inner), jnp.float32)
        hp_ref[:, 0, :, :] = zr
        hp_ref[:, Ho + 1, :, :] = zr
        hp_ref[:, :, 0, :] = zc
        hp_ref[:, :, Wo + 1, :] = zc
        hp_ref[:, 1:Ho + 1, 1:Wo + 1, :] = h

        ys, pmean, pm2 = [], [], []
        for qi in range(2):                      # output row parity
            for qj in range(2):                  # output col parity
                khs = (1, 3) if qi == 0 else (0, 2)
                kws = (1, 3) if qj == 0 else (0, 2)
                acc_u = jnp.zeros((S, Cout), jnp.float32)
                for idx, (kh, kw) in enumerate([(a, b) for a in khs for b in kws]):
                    a0 = (qi + 3 - kh) // 2      # row offset into padded h
                    b0 = (qj + 3 - kw) // 2      # col offset into padded h
                    tap = hp_ref[:, a0:a0 + Ho, b0:b0 + Wo, :]
                    tap = tap.reshape(S, inner).astype(jnp.bfloat16)
                    acc_u = acc_u + jnp.dot(tap, wu_ref[qi, qj, idx],
                                            preferred_element_type=jnp.float32)
                # per-phase mean / M2 on hot data (no E[x^2]-mean^2 cancellation)
                m = jnp.mean(acc_u, axis=0, keepdims=True)      # (1, Cout)
                d = acc_u - m
                ys.append(acc_u)
                pmean.append(m)
                pm2.append(jnp.sum(d * d, axis=0, keepdims=True))

        # Exact combine of the 4 equal-sized per-phase stats -> biased batch stats.
        gmean = (pmean[0] + pmean[1] + pmean[2] + pmean[3]) * 0.25
        m2 = pm2[0] + pm2[1] + pm2[2] + pm2[3]
        for m in pmean:
            dm = m - gmean
            m2 = m2 + float(S) * dm * dm
        var = m2 * (1.0 / (4.0 * S))
        scale = g_ref[...] * lax.rsqrt(var + 1e-5)              # (1, Cout)
        shift = b_ref[...] - gmean * scale

        for ph in range(4):                                     # ph = 2*qi + qj
            yn = ys[ph] * scale + shift                         # one fused mul-add
            if transpose_out:
                # toy Cout < 128: keep the lane-dense (Cout, N*H*W) layout
                out_ref[:, ph * S:(ph + 1) * S] = yn.T
            else:
                out_ref[ph // 2, ph % 2] = yn


# ----------------------------------- JAX wrapper ------------------------------------

def unet_innermost_forward(x, w_down, w_up_t, gamma, beta):
    """x: (N, Cin, H, W). w_down: (inner, Cin, 4, 4). w_up_t: (inner, Cout, 4, 4)."""
    N, Cin, H, W = x.shape
    inner = w_down.shape[0]
    Cout = w_up_t.shape[1]
    assert H % 2 == 0 and W % 2 == 0, "stride-2 down/up path requires even H, W"
    Ho, Wo = H // 2, W // 2
    S = N * Ho * Wo
    transpose_out = Cout < 128        # lane-dense store layout for toy channel counts

    # --- cheap layout prep (one small pass over x; weights are tiny vs. activations) ---
    # 4 (row,col)-parity phases of the 1-padded NHWC input: every tap of the stride-2
    # conv becomes a static slice of one phase plane inside the kernel.
    x_nhwc = jnp.transpose(x, (0, 2, 3, 1))
    x_pad = jnp.pad(x_nhwc, ((0, 0), (1, 1), (1, 1), (0, 0)))
    xph = jnp.stack([x_pad[:, rh::2, rw::2, :] for rh in range(2) for rw in range(2)],
                    axis=0)                                     # (4, N, Ho+1, Wo+1, Cin)

    # Down weights grouped by input parity phase: wd[p, off] is the (Cin, inner) matrix
    # of tap (kh, kw) = (2*(off//2) + p//2, 2*(off%2) + p%2).  bf16 for the MXU.
    wt = jnp.transpose(w_down, (2, 3, 1, 0))                    # (kh, kw, Cin, inner)
    wd = jnp.stack(
        [jnp.stack([wt[2 * (off // 2) + p // 2, 2 * (off % 2) + p % 2]
                    for off in range(4)], axis=0) for p in range(4)],
        axis=0).astype(jnp.bfloat16)                            # (4, 4, Cin, inner)

    # Up weights grouped per output parity phase and tap.  bf16 for the MXU.
    wu_rows = []
    for qi in range(2):
        cols = []
        for qj in range(2):
            khs = (1, 3) if qi == 0 else (0, 2)
            kws = (1, 3) if qj == 0 else (0, 2)
            taps = [w_up_t[:, :, kh, kw] for kh in khs for kw in kws]   # each (inner, Cout)
            cols.append(jnp.stack(taps, axis=0))                        # (4, inner, Cout)
        wu_rows.append(jnp.stack(cols, axis=0))                         # (2, 4, inner, Cout)
    wu = jnp.stack(wu_rows, axis=0).astype(jnp.bfloat16)        # (2, 2, 4, inner, Cout)

    g = gamma.reshape(1, Cout).astype(jnp.float32)
    b = beta.reshape(1, Cout).astype(jnp.float32)

    if transpose_out:
        out_shape = (Cout, 4 * S)
        out_spec = pl.BlockSpec((Cout, 4 * S), lambda p: (0, 0))
    else:
        out_shape = (2, 2, S, Cout)
        out_spec = pl.BlockSpec((2, 2, S, Cout), lambda p: (0, 0, 0, 0))

    # VMEM budget from the actual resident buffers (+50% and fixed headroom for compiler
    # temporaries / the retained up-phase outputs) instead of a hardcoded limit.
    def nbytes(shape, dt):
        n = 1
        for d in shape:
            n *= d
        return n * jnp.dtype(dt).itemsize

    resident = (2 * nbytes((1, N, Ho + 1, Wo + 1, Cin), jnp.float32)   # xph phase (2-buf)
                + 2 * nbytes((1, 4, Cin, inner), jnp.bfloat16)          # wd tile (2-buf)
                + nbytes((2, 2, 4, inner, Cout), jnp.bfloat16)          # wu (resident)
                + 2 * nbytes((1, Cout), jnp.float32)                    # gamma, beta
                + nbytes(out_shape, jnp.float32)                        # output (resident)
                + nbytes((S, inner), jnp.float32)                       # h accumulator
                + nbytes((N, Ho + 2, Wo + 2, inner), jnp.float32)       # padded ReLU(h)
                + 4 * nbytes((S, Cout), jnp.float32))                   # retained up phases
    vmem_limit = int(min(max(resident * 3 // 2 + (4 << 20), 32 << 20), 100 << 20))

    kernel = functools.partial(_fused_unet_inner_kernel, N=N, Cin=Cin, inner=inner,
                               Cout=Cout, Ho=Ho, Wo=Wo, transpose_out=transpose_out)
    y_raw = pl.pallas_call(
        kernel,
        out_shape=jax.ShapeDtypeStruct(out_shape, jnp.float32),
        grid=(4,),                                 # one step per input parity phase
        in_specs=[
            pl.BlockSpec((1, N, Ho + 1, Wo + 1, Cin), lambda p: (p, 0, 0, 0, 0)),  # xph
            pl.BlockSpec((1, 4, Cin, inner), lambda p: (p, 0, 0, 0)),              # wd
            pl.BlockSpec((2, 2, 4, inner, Cout), lambda p: (0, 0, 0, 0, 0)),       # wu
            pl.BlockSpec((1, Cout), lambda p: (0, 0)),                             # gamma
            pl.BlockSpec((1, Cout), lambda p: (0, 0)),                             # beta
        ],
        out_specs=out_spec,
        scratch_shapes=[
            pltpu.VMEM((S, inner), jnp.float32),                  # accumulated h = down(x)
            pltpu.VMEM((N, Ho + 2, Wo + 2, inner), jnp.float32),  # zero-padded ReLU(h)
        ],
        compiler_params=pltpu.CompilerParams(
            dimension_semantics=("arbitrary",),    # reduction over input parity phases
            vmem_limit_bytes=vmem_limit),
    )(xph, wd, wu, g, b)

    # Depth-to-space reassembly of the 4 output parity phases + skip concat (tiny XLA
    # layout passes; an interleaved NCHW scatter is not expressible as a BlockSpec write).
    if transpose_out:
        y = y_raw.reshape(Cout, 2, 2, N, Ho, Wo).transpose(3, 0, 4, 1, 5, 2)
    else:
        y = y_raw.reshape(2, 2, N, Ho, Wo, Cout).transpose(2, 5, 3, 0, 4, 1)
    y = y.reshape(N, Cout, H, W)
    return jnp.concatenate([x, y], axis=1)
    # TODO(synk): outermost/middle UnetSkipConnectionBlock variants need a `submodule`
    # call between down and up; only the self-contained innermost block is implemented.


# -------------------------------- pure-JAX reference ---------------------------------

def _reference(x, w_down, w_up_t, gamma, beta):
    h = jnp.where(x > 0, x, 0.2 * x)
    h = lax.conv_general_dilated(h, w_down, (2, 2), ((1, 1), (1, 1)),
                                 dimension_numbers=('NCHW', 'OIHW', 'NCHW'))
    h = jnp.maximum(h, 0.0)
    w_up_conv = jnp.flip(w_up_t, axis=(2, 3)).transpose(1, 0, 2, 3)
    y = lax.conv_general_dilated(h, w_up_conv, (1, 1), ((2, 2), (2, 2)),
                                 lhs_dilation=(2, 2),
                                 dimension_numbers=('NCHW', 'OIHW', 'NCHW'))
    mean = jnp.mean(y, axis=(0, 2, 3), keepdims=True)
    var = jnp.mean((y - mean) ** 2, axis=(0, 2, 3), keepdims=True)
    y = (y - mean) * lax.rsqrt(var + 1e-5) * gamma.reshape(1, -1, 1, 1) \
        + beta.reshape(1, -1, 1, 1)
    return jnp.concatenate([x, y], axis=1)


# --------------------------------------- main -----------------------------------------

def _run_case(key, N, input_nc, inner_nc, H, W, tol):
    outer_nc = input_nc          # module default: input_nc = outer_nc
    k1, k2, k3, k4, k5 = jax.random.split(key, 5)
    x = jax.random.normal(k1, (N, input_nc, H, W), jnp.float32)
    # Conv2d weight (out=inner, in=input, 4, 4); bias=False (BatchNorm -> use_bias=False)
    w_down = 0.1 * jax.random.normal(k2, (inner_nc, input_nc, 4, 4), jnp.float32)
    # ConvTranspose2d weight (in=inner, out=outer, 4, 4); bias=False
    w_up_t = 0.1 * jax.random.normal(k3, (inner_nc, outer_nc, 4, 4), jnp.float32)
    gamma = 1.0 + 0.1 * jax.random.normal(k4, (outer_nc,), jnp.float32)
    beta = 0.1 * jax.random.normal(k5, (outer_nc,), jnp.float32)

    out = jax.jit(unet_innermost_forward)(x, w_down, w_up_t, gamma, beta)
    out = jax.block_until_ready(out)
    ref = _reference(x, w_down, w_up_t, gamma, beta)

    assert out.shape == (N, input_nc + outer_nc, H, W), out.shape
    # skip half is a pure pass-through -> exact
    assert bool(jnp.array_equal(out[:, :input_nc], x))
    # conv/BN half: bf16 MXU operands (f32 accumulation) vs f32 reference
    assert bool(jnp.allclose(out[:, input_nc:], ref[:, input_nc:], atol=tol, rtol=tol)), \
        float(jnp.max(jnp.abs(out[:, input_nc:] - ref[:, input_nc:])))


if __name__ == "__main__":
    key = jax.random.PRNGKey(0)
    k_a, k_b = jax.random.split(key)
    # toy shape (exercises the transposed lane-dense Cout < 128 output path)
    _run_case(k_a, N=2, input_nc=4, inner_nc=8, H=16, W=16, tol=5e-2)
    # moderate channel count (exercises the untransposed Cout >= 128 path, bf16 MXU K)
    _run_case(k_b, N=1, input_nc=128, inner_nc=256, H=8, W=8, tol=5e-2)
    print("KERNEL_OK")
</pallas_src>

<mosaic_0001>
module attributes {stable_mosaic.version = 11 : i64} {
  func.func @_fused_unet_inner_kernel(%arg0: i32, %arg1: memref<1x2x9x9x4xf32, #tpu.memory_space<vmem>>, %arg2: memref<1x4x4x8xbf16, #tpu.memory_space<vmem>>, %arg3: memref<2x2x4x8x4xbf16, #tpu.memory_space<vmem>>, %arg4: memref<1x4xf32, #tpu.memory_space<vmem>>, %arg5: memref<1x4xf32, #tpu.memory_space<vmem>>, %arg6: memref<4x512xf32, #tpu.memory_space<vmem>>, %arg7: memref<128x8xf32, #tpu.memory_space<vmem>>, %arg8: memref<2x10x10x8xf32, #tpu.memory_space<vmem>>) attributes {dimension_semantics = [#tpu.dimension_semantics<arbitrary>], iteration_bounds = array<i64: 4>, scalar_prefetch = 0 : i64, scratch_operands = 2 : i64, tpu.core_type = #tpu.core_type<tc>, window_params = [{transform_indices = @transform_0, window_bounds = array<i64: 1, 2, 9, 9, 4>}, {transform_indices = @transform_1, window_bounds = array<i64: 1, 4, 4, 8>}, {pipeline_mode = #tpu.pipeline_mode<synchronous>, transform_indices = @transform_2, window_bounds = array<i64: 2, 2, 4, 8, 4>}, {pipeline_mode = #tpu.pipeline_mode<synchronous>, transform_indices = @transform_3, window_bounds = array<i64: 1, 4>}, {pipeline_mode = #tpu.pipeline_mode<synchronous>, transform_indices = @transform_4, window_bounds = array<i64: 1, 4>}, {pipeline_mode = #tpu.pipeline_mode<synchronous>, transform_indices = @transform_5, window_bounds = array<i64: 4, 512>}]} {
    %c0_i32 = arith.constant 0 : i32
    %0 = arith.cmpi eq, %arg0, %c0_i32 : i32
    %1 = arith.extui %0 : i1 to i32
    %c0_i32_0 = arith.constant 0 : i32
    %2 = arith.cmpi ne, %1, %c0_i32_0 : i32
    scf.if %2 {
      %cst_49 = arith.constant 0.000000e+00 : f32
      %60 = vector.broadcast %cst_49 : f32 to vector<128x8xf32>
      %c0_50 = arith.constant 0 : index
      %c0_51 = arith.constant 0 : index
      %61 = vector.load %arg7[%c0_50, %c0_51] : memref<128x8xf32, #tpu.memory_space<vmem>>, vector<128x8xf32>
      tpu.vector_store %arg7[%c0_50, %c0_51], %60 {strides = array<i32>} : memref<128x8xf32, #tpu.memory_space<vmem>>, vector<128x8xf32>,
    } else {
    }
    %c0 = arith.constant 0 : index
    %c0_1 = arith.constant 0 : index
    %3 = vector.load %arg7[%c0, %c0_1] : memref<128x8xf32, #tpu.memory_space<vmem>>, vector<128x8xf32>
    %c0_2 = arith.constant 0 : index
    %c0_3 = arith.constant 0 : index
    %c0_4 = arith.constant 0 : index
    %c0_5 = arith.constant 0 : index
    %c0_6 = arith.constant 0 : index
    %4 = vector.load %arg1[%c0_2, %c0_3, %c0_4, %c0_5, %c0_6] : memref<1x2x9x9x4xf32, #tpu.memory_space<vmem>>, vector<1x2x8x8x4xf32>
    %5 = vector.shape_cast %4 : vector<1x2x8x8x4xf32> to vector<2x8x8x4xf32>
    %cst = arith.constant 0.000000e+00 : f32
    %6 = vector.broadcast %cst : f32 to vector<2x8x8x4xf32>
    %7 = arith.cmpf ogt, %5, %6 : vector<2x8x8x4xf32>
    %cst_7 = arith.constant 2.000000e-01 : f32
    %8 = vector.broadcast %cst_7 : f32 to vector<2x8x8x4xf32>
    %9 = arith.mulf %8, %5 : vector<2x8x8x4xf32>
    %10 = arith.select %7, %5, %9 : vector<2x8x8x4xi1>, vector<2x8x8x4xf32>
    %11 = vector.shape_cast %10 : vector<2x8x8x4xf32> to vector<128x4xf32>
    %12 = arith.truncf %11 : vector<128x4xf32> to vector<128x4xbf16>
    %c0_8 = arith.constant 0 : index
    %c0_9 = arith.constant 0 : index
    %c0_10 = arith.constant 0 : index
    %c0_11 = arith.constant 0 : index
    %13 = vector.load %arg2[%c0_8, %c0_9, %c0_10, %c0_11] : memref<1x4x4x8xbf16, #tpu.memory_space<vmem>>, vector<1x1x4x8xbf16>
    %14 = vector.shape_cast %13 : vector<1x1x4x8xbf16> to vector<4x8xbf16>
    %cst_12 = arith.constant dense<0.000000e+00> : vector<128x8xf32>
    %15 = tpu.matmul %12, %14, %cst_12 {dimension_numbers = #tpu.dot_dimension_numbers<[1], [0], [0], [1], [0, 0, 1, 1], [], []>} : vector<128x4xbf16>, vector<4x8xbf16>, vector<128x8xf32> -> vector<128x8xf32>
    %16 = arith.addf %3, %15 : vector<128x8xf32>
    %c0_13 = arith.constant 0 : index
    %c0_14 = arith.constant 0 : index
    %c0_15 = arith.constant 0 : index
    %c1 = arith.constant 1 : index
    %c0_16 = arith.constant 0 : index
    %17 = vector.load %arg1[%c0_13, %c0_14, %c0_15, %c1, %c0_16] : memref<1x2x9x9x4xf32, #tpu.memory_space<vmem>>, vector<1x2x8x8x4xf32>
    %18 = vector.shape_cast %17 : vector<1x2x8x8x4xf32> to vector<2x8x8x4xf32>
    %cst_17 = arith.constant 0.000000e+00 : f32
    %19 = vector.broadcast %cst_17 : f32 to vector<2x8x8x4xf32>
    %20 = arith.cmpf ogt, %18, %19 : vector<2x8x8x4xf32>
    %cst_18 = arith.constant 2.000000e-01 : f32
    %21 = vector.broadcast %cst_18 : f32 to vector<2x8x8x4xf32>
    %22 = arith.mulf %21, %18 : vector<2x8x8x4xf32>
    %23 = arith.select %20, %18, %22 : vector<2x8x8x4xi1>, vector<2x8x8x4xf32>
    %24 = vector.shape_cast %23 : vector<2x8x8x4xf32> to vector<128x4xf32>
    %25 = arith.truncf %24 : vector<128x4xf32> to vector<128x4xbf16>
    %c0_19 = arith.constant 0 : index
    %c1_20 = arith.constant 1 : index
    %c0_21 = arith.constant 0 : index
    %c0_22 = arith.constant 0 : index
    %26 = vector.load %arg2[%c0_19, %c1_20, %c0_21, %c0_22] : memref<1x4x4x8xbf16, #tpu.memory_space<vmem>>, vector<1x1x4x8xbf16>
    %27 = vector.shape_cast %26 : vector<1x1x4x8xbf16> to vector<4x8xbf16>
    %cst_23 = arith.constant dense<0.000000e+00> : vector<128x8xf32>
    %28 = tpu.matmul %25, %27, %cst_23 {dimension_numbers = #tpu.dot_dimension_numbers<[1], [0], [0], [1], [0, 0, 1, 1], [], []>} : vector<128x4xbf16>, vector<4x8xbf16>, vector<128x8xf32> -> vector<128x8xf32>
    %29 = arith.addf %16, %28 : vector<128x8xf32>
    %c0_24 = arith.constant 0 : index
    %c0_25 = arith.constant 0 : index
    %c1_26 = arith.constant 1 : index
    %c0_27 = arith.constant 0 : index
    %c0_28 = arith.constant 0 : index
    %30 = vector.load %arg1[%c0_24, %c0_25, %c1_26, %c0_27, %c0_28] : memref<1x2x9x9x4xf32, #tpu.memory_space<vmem>>, vector<1x2x8x8x4xf32>
    %31 = vector.shape_cast %30 : vector<1x2x8x8x4xf32> to vector<2x8x8x4xf32>
    %cst_29 = arith.constant 0.000000e+00 : f32
    %32 = vector.broadcast %cst_29 : f32 to vector<2x8x8x4xf32>
    %33 = arith.cmpf ogt, %31, %32 : vector<2x8x8x4xf32>
    %cst_30 = arith.constant 2.000000e-01 : f32
    %34 = vector.broadcast %cst_30 : f32 to vector<2x8x8x4xf32>
    %35 = arith.mulf %34, %31 : vector<2x8x8x4xf32>
    %36 = arith.select %33, %31, %35 : vector<2x8x8x4xi1>, vector<2x8x8x4xf32>
    %37 = vector.shape_cast %36 : vector<2x8x8x4xf32> to vector<128x4xf32>
    %38 = arith.truncf %37 : vector<128x4xf32> to vector<128x4xbf16>
    %c0_31 = arith.constant 0 : index
    %c2 = arith.constant 2 : index
    %c0_32 = arith.constant 0 : index
    %c0_33 = arith.constant 0 : index
    %39 = vector.load %arg2[%c0_31, %c2, %c0_32, %c0_33] : memref<1x4x4x8xbf16, #tpu.memory_space<vmem>>, vector<1x1x4x8xbf16>
    %40 = vector.shape_cast %39 : vector<1x1x4x8xbf16> to vector<4x8xbf16>
    %cst_34 = arith.constant dense<0.000000e+00> : vector<128x8xf32>
    %41 = tpu.matmul %38, %40, %cst_34 {dimension_numbers = #tpu.dot_dimension_numbers<[1], [0], [0], [1], [0, 0, 1, 1], [], []>} : vector<128x4xbf16>, vector<4x8xbf16>, vector<128x8xf32> -> vector<128x8xf32>
    %42 = arith.addf %29, %41 : vector<128x8xf32>
    %c0_35 = arith.constant 0 : index
    %c0_36 = arith.constant 0 : index
    %c1_37 = arith.constant 1 : index
    %c1_38 = arith.constant 1 : index
    %c0_39 = arith.constant 0 : index
    %43 = vector.load %arg1[%c0_35, %c0_36, %c1_37, %c1_38, %c0_39] : memref<1x2x9x9x4xf32, #tpu.memory_space<vmem>>, vector<1x2x8x8x4xf32>
    %44 = vector.shape_cast %43 : vector<1x2x8x8x4xf32> to vector<2x8x8x4xf32>
    %cst_40 = arith.constant 0.000000e+00 : f32
    %45 = vector.broadcast %cst_40 : f32 to vector<2x8x8x4xf32>
    %46 = arith.cmpf ogt, %44, %45 : vector<2x8x8x4xf32>
    %cst_41 = arith.constant 2.000000e-01 : f32
    %47 = vector.broadcast %cst_41 : f32 to vector<2x8x8x4xf32>
    %48 = arith.mulf %47, %44 : vector<2x8x8x4xf32>
    %49 = arith.select %46, %44, %48 : vector<2x8x8x4xi1>, vector<2x8x8x4xf32>
    %50 = vector.shape_cast %49 : vector<2x8x8x4xf32> to vector<128x4xf32>
    %51 = arith.truncf %50 : vector<128x4xf32> to vector<128x4xbf16>
    %c0_42 = arith.constant 0 : index
    %c3 = arith.constant 3 : index
    %c0_43 = arith.constant 0 : index
    %c0_44 = arith.constant 0 : index
    %52 = vector.load %arg2[%c0_42, %c3, %c0_43, %c0_44] : memref<1x4x4x8xbf16, #tpu.memory_space<vmem>>, vector<1x1x4x8xbf16>
    %53 = vector.shape_cast %52 : vector<1x1x4x8xbf16> to vector<4x8xbf16>
    %cst_45 = arith.constant dense<0.000000e+00> : vector<128x8xf32>
    %54 = tpu.matmul %51, %53, %cst_45 {dimension_numbers = #tpu.dot_dimension_numbers<[1], [0], [0], [1], [0, 0, 1, 1], [], []>} : vector<128x4xbf16>, vector<4x8xbf16>, vector<128x8xf32> -> vector<128x8xf32>
    %55 = arith.addf %42, %54 : vector<128x8xf32>
    %c0_46 = arith.constant 0 : index
    %c0_47 = arith.constant 0 : index
    %56 = vector.load %arg7[%c0_46, %c0_47] : memref<128x8xf32, #tpu.memory_space<vmem>>, vector<128x8xf32>
    tpu.vector_store %arg7[%c0_46, %c0_47], %55 {strides = array<i32>} : memref<128x8xf32, #tpu.memory_space<vmem>>, vector<128x8xf32>,
    %c3_i32 = arith.constant 3 : i32
    %57 = arith.cmpi eq, %arg0, %c3_i32 : i32
    %58 = arith.extui %57 : i1 to i32
    %c0_i32_48 = arith.constant 0 : i32
    %59 = arith.cmpi ne, %58, %c0_i32_48 : i32
    scf.if %59 {
      %c0_49 = arith.constant 0 : index
      %c0_50 = arith.constant 0 : index
      %60 = vector.load %arg7[%c0_49, %c0_50] : memref<128x8xf32, #tpu.memory_space<vmem>>, vector<128x8xf32>
      %cst_51 = arith.constant 0.000000e+00 : f32
      %61 = vector.broadcast %cst_51 : f32 to vector<128x8xf32>
      %62 = arith.maximumf %60, %61 : vector<128x8xf32>
      %63 = vector.shape_cast %62 : vector<128x8xf32> to vector<2x8x8x8xf32>
      %cst_52 = arith.constant 0.000000e+00 : f32
      %64 = vector.broadcast %cst_52 : f32 to vector<2x10x8xf32>
      %cst_53 = arith.constant 0.000000e+00 : f32
      %65 = vector.broadcast %cst_53 : f32 to vector<2x10x8xf32>
      %c0_54 = arith.constant 0 : index
      %c0_55 = arith.constant 0 : index
      %c0_56 = arith.constant 0 : index
      %c0_57 = arith.constant 0 : index
      %66 = vector.load %arg8[%c0_54, %c0_55, %c0_56, %c0_57] : memref<2x10x10x8xf32, #tpu.memory_space<vmem>>, vector<2x1x10x8xf32>
      %67 = vector.shape_cast %66 : vector<2x1x10x8xf32> to vector<2x10x8xf32>
      %68 = vector.shape_cast %64 : vector<2x10x8xf32> to vector<2x1x10x8xf32>
      tpu.vector_store %arg8[%c0_54, %c0_55, %c0_56, %c0_57], %68 {strides = array<i32>} : memref<2x10x10x8xf32, #tpu.memory_space<vmem>>, vector<2x1x10x8xf32>,
      %c0_58 = arith.constant 0 : index
      %c9 = arith.constant 9 : index
      %c0_59 = arith.constant 0 : index
      %c0_60 = arith.constant 0 : index
      %69 = vector.load %arg8[%c0_58, %c9, %c0_59, %c0_60] : memref<2x10x10x8xf32, #tpu.memory_space<vmem>>, vector<2x1x10x8xf32>
      %70 = vector.shape_cast %69 : vector<2x1x10x8xf32> to vector<2x10x8xf32>
      %71 = vector.shape_cast %64 : vector<2x10x8xf32> to vector<2x1x10x8xf32>
      tpu.vector_store %arg8[%c0_58, %c9, %c0_59, %c0_60], %71 {strides = array<i32>} : memref<2x10x10x8xf32, #tpu.memory_space<vmem>>, vector<2x1x10x8xf32>,
      %c0_61 = arith.constant 0 : index
      %c0_62 = arith.constant 0 : index
      %c0_63 = arith.constant 0 : index
      %c0_64 = arith.constant 0 : index
      %72 = vector.load %arg8[%c0_61, %c0_62, %c0_63, %c0_64] : memref<2x10x10x8xf32, #tpu.memory_space<vmem>>, vector<2x10x1x8xf32>
      %73 = vector.shape_cast %72 : vector<2x10x1x8xf32> to vector<2x10x8xf32>
      %74 = vector.shape_cast %65 : vector<2x10x8xf32> to vector<2x10x1x8xf32>
      tpu.vector_store %arg8[%c0_61, %c0_62, %c0_63, %c0_64], %74 {strides = array<i32>} : memref<2x10x10x8xf32, #tpu.memory_space<vmem>>, vector<2x10x1x8xf32>,
      %c0_65 = arith.constant 0 : index
      %c0_66 = arith.constant 0 : index
      %c9_67 = arith.constant 9 : index
      %c0_68 = arith.constant 0 : index
      %75 = vector.load %arg8[%c0_65, %c0_66, %c9_67, %c0_68] : memref<2x10x10x8xf32, #tpu.memory_space<vmem>>, vector<2x10x1x8xf32>
      %76 = vector.shape_cast %75 : vector<2x10x1x8xf32> to vector<2x10x8xf32>
      %77 = vector.shape_cast %65 : vector<2x10x8xf32> to vector<2x10x1x8xf32>
      tpu.vector_store %arg8[%c0_65, %c0_66, %c9_67, %c0_68], %77 {strides = array<i32>} : memref<2x10x10x8xf32, #tpu.memory_space<vmem>>, vector<2x10x1x8xf32>,
      %c0_69 = arith.constant 0 : index
      %c1_70 = arith.constant 1 : index
      %c1_71 = arith.constant 1 : index
      %c0_72 = arith.constant 0 : index
      %78 = vector.load %arg8[%c0_69, %c1_70, %c1_71, %c0_72] : memref<2x10x10x8xf32, #tpu.memory_space<vmem>>, vector<2x8x8x8xf32>
      tpu.vector_store %arg8[%c0_69, %c1_70, %c1_71, %c0_72], %63 {strides = array<i32>} : memref<2x10x10x8xf32, #tpu.memory_space<vmem>>, vector<2x8x8x8xf32>,
      %cst_73 = arith.constant 0.000000e+00 : f32
      %79 = vector.broadcast %cst_73 : f32 to vector<128x4xf32>
      %c0_74 = arith.constant 0 : index
      %c1_75 = arith.constant 1 : index
      %c1_76 = arith.constant 1 : index
      %c0_77 = arith.constant 0 : index
      %80 = vector.load %arg8[%c0_74, %c1_75, %c1_76, %c0_77] : memref<2x10x10x8xf32, #tpu.memory_space<vmem>>, vector<2x8x8x8xf32>
      %81 = vector.shape_cast %80 : vector<2x8x8x8xf32> to vector<128x8xf32>
      %82 = arith.truncf %81 : vector<128x8xf32> to vector<128x8xbf16>
      %c0_78 = arith.constant 0 : index
      %c0_79 = arith.constant 0 : index
      %c0_80 = arith.constant 0 : index
      %c0_81 = arith.constant 0 : index
      %c0_82 = arith.constant 0 : index
      %83 = vector.load %arg3[%c0_78, %c0_79, %c0_80, %c0_81, %c0_82] : memref<2x2x4x8x4xbf16, #tpu.memory_space<vmem>>, vector<1x1x1x8x4xbf16>
      %84 = vector.shape_cast %83 : vector<1x1x1x8x4xbf16> to vector<8x4xbf16>
      %cst_83 = arith.constant dense<0.000000e+00> : vector<128x4xf32>
      %85 = tpu.matmul %82, %84, %cst_83 {dimension_numbers = #tpu.dot_dimension_numbers<[1], [0], [0], [1], [0, 0, 1, 1], [], []>} : vector<128x8xbf16>, vector<8x4xbf16>, vector<128x4xf32> -> vector<128x4xf32>
      %86 = arith.addf %79, %85 : vector<128x4xf32>
      %c0_84 = arith.constant 0 : index
      %c1_85 = arith.constant 1 : index
      %c0_86 = arith.constant 0 : index
      %c0_87 = arith.constant 0 : index
      %87 = vector.load %arg8[%c0_84, %c1_85, %c0_86, %c0_87] : memref<2x10x10x8xf32, #tpu.memory_space<vmem>>, vector<2x8x8x8xf32>
      %88 = vector.shape_cast %87 : vector<2x8x8x8xf32> to vector<128x8xf32>
      %89 = arith.truncf %88 : vector<128x8xf32> to vector<128x8xbf16>
      %c0_88 = arith.constant 0 : index
      %c0_89 = arith.constant 0 : index
      %c1_90 = arith.constant 1 : index
      %c0_91 = arith.constant 0 : index
      %c0_92 = arith.constant 0 : index
      %90 = vector.load %arg3[%c0_88, %c0_89, %c1_90, %c0_91, %c0_92] : memref<2x2x4x8x4xbf16, #tpu.memory_space<vmem>>, vector<1x1x1x8x4xbf16>
      %91 = vector.shape_cast %90 : vector<1x1x1x8x4xbf16> to vector<8x4xbf16>
      %cst_93 = arith.constant dense<0.000000e+00> : vector<128x4xf32>
      %92 = tpu.matmul %89, %91, %cst_93 {dimension_numbers = #tpu.dot_dimension_numbers<[1], [0], [0], [1], [0, 0, 1, 1], [], []>} : vector<128x8xbf16>, vector<8x4xbf16>, vector<128x4xf32> -> vector<128x4xf32>
      %93 = arith.addf %86, %92 : vector<128x4xf32>
      %c0_94 = arith.constant 0 : index
      %c0_95 = arith.constant 0 : index
      %c1_96 = arith.constant 1 : index
      %c0_97 = arith.constant 0 : index
      %94 = vector.load %arg8[%c0_94, %c0_95, %c1_96, %c0_97] : memref<2x10x10x8xf32, #tpu.memory_space<vmem>>, vector<2x8x8x8xf32>
      %95 = vector.shape_cast %94 : vector<2x8x8x8xf32> to vector<128x8xf32>
      %96 = arith.truncf %95 : vector<128x8xf32> to vector<128x8xbf16>
      %c0_98 = arith.constant 0 : index
      %c0_99 = arith.constant 0 : index
      %c2_100 = arith.constant 2 : index
      %c0_101 = arith.constant 0 : index
      %c0_102 = arith.constant 0 : index
      %97 = vector.load %arg3[%c0_98, %c0_99, %c2_100, %c0_101, %c0_102] : memref<2x2x4x8x4xbf16, #tpu.memory_space<vmem>>, vector<1x1x1x8x4xbf16>
      %98 = vector.shape_cast %97 : vector<1x1x1x8x4xbf16> to vector<8x4xbf16>
      %cst_103 = arith.constant dense<0.000000e+00> : vector<128x4xf32>
      %99 = tpu.matmul %96, %98, %cst_103 {dimension_numbers = #tpu.dot_dimension_numbers<[1], [0], [0], [1], [0, 0, 1, 1], [], []>} : vector<128x8xbf16>, vector<8x4xbf16>, vector<128x4xf32> -> vector<128x4xf32>
      %100 = arith.addf %93, %99 : vector<128x4xf32>
      %c0_104 = arith.constant 0 : index
      %c0_105 = arith.constant 0 : index
      %c0_106 = arith.constant 0 : index
      %c0_107 = arith.constant 0 : index
      %101 = vector.load %arg8[%c0_104, %c0_105, %c0_106, %c0_107] : memref<2x10x10x8xf32, #tpu.memory_space<vmem>>, vector<2x8x8x8xf32>
      %102 = vector.shape_cast %101 : vector<2x8x8x8xf32> to vector<128x8xf32>
      %103 = arith.truncf %102 : vector<128x8xf32> to vector<128x8xbf16>
      %c0_108 = arith.constant 0 : index
      %c0_109 = arith.constant 0 : index
      %c3_110 = arith.constant 3 : index
      %c0_111 = arith.constant 0 : index
      %c0_112 = arith.constant 0 : index
      %104 = vector.load %arg3[%c0_108, %c0_109, %c3_110, %c0_111, %c0_112] : memref<2x2x4x8x4xbf16, #tpu.memory_space<vmem>>, vector<1x1x1x8x4xbf16>
      %105 = vector.shape_cast %104 : vector<1x1x1x8x4xbf16> to vector<8x4xbf16>
      %cst_113 = arith.constant dense<0.000000e+00> : vector<128x4xf32>
      %106 = tpu.matmul %103, %105, %cst_113 {dimension_numbers = #tpu.dot_dimension_numbers<[1], [0], [0], [1], [0, 0, 1, 1], [], []>} : vector<128x8xbf16>, vector<8x4xbf16>, vector<128x4xf32> -> vector<128x4xf32>
      %107 = arith.addf %100, %106 : vector<128x4xf32>
      %cst_114 = arith.constant dense<0.000000e+00> : vector<4xf32>
      %108 = vector.multi_reduction <add>, %107, %cst_114 [0] : vector<128x4xf32> to vector<4xf32>
      %109 = vector.shape_cast %108 : vector<4xf32> to vector<1x4xf32>
      %cst_115 = arith.constant 1.280000e+02 : f32
      %110 = vector.broadcast %cst_115 : f32 to vector<1x4xf32>
      %111 = arith.divf %109, %110 : vector<1x4xf32>
      %112 = vector.broadcast %111 : vector<1x4xf32> to vector<128x4xf32>
      %113 = arith.subf %107, %112 : vector<128x4xf32>
      %114 = arith.mulf %113, %113 : vector<128x4xf32>
      %cst_116 = arith.constant dense<0.000000e+00> : vector<4xf32>
      %115 = vector.multi_reduction <add>, %114, %cst_116 [0] : vector<128x4xf32> to vector<4xf32>
      %116 = vector.shape_cast %115 : vector<4xf32> to vector<1x4xf32>
      %cst_117 = arith.constant 0.000000e+00 : f32
      %117 = vector.broadcast %cst_117 : f32 to vector<128x4xf32>
      %c0_118 = arith.constant 0 : index
      %c1_119 = arith.constant 1 : index
      %c2_120 = arith.constant 2 : index
      %c0_121 = arith.constant 0 : index
      %118 = vector.load %arg8[%c0_118, %c1_119, %c2_120, %c0_121] : memref<2x10x10x8xf32, #tpu.memory_space<vmem>>, vector<2x8x8x8xf32>
      %119 = vector.shape_cast %118 : vector<2x8x8x8xf32> to vector<128x8xf32>
      %120 = arith.truncf %119 : vector<128x8xf32> to vector<128x8xbf16>
      %c0_122 = arith.constant 0 : index
      %c1_123 = arith.constant 1 : index
      %c0_124 = arith.constant 0 : index
      %c0_125 = arith.constant 0 : index
      %c0_126 = arith.constant 0 : index
      %121 = vector.load %arg3[%c0_122, %c1_123, %c0_124, %c0_125, %c0_126] : memref<2x2x4x8x4xbf16, #tpu.memory_space<vmem>>, vector<1x1x1x8x4xbf16>
      %122 = vector.shape_cast %121 : vector<1x1x1x8x4xbf16> to vector<8x4xbf16>
      %cst_127 = arith.constant dense<0.000000e+00> : vector<128x4xf32>
      %123 = tpu.matmul %120, %122, %cst_127 {dimension_numbers = #tpu.dot_dimension_numbers<[1], [0], [0], [1], [0, 0, 1, 1], [], []>} : vector<128x8xbf16>, vector<8x4xbf16>, vector<128x4xf32> -> vector<128x4xf32>
      %124 = arith.addf %117, %123 : vector<128x4xf32>
      %c0_128 = arith.constant 0 : index
      %c1_129 = arith.constant 1 : index
      %c1_130 = arith.constant 1 : index
      %c0_131 = arith.constant 0 : index
      %125 = vector.load %arg8[%c0_128, %c1_129, %c1_130, %c0_131] : memref<2x10x10x8xf32, #tpu.memory_space<vmem>>, vector<2x8x8x8xf32>
      %126 = vector.shape_cast %125 : vector<2x8x8x8xf32> to vector<128x8xf32>
      %127 = arith.truncf %126 : vector<128x8xf32> to vector<128x8xbf16>
      %c0_132 = arith.constant 0 : index
      %c1_133 = arith.constant 1 : index
      %c1_134 = arith.constant 1 : index
      %c0_135 = arith.constant 0 : index
      %c0_136 = arith.constant 0 : index
      %128 = vector.load %arg3[%c0_132, %c1_133, %c1_134, %c0_135, %c0_136] : memref<2x2x4x8x4xbf16, #tpu.memory_space<vmem>>, vector<1x1x1x8x4xbf16>
      %129 = vector.shape_cast %128 : vector<1x1x1x8x4xbf16> to vector<8x4xbf16>
      %cst_137 = arith.constant dense<0.000000e+00> : vector<128x4xf32>
      %130 = tpu.matmul %127, %129, %cst_137 {dimension_numbers = #tpu.dot_dimension_numbers<[1], [0], [0], [1], [0, 0, 1, 1], [], []>} : vector<128x8xbf16>, vector<8x4xbf16>, vector<128x4xf32> -> vector<128x4xf32>
      %131 = arith.addf %124, %130 : vector<128x4xf32>
      %c0_138 = arith.constant 0 : index
      %c0_139 = arith.constant 0 : index
      %c2_140 = arith.constant 2 : index
      %c0_141 = arith.constant 0 : index
      %132 = vector.load %arg8[%c0_138, %c0_139, %c2_140, %c0_141] : memref<2x10x10x8xf32, #tpu.memory_space<vmem>>, vector<2x8x8x8xf32>
      %133 = vector.shape_cast %132 : vector<2x8x8x8xf32> to vector<128x8xf32>
      %134 = arith.truncf %133 : vector<128x8xf32> to vector<128x8xbf16>
      %c0_142 = arith.constant 0 : index
      %c1_143 = arith.constant 1 : index
      %c2_144 = arith.constant 2 : index
      %c0_145 = arith.constant 0 : index
      %c0_146 = arith.constant 0 : index
      %135 = vector.load %arg3[%c0_142, %c1_143, %c2_144, %c0_145, %c0_146] : memref<2x2x4x8x4xbf16, #tpu.memory_space<vmem>>, vector<1x1x1x8x4xbf16>
      %136 = vector.shape_cast %135 : vector<1x1x1x8x4xbf16> to vector<8x4xbf16>
      %cst_147 = arith.constant dense<0.000000e+00> : vector<128x4xf32>
      %137 = tpu.matmul %134, %136, %cst_147 {dimension_numbers = #tpu.dot_dimension_numbers<[1], [0], [0], [1], [0, 0, 1, 1], [], []>} : vector<128x8xbf16>, vector<8x4xbf16>, vector<128x4xf32> -> vector<128x4xf32>
      %138 = arith.addf %131, %137 : vector<128x4xf32>
      %c0_148 = arith.constant 0 : index
      %c0_149 = arith.constant 0 : index
      %c1_150 = arith.constant 1 : index
      %c0_151 = arith.constant 0 : index
      %139 = vector.load %arg8[%c0_148, %c0_149, %c1_150, %c0_151] : memref<2x10x10x8xf32, #tpu.memory_space<vmem>>, vector<2x8x8x8xf32>
      %140 = vector.shape_cast %139 : vector<2x8x8x8xf32> to vector<128x8xf32>
      %141 = arith.truncf %140 : vector<128x8xf32> to vector<128x8xbf16>
      %c0_152 = arith.constant 0 : index
      %c1_153 = arith.constant 1 : index
      %c3_154 = arith.constant 3 : index
      %c0_155 = arith.constant 0 : index
      %c0_156 = arith.constant 0 : index
      %142 = vector.load %arg3[%c0_152, %c1_153, %c3_154, %c0_155, %c0_156] : memref<2x2x4x8x4xbf16, #tpu.memory_space<vmem>>, vector<1x1x1x8x4xbf16>
      %143 = vector.shape_cast %142 : vector<1x1x1x8x4xbf16> to vector<8x4xbf16>
      %cst_157 = arith.constant dense<0.000000e+00> : vector<128x4xf32>
      %144 = tpu.matmul %141, %143, %cst_157 {dimension_numbers = #tpu.dot_dimension_numbers<[1], [0], [0], [1], [0, 0, 1, 1], [], []>} : vector<128x8xbf16>, vector<8x4xbf16>, vector<128x4xf32> -> vector<128x4xf32>
      %145 = arith.addf %138, %144 : vector<128x4xf32>
      %cst_158 = arith.constant dense<0.000000e+00> : vector<4xf32>
      %146 = vector.multi_reduction <add>, %145, %cst_158 [0] : vector<128x4xf32> to vector<4xf32>
      %147 = vector.shape_cast %146 : vector<4xf32> to vector<1x4xf32>
      %cst_159 = arith.constant 1.280000e+02 : f32
      %148 = vector.broadcast %cst_159 : f32 to vector<1x4xf32>
      %149 = arith.divf %147, %148 : vector<1x4xf32>
      %150 = vector.broadcast %149 : vector<1x4xf32> to vector<128x4xf32>
      %151 = arith.subf %145, %150 : vector<128x4xf32>
      %152 = arith.mulf %151, %151 : vector<128x4xf32>
      %cst_160 = arith.constant dense<0.000000e+00> : vector<4xf32>
      %153 = vector.multi_reduction <add>, %152, %cst_160 [0] : vector<128x4xf32> to vector<4xf32>
      %154 = vector.shape_cast %153 : vector<4xf32> to vector<1x4xf32>
      %cst_161 = arith.constant 0.000000e+00 : f32
      %155 = vector.broadcast %cst_161 : f32 to vector<128x4xf32>
      %c0_162 = arith.constant 0 : index
      %c2_163 = arith.constant 2 : index
      %c1_164 = arith.constant 1 : index
      %c0_165 = arith.constant 0 : index
      %156 = vector.load %arg8[%c0_162, %c2_163, %c1_164, %c0_165] : memref<2x10x10x8xf32, #tpu.memory_space<vmem>>, vector<2x8x8x8xf32>
      %157 = vector.shape_cast %156 : vector<2x8x8x8xf32> to vector<128x8xf32>
      %158 = arith.truncf %157 : vector<128x8xf32> to vector<128x8xbf16>
      %c1_166 = arith.constant 1 : index
      %c0_167 = arith.constant 0 : index
      %c0_168 = arith.constant 0 : index
      %c0_169 = arith.constant 0 : index
      %c0_170 = arith.constant 0 : index
      %159 = vector.load %arg3[%c1_166, %c0_167, %c0_168, %c0_169, %c0_170] : memref<2x2x4x8x4xbf16, #tpu.memory_space<vmem>>, vector<1x1x1x8x4xbf16>
      %160 = vector.shape_cast %159 : vector<1x1x1x8x4xbf16> to vector<8x4xbf16>
      %cst_171 = arith.constant dense<0.000000e+00> : vector<128x4xf32>
      %161 = tpu.matmul %158, %160, %cst_171 {dimension_numbers = #tpu.dot_dimension_numbers<[1], [0], [0], [1], [0, 0, 1, 1], [], []>} : vector<128x8xbf16>, vector<8x4xbf16>, vector<128x4xf32> -> vector<128x4xf32>
      %162 = arith.addf %155, %161 : vector<128x4xf32>
      %c0_172 = arith.constant 0 : index
      %c2_173 = arith.constant 2 : index
      %c0_174 = arith.constant 0 : index
      %c0_175 = arith.constant 0 : index
      %163 = vector.load %arg8[%c0_172, %c2_173, %c0_174, %c0_175] : memref<2x10x10x8xf32, #tpu.memory_space<vmem>>, vector<2x8x8x8xf32>
      %164 = vector.shape_cast %163 : vector<2x8x8x8xf32> to vector<128x8xf32>
      %165 = arith.truncf %164 : vector<128x8xf32> to vector<128x8xbf16>
      %c1_176 = arith.constant 1 : index
      %c0_177 = arith.constant 0 : index
      %c1_178 = arith.constant 1 : index
      %c0_179 = arith.constant 0 : index
      %c0_180 = arith.constant 0 : index
      %166 = vector.load %arg3[%c1_176, %c0_177, %c1_178, %c0_179, %c0_180] : memref<2x2x4x8x4xbf16, #tpu.memory_space<vmem>>, vector<1x1x1x8x4xbf16>
      %167 = vector.shape_cast %166 : vector<1x1x1x8x4xbf16> to vector<8x4xbf16>
      %cst_181 = arith.constant dense<0.000000e+00> : vector<128x4xf32>
      %168 = tpu.matmul %165, %167, %cst_181 {dimension_numbers = #tpu.dot_dimension_numbers<[1], [0], [0], [1], [0, 0, 1, 1], [], []>} : vector<128x8xbf16>, vector<8x4xbf16>, vector<128x4xf32> -> vector<128x4xf32>
      %169 = arith.addf %162, %168 : vector<128x4xf32>
      %c0_182 = arith.constant 0 : index
      %c1_183 = arith.constant 1 : index
      %c1_184 = arith.constant 1 : index
      %c0_185 = arith.constant 0 : index
      %170 = vector.load %arg8[%c0_182, %c1_183, %c1_184, %c0_185] : memref<2x10x10x8xf32, #tpu.memory_space<vmem>>, vector<2x8x8x8xf32>
      %171 = vector.shape_cast %170 : vector<2x8x8x8xf32> to vector<128x8xf32>
      %172 = arith.truncf %171 : vector<128x8xf32> to vector<128x8xbf16>
      %c1_186 = arith.constant 1 : index
      %c0_187 = arith.constant 0 : index
      %c2_188 = arith.constant 2 : index
      %c0_189 = arith.constant 0 : index
      %c0_190 = arith.constant 0 : index
      %173 = vector.load %arg3[%c1_186, %c0_187, %c2_188, %c0_189, %c0_190] : memref<2x2x4x8x4xbf16, #tpu.memory_space<vmem>>, vector<1x1x1x8x4xbf16>
      %174 = vector.shape_cast %173 : vector<1x1x1x8x4xbf16> to vector<8x4xbf16>
      %cst_191 = arith.constant dense<0.000000e+00> : vector<128x4xf32>
      %175 = tpu.matmul %172, %174, %cst_191 {dimension_numbers = #tpu.dot_dimension_numbers<[1], [0], [0], [1], [0, 0, 1, 1], [], []>} : vector<128x8xbf16>, vector<8x4xbf16>, vector<128x4xf32> -> vector<128x4xf32>
      %176 = arith.addf %169, %175 : vector<128x4xf32>
      %c0_192 = arith.constant 0 : index
      %c1_193 = arith.constant 1 : index
      %c0_194 = arith.constant 0 : index
      %c0_195 = arith.constant 0 : index
      %177 = vector.load %arg8[%c0_192, %c1_193, %c0_194, %c0_195] : memref<2x10x10x8xf32, #tpu.memory_space<vmem>>, vector<2x8x8x8xf32>
      %178 = vector.shape_cast %177 : vector<2x8x8x8xf32> to vector<128x8xf32>
      %179 = arith.truncf %178 : vector<128x8xf32> to vector<128x8xbf16>
      %c1_196 = arith.constant 1 : index
      %c0_197 = arith.constant 0 : index
      %c3_198 = arith.constant 3 : index
      %c0_199 = arith.constant 0 : index
      %c0_200 = arith.constant 0 : index
      %180 = vector.load %arg3[%c1_196, %c0_197, %c3_198, %c0_199, %c0_200] : memref<2x2x4x8x4xbf16, #tpu.memory_space<vmem>>, vector<1x1x1x8x4xbf16>
      %181 = vector.shape_cast %180 : vector<1x1x1x8x4xbf16> to vector<8x4xbf16>
      %cst_201 = arith.constant dense<0.000000e+00> : vector<128x4xf32>
      %182 = tpu.matmul %179, %181, %cst_201 {dimension_numbers = #tpu.dot_dimension_numbers<[1], [0], [0], [1], [0, 0, 1, 1], [], []>} : vector<128x8xbf16>, vector<8x4xbf16>, vector<128x4xf32> -> vector<128x4xf32>
      %183 = arith.addf %176, %182 : vector<128x4xf32>
      %cst_202 = arith.constant dense<0.000000e+00> : vector<4xf32>
      %184 = vector.multi_reduction <add>, %183, %cst_202 [0] : vector<128x4xf32> to vector<4xf32>
      %185 = vector.shape_cast %184 : vector<4xf32> to vector<1x4xf32>
      %cst_203 = arith.constant 1.280000e+02 : f32
      %186 = vector.broadcast %cst_203 : f32 to vector<1x4xf32>
      %187 = arith.divf %185, %186 : vector<1x4xf32>
      %188 = vector.broadcast %187 : vector<1x4xf32> to vector<128x4xf32>
      %189 = arith.subf %183, %188 : vector<128x4xf32>
      %190 = arith.mulf %189, %189 : vector<128x4xf32>
      %cst_204 = arith.constant dense<0.000000e+00> : vector<4xf32>
      %191 = vector.multi_reduction <add>, %190, %cst_204 [0] : vector<128x4xf32> to vector<4xf32>
      %192 = vector.shape_cast %191 : vector<4xf32> to vector<1x4xf32>
      %cst_205 = arith.constant 0.000000e+00 : f32
      %193 = vector.broadcast %cst_205 : f32 to vector<128x4xf32>
      %c0_206 = arith.constant 0 : index
      %c2_207 = arith.constant 2 : index
      %c2_208 = arith.constant 2 : index
      %c0_209 = arith.constant 0 : index
      %194 = vector.load %arg8[%c0_206, %c2_207, %c2_208, %c0_209] : memref<2x10x10x8xf32, #tpu.memory_space<vmem>>, vector<2x8x8x8xf32>
      %195 = vector.shape_cast %194 : vector<2x8x8x8xf32> to vector<128x8xf32>
      %196 = arith.truncf %195 : vector<128x8xf32> to vector<128x8xbf16>
      %c1_210 = arith.constant 1 : index
      %c1_211 = arith.constant 1 : index
      %c0_212 = arith.constant 0 : index
      %c0_213 = arith.constant 0 : index
      %c0_214 = arith.constant 0 : index
      %197 = vector.load %arg3[%c1_210, %c1_211, %c0_212, %c0_213, %c0_214] : memref<2x2x4x8x4xbf16, #tpu.memory_space<vmem>>, vector<1x1x1x8x4xbf16>
      %198 = vector.shape_cast %197 : vector<1x1x1x8x4xbf16> to vector<8x4xbf16>
      %cst_215 = arith.constant dense<0.000000e+00> : vector<128x4xf32>
      %199 = tpu.matmul %196, %198, %cst_215 {dimension_numbers = #tpu.dot_dimension_numbers<[1], [0], [0], [1], [0, 0, 1, 1], [], []>} : vector<128x8xbf16>, vector<8x4xbf16>, vector<128x4xf32> -> vector<128x4xf32>
      %200 = arith.addf %193, %199 : vector<128x4xf32>
      %c0_216 = arith.constant 0 : index
      %c2_217 = arith.constant 2 : index
      %c1_218 = arith.constant 1 : index
      %c0_219 = arith.constant 0 : index
      %201 = vector.load %arg8[%c0_216, %c2_217, %c1_218, %c0_219] : memref<2x10x10x8xf32, #tpu.memory_space<vmem>>, vector<2x8x8x8xf32>
      %202 = vector.shape_cast %201 : vector<2x8x8x8xf32> to vector<128x8xf32>
      %203 = arith.truncf %202 : vector<128x8xf32> to vector<128x8xbf16>
      %c1_220 = arith.constant 1 : index
      %c1_221 = arith.constant 1 : index
      %c1_222 = arith.constant 1 : index
      %c0_223 = arith.constant 0 : index
      %c0_224 = arith.constant 0 : index
      %204 = vector.load %arg3[%c1_220, %c1_221, %c1_222, %c0_223, %c0_224] : memref<2x2x4x8x4xbf16, #tpu.memory_space<vmem>>, vector<1x1x1x8x4xbf16>
      %205 = vector.shape_cast %204 : vector<1x1x1x8x4xbf16> to vector<8x4xbf16>
      %cst_225 = arith.constant dense<0.000000e+00> : vector<128x4xf32>
      %206 = tpu.matmul %203, %205, %cst_225 {dimension_numbers = #tpu.dot_dimension_numbers<[1], [0], [0], [1], [0, 0, 1, 1], [], []>} : vector<128x8xbf16>, vector<8x4xbf16>, vector<128x4xf32> -> vector<128x4xf32>
      %207 = arith.addf %200, %206 : vector<128x4xf32>
      %c0_226 = arith.constant 0 : index
      %c1_227 = arith.constant 1 : index
      %c2_228 = arith.constant 2 : index
      %c0_229 = arith.constant 0 : index
      %208 = vector.load %arg8[%c0_226, %c1_227, %c2_228, %c0_229] : memref<2x10x10x8xf32, #tpu.memory_space<vmem>>, vector<2x8x8x8xf32>
      %209 = vector.shape_cast %208 : vector<2x8x8x8xf32> to vector<128x8xf32>
      %210 = arith.truncf %209 : vector<128x8xf32> to vector<128x8xbf16>
      %c1_230 = arith.constant 1 : index
      %c1_231 = arith.constant 1 : index
      %c2_232 = arith.constant 2 : index
      %c0_233 = arith.constant 0 : index
      %c0_234 = arith.constant 0 : index
      %211 = vector.load %arg3[%c1_230, %c1_231, %c2_232, %c0_233, %c0_234] : memref<2x2x4x8x4xbf16, #tpu.memory_space<vmem>>, vector<1x1x1x8x4xbf16>
      %212 = vector.shape_cast %211 : vector<1x1x1x8x4xbf16> to vector<8x4xbf16>
      %cst_235 = arith.constant dense<0.000000e+00> : vector<128x4xf32>
      %213 = tpu.matmul %210, %212, %cst_235 {dimension_numbers = #tpu.dot_dimension_numbers<[1], [0], [0], [1], [0, 0, 1, 1], [], []>} : vector<128x8xbf16>, vector<8x4xbf16>, vector<128x4xf32> -> vector<128x4xf32>
      %214 = arith.addf %207, %213 : vector<128x4xf32>
      %c0_236 = arith.constant 0 : index
      %c1_237 = arith.constant 1 : index
      %c1_238 = arith.constant 1 : index
      %c0_239 = arith.constant 0 : index
      %215 = vector.load %arg8[%c0_236, %c1_237, %c1_238, %c0_239] : memref<2x10x10x8xf32, #tpu.memory_space<vmem>>, vector<2x8x8x8xf32>
      %216 = vector.shape_cast %215 : vector<2x8x8x8xf32> to vector<128x8xf32>
      %217 = arith.truncf %216 : vector<128x8xf32> to vector<128x8xbf16>
      %c1_240 = arith.constant 1 : index
      %c1_241 = arith.constant 1 : index
      %c3_242 = arith.constant 3 : index
      %c0_243 = arith.constant 0 : index
      %c0_244 = arith.constant 0 : index
      %218 = vector.load %arg3[%c1_240, %c1_241, %c3_242, %c0_243, %c0_244] : memref<2x2x4x8x4xbf16, #tpu.memory_space<vmem>>, vector<1x1x1x8x4xbf16>
      %219 = vector.shape_cast %218 : vector<1x1x1x8x4xbf16> to vector<8x4xbf16>
      %cst_245 = arith.constant dense<0.000000e+00> : vector<128x4xf32>
      %220 = tpu.matmul %217, %219, %cst_245 {dimension_numbers = #tpu.dot_dimension_numbers<[1], [0], [0], [1], [0, 0, 1, 1], [], []>} : vector<128x8xbf16>, vector<8x4xbf16>, vector<128x4xf32> -> vector<128x4xf32>
      %221 = arith.addf %214, %220 : vector<128x4xf32>
      %cst_246 = arith.constant dense<0.000000e+00> : vector<4xf32>
      %222 = vector.multi_reduction <add>, %221, %cst_246 [0] : vector<128x4xf32> to vector<4xf32>
      %223 = vector.shape_cast %222 : vector<4xf32> to vector<1x4xf32>
      %cst_247 = arith.constant 1.280000e+02 : f32
      %224 = vector.broadcast %cst_247 : f32 to vector<1x4xf32>
      %225 = arith.divf %223, %224 : vector<1x4xf32>
      %226 = vector.broadcast %225 : vector<1x4xf32> to vector<128x4xf32>
      %227 = arith.subf %221, %226 : vector<128x4xf32>
      %228 = arith.mulf %227, %227 : vector<128x4xf32>
      %cst_248 = arith.constant dense<0.000000e+00> : vector<4xf32>
      %229 = vector.multi_reduction <add>, %228, %cst_248 [0] : vector<128x4xf32> to vector<4xf32>
      %230 = vector.shape_cast %229 : vector<4xf32> to vector<1x4xf32>
      %231 = arith.addf %111, %149 : vector<1x4xf32>
      %232 = arith.addf %231, %187 : vector<1x4xf32>
      %233 = arith.addf %232, %225 : vector<1x4xf32>
      %cst_249 = arith.constant 2.500000e-01 : f32
      %234 = vector.broadcast %cst_249 : f32 to vector<1x4xf32>
      %235 = arith.mulf %233, %234 : vector<1x4xf32>
      %236 = arith.addf %116, %154 : vector<1x4xf32>
      %237 = arith.addf %236, %192 : vector<1x4xf32>
      %238 = arith.addf %237, %230 : vector<1x4xf32>
      %239 = arith.subf %111, %235 : vector<1x4xf32>
      %cst_250 = arith.constant 1.280000e+02 : f32
      %240 = vector.broadcast %cst_250 : f32 to vector<1x4xf32>
      %241 = arith.mulf %240, %239 : vector<1x4xf32>
      %242 = arith.mulf %241, %239 : vector<1x4xf32>
      %243 = arith.addf %238, %242 : vector<1x4xf32>
      %244 = arith.subf %149, %235 : vector<1x4xf32>
      %cst_251 = arith.constant 1.280000e+02 : f32
      %245 = vector.broadcast %cst_251 : f32 to vector<1x4xf32>
      %246 = arith.mulf %245, %244 : vector<1x4xf32>
      %247 = arith.mulf %246, %244 : vector<1x4xf32>
      %248 = arith.addf %243, %247 : vector<1x4xf32>
      %249 = arith.subf %187, %235 : vector<1x4xf32>
      %cst_252 = arith.constant 1.280000e+02 : f32
      %250 = vector.broadcast %cst_252 : f32 to vector<1x4xf32>
      %251 = arith.mulf %250, %249 : vector<1x4xf32>
      %252 = arith.mulf %251, %249 : vector<1x4xf32>
      %253 = arith.addf %248, %252 : vector<1x4xf32>
      %254 = arith.subf %225, %235 : vector<1x4xf32>
      %cst_253 = arith.constant 1.280000e+02 : f32
      %255 = vector.broadcast %cst_253 : f32 to vector<1x4xf32>
      %256 = arith.mulf %255, %254 : vector<1x4xf32>
      %257 = arith.mulf %256, %254 : vector<1x4xf32>
      %258 = arith.addf %253, %257 : vector<1x4xf32>
      %cst_254 = arith.constant 0.001953125 : f32
      %259 = vector.broadcast %cst_254 : f32 to vector<1x4xf32>
      %260 = arith.mulf %258, %259 : vector<1x4xf32>
      %c0_255 = arith.constant 0 : index
      %c0_256 = arith.constant 0 : index
      %261 = vector.load %arg4[%c0_255, %c0_256] : memref<1x4xf32, #tpu.memory_space<vmem>>, vector<1x4xf32>
      %cst_257 = arith.constant 9.99999974E-6 : f32
      %262 = vector.broadcast %cst_257 : f32 to vector<1x4xf32>
      %263 = arith.addf %260, %262 : vector<1x4xf32>
      %264 = math.rsqrt %263 : vector<1x4xf32>
      %265 = arith.mulf %261, %264 : vector<1x4xf32>
      %c0_258 = arith.constant 0 : index
      %c0_259 = arith.constant 0 : index
      %266 = vector.load %arg5[%c0_258, %c0_259] : memref<1x4xf32, #tpu.memory_space<vmem>>, vector<1x4xf32>
      %267 = arith.mulf %235, %265 : vector<1x4xf32>
      %268 = arith.subf %266, %267 : vector<1x4xf32>
      %269 = vector.broadcast %265 : vector<1x4xf32> to vector<128x4xf32>
      %270 = arith.mulf %107, %269 : vector<128x4xf32>
      %271 = vector.broadcast %268 : vector<1x4xf32> to vector<128x4xf32>
      %272 = arith.addf %270, %271 : vector<128x4xf32>
      %273 = tpu.transpose %272, [1, 0] : vector<128x4xf32> -> vector<4x128xf32>
      %c0_260 = arith.constant 0 : index
      %c0_261 = arith.constant 0 : index
      %274 = vector.load %arg6[%c0_260, %c0_261] : memref<4x512xf32, #tpu.memory_space<vmem>>, vector<4x128xf32>
      tpu.vector_store %arg6[%c0_260, %c0_261], %273 {strides = array<i32>} : memref<4x512xf32, #tpu.memory_space<vmem>>, vector<4x128xf32>,
      %275 = vector.broadcast %265 : vector<1x4xf32> to vector<128x4xf32>
      %276 = arith.mulf %145, %275 : vector<128x4xf32>
      %277 = vector.broadcast %268 : vector<1x4xf32> to vector<128x4xf32>
      %278 = arith.addf %276, %277 : vector<128x4xf32>
      %279 = tpu.transpose %278, [1, 0] : vector<128x4xf32> -> vector<4x128xf32>
      %c0_262 = arith.constant 0 : index
      %c128 = arith.constant 128 : index
      %280 = vector.load %arg6[%c0_262, %c128] : memref<4x512xf32, #tpu.memory_space<vmem>>, vector<4x128xf32>
      tpu.vector_store %arg6[%c0_262, %c128], %279 {strides = array<i32>} : memref<4x512xf32, #tpu.memory_space<vmem>>, vector<4x128xf32>,
      %281 = vector.broadcast %265 : vector<1x4xf32> to vector<128x4xf32>
      %282 = arith.mulf %183, %281 : vector<128x4xf32>
      %283 = vector.broadcast %268 : vector<1x4xf32> to vector<128x4xf32>
      %284 = arith.addf %282, %283 : vector<128x4xf32>
      %285 = tpu.transpose %284, [1, 0] : vector<128x4xf32> -> vector<4x128xf32>
      %c0_263 = arith.constant 0 : index
      %c256 = arith.constant 256 : index
      %286 = vector.load %arg6[%c0_263, %c256] : memref<4x512xf32, #tpu.memory_space<vmem>>, vector<4x128xf32>
      tpu.vector_store %arg6[%c0_263, %c256], %285 {strides = array<i32>} : memref<4x512xf32, #tpu.memory_space<vmem>>, vector<4x128xf32>,
      %287 = vector.broadcast %265 : vector<1x4xf32> to vector<128x4xf32>
      %288 = arith.mulf %221, %287 : vector<128x4xf32>
      %289 = vector.broadcast %268 : vector<1x4xf32> to vector<128x4xf32>
      %290 = arith.addf %288, %289 : vector<128x4xf32>
      %291 = tpu.transpose %290, [1, 0] : vector<128x4xf32> -> vector<4x128xf32>
      %c0_264 = arith.constant 0 : index
      %c384 = arith.constant 384 : index
      %292 = vector.load %arg6[%c0_264, %c384] : memref<4x512xf32, #tpu.memory_space<vmem>>, vector<4x128xf32>
      tpu.vector_store %arg6[%c0_264, %c384], %291 {strides = array<i32>} : memref<4x512xf32, #tpu.memory_space<vmem>>, vector<4x128xf32>,
    } else {
    }
    return
  }
  func.func @transform_0(%arg0: i32) -> (i32, i32, i32, i32, i32) {
    %c0_i32 = arith.constant 0 : i32
    %c0_i32_0 = arith.constant 0 : i32
    %c0_i32_1 = arith.constant 0 : i32
    %c0_i32_2 = arith.constant 0 : i32
    %c0_i32_3 = arith.constant 0 : i32
    return %arg0, %c0_i32, %c0_i32_0, %c0_i32_1, %c0_i32_2 : i32, i32, i32, i32, i32
  }
  func.func @transform_1(%arg0: i32) -> (i32, i32, i32, i32) {
    %c0_i32 = arith.constant 0 : i32
    %c0_i32_0 = arith.constant 0 : i32
    %c0_i32_1 = arith.constant 0 : i32
    %c0_i32_2 = arith.constant 0 : i32
    return %arg0, %c0_i32, %c0_i32_0, %c0_i32_1 : i32, i32, i32, i32
  }
  func.func @transform_2(%arg0: i32) -> (i32, i32, i32, i32, i32) {
    %c0_i32 = arith.constant 0 : i32
    %c0_i32_0 = arith.constant 0 : i32
    %c0_i32_1 = arith.constant 0 : i32
    %c0_i32_2 = arith.constant 0 : i32
    %c0_i32_3 = arith.constant 0 : i32
    %c0_i32_4 = arith.constant 0 : i32
    return %c0_i32, %c0_i32_0, %c0_i32_1, %c0_i32_2, %c0_i32_3 : i32, i32, i32, i32, i32
  }
  func.func @transform_3(%arg0: i32) -> (i32, i32) {
    %c0_i32 = arith.constant 0 : i32
    %c0_i32_0 = arith.constant 0 : i32
    %c0_i32_1 = arith.constant 0 : i32
    return %c0_i32, %c0_i32_0 : i32, i32
  }
  func.func @transform_4(%arg0: i32) -> (i32, i32) {
    %c0_i32 = arith.constant 0 : i32
    %c0_i32_0 = arith.constant 0 : i32
    %c0_i32_1 = arith.constant 0 : i32
    return %c0_i32, %c0_i32_0 : i32, i32
  }
  func.func @transform_5(%arg0: i32) -> (i32, i32) {
    %c0_i32 = arith.constant 0 : i32
    %c0_i32_0 = arith.constant 0 : i32
    %c0_i32_1 = arith.constant 0 : i32
    return %c0_i32, %c0_i32_0 : i32, i32
  }
}

</mosaic_0001>

<llo_original>
// kernel: unet_innermost_forward.1
$region0: #{unet_innermost_forward.1}
  #allocation0 [shape = 'u32[]', space=smem, size = 0x4, offset = 0x4, fixed_abs, tag = 'smem constant byte address 0x4 - core index']
  #allocation1 [shape = 'u32[72,128]{1,0:T(1,128)}', space=vmem, size = 0x9000, scoped, tag = 'internal scratch']
  #allocation2 [shape = 'f32[128,8]{1,0:T(8,128)}', space=vmem, size = 0x10000, scoped, tag = 'scratch operand']
  #allocation3 [shape = 'f32[2,10,10,8]{3,2,1,0:T(8,128)}', space=vmem, size = 0x28000, scoped, tag = 'scratch operand']
  %s0 = inlined_call_operand.vmem [shape: f32[4,2,9,9,4], index: 0, kind: input, shape index: {}]
  %s1 = inlined_call_operand.vmem [shape: bf16[4,4,4,8], index: 1, kind: input, shape index: {}]
  %s2 = inlined_call_operand.vmem [shape: bf16[2,2,4,8,4], index: 2, kind: input, shape index: {}]
  %s3 = inlined_call_operand.vmem [shape: f32[1,4], index: 3, kind: input, shape index: {}]
  %s4 = inlined_call_operand.vmem [shape: f32[1,4], index: 4, kind: input, shape index: {}]
  %s5 = inlined_call_operand.vmem [shape: f32[4,512], index: 5, kind: output, shape index: {}]
  %s6 = sld [smem:[#allocation0]]
  $region61: #{unet_innermost_forward.1} parent=0
    _
  %s8 = ssub.s32 1, %s6
  %s9 = scalar_select 0, %s8, %s6
  loop: start=0, step=1, limit=6
  $region2: #{unet_innermost_forward.1} parent=0 // loop_pre_header
    _
  $region3: #{unet_innermost_forward.1} parent=0 // loop_header
    %s11 = sphi 0, %s15
    %p12 = scmp.ge.s32.totalorder %s11, 6
    %s21 = sphi 0, %s23
    %s24 = sphi 0, %s21
    %s25 = sphi 0, %s24
    %s41 = sphi 0, %s25
    %s47 = sphi 0, %s49
    %s50 = sphi 0, %s47
    %s51 = sphi 0, %s50
    %s67 = sphi 0, %s51
    %s71 = sphi 0, %s71
    %s73 = sphi 0, %s71
    %s74 = sphi 0, %s73
    %s88 = sphi 0, %s74
    %s92 = sphi 0, %s92
    %s94 = sphi 0, %s92
    %s95 = sphi 0, %s94
    %s109 = sphi 0, %s95
    %s113 = sphi 0, %s113
    %s115 = sphi 0, %s113
    %s116 = sphi 0, %s115
    %s130 = sphi 0, %s116
    %s134 = sphi 0, %s134
    %s136 = sphi 0, %s134
    %s137 = sphi 0, %s136
    %s151 = sphi 0, %s137
  $region4: #{unet_innermost_forward.1} parent=0 // loop_header_branch
    %14 = sbr.rel (%p12) target = $region8
  $region5: #{unet_innermost_forward.1} parent=0 // loop_body
    %s16 = ssub.s32 %s11, 1
    %s17 = ssub.s32 %s11, 2
    %s18 = sadd.s32 %s11, 1
    %s19 = ssub.s32 %s11, %s18
    %p20 = scmp.eq.s32.totalorder %s19, 0
    %s22 = sadd.s32 %s21, 1
    %s23 = scalar_select %p20, %s21, %s22
    %p26 = pneg %p20
    %p27 = scmp.eq.s32.totalorder %s11, 3
    %p28 = por %p26, %p27
    %p29 = scmp.ne.s32.totalorder %s21, %s24
    %p30 = scmp.eq.s32.totalorder %s11, 0
    %p31 = por %p29, %p30
    %p32 = scmp.ne.s32.totalorder %s21, %s24
    %p33 = scmp.eq.s32.totalorder %s16, 3
    %p34 = por %p32, %p33
    %p35 = scmp.ne.s32.totalorder %s24, %s25
    %p36 = scmp.eq.s32.totalorder %s16, 0
    %p37 = por %p35, %p36
    %p38 = scmp.ne.s32.totalorder %s24, %s25
    %p39 = scmp.eq.s32.totalorder %s17, 3
    %p40 = por %p38, %p39
    %p42 = scmp.ne.s32.totalorder %s25, %s41
    %p43 = scmp.eq.s32.totalorder %s17, 0
    %p44 = por %p42, %p43
    %s45 = ssub.s32 %s11, %s18
    %p46 = scmp.eq.s32.totalorder %s45, 0
    %s48 = sadd.s32 %s47, 1
    %s49 = scalar_select %p46, %s47, %s48
    %p52 = pneg %p46
    %p53 = scmp.eq.s32.totalorder %s11, 3
    %p54 = por %p52, %p53
    %p55 = scmp.ne.s32.totalorder %s47, %s50
    %p56 = scmp.eq.s32.totalorder %s11, 0
    %p57 = por %p55, %p56
    %p58 = scmp.ne.s32.totalorder %s47, %s50
    %p59 = scmp.eq.s32.totalorder %s16, 3
    %p60 = por %p58, %p59
    %p61 = scmp.ne.s32.totalorder %s50, %s51
    %p62 = scmp.eq.s32.totalorder %s16, 0
    %p63 = por %p61, %p62
    %p64 = scmp.ne.s32.totalorder %s50, %s51
    %p65 = scmp.eq.s32.totalorder %s17, 3
    %p66 = por %p64, %p65
    %p68 = scmp.ne.s32.totalorder %s51, %s67
    %p69 = scmp.eq.s32.totalorder %s17, 0
    %p70 = por %p68, %p69
    %s72 = sadd.s32 %s71, 1
    %p75 = scmp.eq.s32.totalorder %s11, 3
    %p76 = scmp.ne.s32.totalorder %s71, %s73
    %p77 = scmp.eq.s32.totalorder %s11, 0
    %p78 = por %p76, %p77
    %p79 = scmp.ne.s32.totalorder %s71, %s73
    %p80 = scmp.eq.s32.totalorder %s16, 3
    %p81 = por %p79, %p80
    %p82 = scmp.ne.s32.totalorder %s73, %s74
    %p83 = scmp.eq.s32.totalorder %s16, 0
    %p84 = por %p82, %p83
    %p85 = scmp.ne.s32.totalorder %s73, %s74
    %p86 = scmp.eq.s32.totalorder %s17, 3
    %p87 = por %p85, %p86
    %p89 = scmp.ne.s32.totalorder %s74, %s88
    %p90 = scmp.eq.s32.totalorder %s17, 0
    %p91 = por %p89, %p90
    %s93 = sadd.s32 %s92, 1
    %p96 = scmp.eq.s32.totalorder %s11, 3
    %p97 = scmp.ne.s32.totalorder %s92, %s94
    %p98 = scmp.eq.s32.totalorder %s11, 0
    %p99 = por %p97, %p98
    %p100 = scmp.ne.s32.totalorder %s92, %s94
    %p101 = scmp.eq.s32.totalorder %s16, 3
    %p102 = por %p100, %p101
    %p103 = scmp.ne.s32.totalorder %s94, %s95
    %p104 = scmp.eq.s32.totalorder %s16, 0
    %p105 = por %p103, %p104
    %p106 = scmp.ne.s32.totalorder %s94, %s95
    %p107 = scmp.eq.s32.totalorder %s17, 3
    %p108 = por %p106, %p107
    %p110 = scmp.ne.s32.totalorder %s95, %s109
    %p111 = scmp.eq.s32.totalorder %s17, 0
    %p112 = por %p110, %p111
    %s114 = sadd.s32 %s113, 1
    %p117 = scmp.eq.s32.totalorder %s11, 3
    %p118 = scmp.ne.s32.totalorder %s113, %s115
    %p119 = scmp.eq.s32.totalorder %s11, 0
    %p120 = por %p118, %p119
    %p121 = scmp.ne.s32.totalorder %s113, %s115
    %p122 = scmp.eq.s32.totalorder %s16, 3
    %p123 = por %p121, %p122
    %p124 = scmp.ne.s32.totalorder %s115, %s116
    %p125 = scmp.eq.s32.totalorder %s16, 0
    %p126 = por %p124, %p125
    %p127 = scmp.ne.s32.totalorder %s115, %s116
    %p128 = scmp.eq.s32.totalorder %s17, 3
    %p129 = por %p127, %p128
    %p131 = scmp.ne.s32.totalorder %s116, %s130
    %p132 = scmp.eq.s32.totalorder %s17, 0
    %p133 = por %p131, %p132
    %s135 = sadd.s32 %s134, 1
    %p138 = scmp.eq.s32.totalorder %s11, 3
    %p139 = scmp.ne.s32.totalorder %s134, %s136
    %p140 = scmp.eq.s32.totalorder %s11, 0
    %p141 = por %p139, %p140
    %p142 = scmp.ne.s32.totalorder %s134, %s136
    %p143 = scmp.eq.s32.totalorder %s16, 3
    %p144 = por %p142, %p143
    %p145 = scmp.ne.s32.totalorder %s136, %s137
    %p146 = scmp.eq.s32.totalorder %s16, 0
    %p147 = por %p145, %p146
    %p148 = scmp.ne.s32.totalorder %s136, %s137
    %p149 = scmp.eq.s32.totalorder %s17, 3
    %p150 = por %p148, %p149
    %p152 = scmp.ne.s32.totalorder %s137, %s151
    %p153 = scmp.eq.s32.totalorder %s17, 0
    %p154 = por %p152, %p153
    %p155 = scmp.le.s32.totalorder 1, %s11
    %p156 = scmp.lt.s32.totalorder %s11, 5
    %p157 = pnand %p155, %p156
    %p158 = pneg %p157
    // Predicated region
    $region9: #{unet_innermost_forward.1} parent=5 // pred_check
      _
    $region10: #{unet_innermost_forward.1} parent=5 // pred_check_branch
      %160 = sbr.rel (%p157) target = $region12
    $region11: #{unet_innermost_forward.1} parent=5 // pred_region
      %s161 = ssub.s32 %s11, 1
      // Predicated region
      $region13: #{unet_innermost_forward.1} parent=11 // pred_check
        %p162 = pneg %p84
      $region14: #{unet_innermost_forward.1} parent=11 // pred_check_branch
        %164 = sbr.rel (%p162) target = $region16
      $region15: #{unet_innermost_forward.1} parent=11 // pred_region
        _
      $region16: #{unet_innermost_forward.1} parent=11 // pred_fallthru
        _
      // Predicated region
      $region17: #{unet_innermost_forward.1} parent=11 // pred_check
        %p165 = pneg %p105
      $region18: #{unet_innermost_forward.1} parent=11 // pred_check_branch
        %167 = sbr.rel (%p165) target = $region20
      $region19: #{unet_innermost_forward.1} parent=11 // pred_region
        _
      $region20: #{unet_innermost_forward.1} parent=11 // pred_fallthru
        _
      // Predicated region
      $region21: #{unet_innermost_forward.1} parent=11 // pred_check
        %p168 = pneg %p126
      $region22: #{unet_innermost_forward.1} parent=11 // pred_check_branch
        %170 = sbr.rel (%p168) target = $region24
      $region23: #{unet_innermost_forward.1} parent=11 // pred_region
        _
      $region24: #{unet_innermost_forward.1} parent=11 // pred_fallthru
        _
    $region12: #{unet_innermost_forward.1} parent=5 // pred_fallthru
      _
    %p171 = scmp.lt.s32.totalorder %s11, 4
    // Predicated region
    $region25: #{unet_innermost_forward.1} parent=5 // pred_check
      %p172 = pneg %p171
    $region26: #{unet_innermost_forward.1} parent=5 // pred_check_branch
      %174 = sbr.rel (%p172) target = $region28
    $region27: #{unet_innermost_forward.1} parent=5 // pred_region
      // Predicated region
      $region29: #{unet_innermost_forward.1} parent=27 // pred_check
        %p175 = pneg %p31
      $region30: #{unet_innermost_forward.1} parent=27 // pred_check_branch
        %177 = sbr.rel (%p175) target = $region32
      $region31: #{unet_innermost_forward.1} parent=27 // pred_region
        %p178 = scmp.lt.s32.totalorder %s11, 3
        %s179 = scalar_select %p178, %s11, 3
        %s180 = smul.addr %s179, 36
        %s181 = smul.addr %s180, 8
        %s182 = scalar_lea.vmem %s0, %s181
      $region32: #{unet_innermost_forward.1} parent=27 // pred_fallthru
        _
      // Predicated region
      $region33: #{unet_innermost_forward.1} parent=27 // pred_check
        %p183 = pneg %p57
      $region34: #{unet_innermost_forward.1} parent=27 // pred_check_branch
        %185 = sbr.rel (%p183) target = $region36
      $region35: #{unet_innermost_forward.1} parent=27 // pred_region
        %p186 = scmp.lt.s32.totalorder %s11, 3
        %s187 = scalar_select %p186, %s11, 3
        %s188 = smul.addr %s187, 4
        %s189 = smul.addr %s188, 2
        %s190 = scalar_lea.vmem %s1, %s189
      $region36: #{unet_innermost_forward.1} parent=27 // pred_fallthru
        _
    $region28: #{unet_innermost_forward.1} parent=5 // pred_fallthru
      _
    %p191 = scmp.le.s32.totalorder 1, %s11
    %p192 = scmp.lt.s32.totalorder %s11, 5
    %p193 = pnand %p191, %p192
    %p194 = pneg %p193
    // Predicated region
    $region37: #{unet_innermost_forward.1} parent=5 // pred_check
      _
    $region38: #{unet_innermost_forward.1} parent=5 // pred_check_branch
      %196 = sbr.rel (%p193) target = $region40
    $region39: #{unet_innermost_forward.1} parent=5 // pred_region
      %s197 = ssub.s32 %s11, 1
      %p198 = scmp.lt.s32.totalorder %s16, 3
      %s199 = scalar_select %p198, %s16, 3
      %s200 = smul.addr %s199, 36
      %s201 = smul.addr %s200, 8
      %s202 = scalar_lea.vmem %s0, %s201
      %p203 = pneg %p37
      %p204 = pneg %p34
      %p205 = scmp.lt.s32.totalorder %s16, 3
      %s206 = scalar_select %p205, %s16, 3
      %s207 = smul.addr %s206, 4
      %s208 = smul.addr %s207, 2
      %s209 = scalar_lea.vmem %s1, %s208
      %p210 = pneg %p63
      %p211 = pneg %p60
      %p212 = pneg %p84
      %p213 = pneg %p81
      %p214 = pneg %p105
      %p215 = pneg %p102
      %p216 = pneg %p126
      %p217 = pneg %p123
      %p218 = pneg %p147
      %p219 = pneg %p144
      %p220 = scmp.lt.s32.totalorder %s16, 3
      %s221 = scalar_select %p220, %s16, 3
      %s222 = smul.addr %s221, 36
      %s223 = smul.addr %s222, 8
      %s224 = scalar_lea.vmem %s0, %s223
      %p225 = scmp.lt.s32.totalorder %s16, 3
      %s226 = scalar_select %p225, %s16, 3
      %s227 = smul.addr %s226, 4
      %s228 = smul.addr %s227, 2
      %s229 = scalar_lea.vmem %s1, %s228
      %p231 = scmp.eq.s32.totalorder %s16, 0
      // Predicated region
      $region41: #{unet_innermost_forward.1} parent=39 // pred_check
        %p232 = pneg %p231
      $region42: #{unet_innermost_forward.1} parent=39 // pred_check_branch
        %234 = sbr.rel (%p232) target = $region44
      $region43: #{unet_innermost_forward.1} parent=39 // pred_region
        %vm235 = vcmask 64512
        %236 = vst.msk [vmem:[#allocation2] sm:$0xff] %vm235, 0.0
        %237 = vst.msk [vmem:[#allocation2 + $0x8] sm:$0xff] %vm235, 0.0
        %238 = vst.msk [vmem:[#allocation2 + $0x10] sm:$0xff] %vm235, 0.0
        %239 = vst.msk [vmem:[#allocation2 + $0x18] sm:$0xff] %vm235, 0.0
        %240 = vst.msk [vmem:[#allocation2 + $0x20] sm:$0xff] %vm235, 0.0
        %241 = vst.msk [vmem:[#allocation2 + $0x28] sm:$0xff] %vm235, 0.0
        %242 = vst.msk [vmem:[#allocation2 + $0x30] sm:$0xff] %vm235, 0.0
        %243 = vst.msk [vmem:[#allocation2 + $0x38] sm:$0xff] %vm235, 0.0
        %244 = vst.msk [vmem:[#allocation2 + $0x40] sm:$0xff] %vm235, 0.0
        %245 = vst.msk [vmem:[#allocation2 + $0x48] sm:$0xff] %vm235, 0.0
        %246 = vst.msk [vmem:[#allocation2 + $0x50] sm:$0xff] %vm235, 0.0
        %247 = vst.msk [vmem:[#allocation2 + $0x58] sm:$0xff] %vm235, 0.0
        %248 = vst.msk [vmem:[#allocation2 + $0x60] sm:$0xff] %vm235, 0.0
        %249 = vst.msk [vmem:[#allocation2 + $0x68] sm:$0xff] %vm235, 0.0
        %250 = vst.msk [vmem:[#allocation2 + $0x70] sm:$0xff] %vm235, 0.0
        %251 = vst.msk [vmem:[#allocation2 + $0x78] sm:$0xff] %vm235, 0.0
      $region44: #{unet_innermost_forward.1} parent=39 // pred_fallthru
        _
      %v252 = vld [vmem:[#allocation2] sm:$0xff]
      %v253 = vld [vmem:[#allocation2 + $0x8] sm:$0xff]
      %v254 = vld [vmem:[#allocation2 + $0x10] sm:$0xff]
      %v255 = vld [vmem:[#allocation2 + $0x18] sm:$0xff]
      %v256 = vld [vmem:[#allocation2 + $0x20] sm:$0xff]
      %v257 = vld [vmem:[#allocation2 + $0x28] sm:$0xff]
      %v258 = vld [vmem:[#allocation2 + $0x30] sm:$0xff]
      %v259 = vld [vmem:[#allocation2 + $0x38] sm:$0xff]
      %v260 = vld [vmem:[#allocation2 + $0x40] sm:$0xff]
      %v261 = vld [vmem:[#allocation2 + $0x48] sm:$0xff]
      %v262 = vld [vmem:[#allocation2 + $0x50] sm:$0xff]
      %v263 = vld [vmem:[#allocation2 + $0x58] sm:$0xff]
      %v264 = vld [vmem:[#allocation2 + $0x60] sm:$0xff]
      %v265 = vld [vmem:[#allocation2 + $0x68] sm:$0xff]
      %v266 = vld [vmem:[#allocation2 + $0x70] sm:$0xff]
      %v267 = vld [vmem:[#allocation2 + $0x78] sm:$0xff]
      %v268 = vld [vmem:[%s224] sm:$0xff]
      %v269 = vld [vmem:[%s224 + $0x10] sm:$0xff]
      %v270 = vld [vmem:[%s224 + $0x20] sm:$0xff]
      %v271 = vld [vmem:[%s224 + $0x30] sm:$0xff]
      %v272 = vld [vmem:[%s224 + $0x40] sm:$0xff]
      %v273 = vld [vmem:[%s224 + $0x50] sm:$0xff]
      %v274 = vld [vmem:[%s224 + $0x60] sm:$0xff]
      %v275 = vld [vmem:[%s224 + $0x70] sm:$0xff]
      %v276 = vld [vmem:[%s224 + $0x90] sm:$0xff]
      %v277 = vld [vmem:[%s224 + $0xa0] sm:$0xff]
      %v278 = vld [vmem:[%s224 + $0xb0] sm:$0xff]
      %v279 = vld [vmem:[%s224 + $0xc0] sm:$0xff]
      %v280 = vld [vmem:[%s224 + $0xd0] sm:$0xff]
      %v281 = vld [vmem:[%s224 + $0xe0] sm:$0xff]
      %v282 = vld [vmem:[%s224 + $0xf0] sm:$0xff]
      %v283 = vld [vmem:[%s224 + $0x100] sm:$0xff]
      %vm284 = vcmp.gt.f32.partialorder %v268, 0.0
      %vm285 = vcmp.gt.f32.partialorder %v269, 0.0
      %vm286 = vcmp.gt.f32.partialorder %v270, 0.0
      %vm287 = vcmp.gt.f32.partialorder %v271, 0.0
      %vm288 = vcmp.gt.f32.partialorder %v272, 0.0
      %vm289 = vcmp.gt.f32.partialorder %v273, 0.0
      %vm290 = vcmp.gt.f32.partialorder %v274, 0.0
      %vm291 = vcmp.gt.f32.partialorder %v275, 0.0
      %vm292 = vcmp.gt.f32.partialorder %v276, 0.0
      %vm293 = vcmp.gt.f32.partialorder %v277, 0.0
      %vm294 = vcmp.gt.f32.partialorder %v278, 0.0
      %vm295 = vcmp.gt.f32.partialorder %v279, 0.0
      %vm296 = vcmp.gt.f32.partialorder %v280, 0.0
      %vm297 = vcmp.gt.f32.partialorder %v281, 0.0
      %vm298 = vcmp.gt.f32.partialorder %v282, 0.0
      %vm299 = vcmp.gt.f32.partialorder %v283, 0.0
      %v300 = vmul.f32 %v268, 0.2
      %v301 = vmul.f32 %v269, 0.2
      %v302 = vmul.f32 %v270, 0.2
      %v303 = vmul.f32 %v271, 0.2
      %v304 = vmul.f32 %v272, 0.2
      %v305 = vmul.f32 %v273, 0.2
      %v306 = vmul.f32 %v274, 0.2
      %v307 = vmul.f32 %v275, 0.2
      %v308 = vmul.f32 %v276, 0.2
      %v309 = vmul.f32 %v277, 0.2
      %v310 = vmul.f32 %v278, 0.2
      %v311 = vmul.f32 %v279, 0.2
      %v312 = vmul.f32 %v280, 0.2
      %v313 = vmul.f32 %v281, 0.2
      %v314 = vmul.f32 %v282, 0.2
      %v315 = vmul.f32 %v283, 0.2
      %v316 = vsel %vm284, %v268, %v300
      %v317 = vsel %vm285, %v269, %v301
      %v318 = vsel %vm286, %v270, %v302
      %v319 = vsel %vm287, %v271, %v303
      %v320 = vsel %vm288, %v272, %v304
      %v321 = vsel %vm289, %v273, %v305
      %v322 = vsel %vm290, %v274, %v306
      %v323 = vsel %vm291, %v275, %v307
      %v324 = vsel %vm292, %v276, %v308
      %v325 = vsel %vm293, %v277, %v309
      %v326 = vsel %vm294, %v278, %v310
      %v327 = vsel %vm295, %v279, %v311
      %v328 = vsel %vm296, %v280, %v312
      %v329 = vsel %vm297, %v281, %v313
      %v330 = vsel %vm298, %v282, %v314
      %v331 = vsel %vm299, %v283, %v315
      %v332 = vpack.c.bf16 %v317, %v316
      %v333 = vpack.c.bf16 %v319, %v318
      %v334 = vpack.c.bf16 %v321, %v320
      %v335 = vpack.c.bf16 %v323, %v322
      %v336 = vpack.c.bf16 %v325, %v324
      %v337 = vpack.c.bf16 %v327, %v326
      %v338 = vpack.c.bf16 %v329, %v328
      %v339 = vpack.c.bf16 %v331, %v330
      %v340 = vld [vmem:[%s229] sm:$0x3]
      %vm341 = vcmask 31744
      %v343 = vsel %vm341, %v332, 0
      %v346 = vsel %vm341, %v333, 0
      %v349 = vsel %vm341, %v334, 0
      %v352 = vsel %vm341, %v335, 0
      %v355 = vsel %vm341, %v336, 0
      %v358 = vsel %vm341, %v337, 0
      %v361 = vsel %vm341, %v338, 0
      %v364 = vsel %vm341, %v339, 0
      %vm366 = vcmask 1041408
      %v368 = vsel %vm366, %v340, 0
      %370 = vmatpush.bf16.msra.mxu0 0
      %371 = vmatpush.bf16.msra.mxu0 0
      %372 = vmatpush.bf16.msra.mxu0 0
      %373 = vmatpush.bf16.msra.mxu0 0
      %374 = vmatpush.bf16.msra.mxu0 0
      %375 = vmatpush.bf16.msra.mxu0 0
      %376 = vmatpush.bf16.msra.mxu0 0
      %377 = vmatpush.bf16.msra.mxu0 %v368
      %378 = vmatmul.bf16.gmra.mxu0 %v343
      %v379 = vpop.f32.mrf.mxu0
      %v380 = vadd.f32 0.0, %v379
      %v381 = vpop.f32.mrf.mxu0
      %v382 = vadd.f32 0.0, %v381
      %383 = vmatmul.bf16.gmra.mxu0 %v346
      %v384 = vpop.f32.mrf.mxu0
      %v385 = vadd.f32 0.0, %v384
      %v386 = vpop.f32.mrf.mxu0
      %v387 = vadd.f32 0.0, %v386
      %388 = vmatmul.bf16.gmra.mxu0 %v349
      %v389 = vpop.f32.mrf.mxu0
      %v390 = vadd.f32 0.0, %v389
      %v391 = vpop.f32.mrf.mxu0
      %v392 = vadd.f32 0.0, %v391
      %393 = vmatmul.bf16.gmra.mxu0 %v352
      %v394 = vpop.f32.mrf.mxu0
      %v395 = vadd.f32 0.0, %v394
      %v396 = vpop.f32.mrf.mxu0
      %v397 = vadd.f32 0.0, %v396
      %398 = vmatmul.bf16.gmra.mxu0 %v355
      %v399 = vpop.f32.mrf.mxu0
      %v400 = vadd.f32 0.0, %v399
      %v401 = vpop.f32.mrf.mxu0
      %v402 = vadd.f32 0.0, %v401
      %403 = vmatmul.bf16.gmra.mxu0 %v358
      %v404 = vpop.f32.mrf.mxu0
      %v405 = vadd.f32 0.0, %v404
      %v406 = vpop.f32.mrf.mxu0
      %v407 = vadd.f32 0.0, %v406
      %408 = vmatmul.bf16.gmra.mxu0 %v361
      %v409 = vpop.f32.mrf.mxu0
      %v410 = vadd.f32 0.0, %v409
      %v411 = vpop.f32.mrf.mxu0
      %v412 = vadd.f32 0.0, %v411
      %413 = vmatmul.bf16.gmra.mxu0 %v364
      %v414 = vpop.f32.mrf.mxu0
      %v415 = vadd.f32 0.0, %v414
      %v416 = vpop.f32.mrf.mxu0
      %v417 = vadd.f32 0.0, %v416
      %418 = vdwg.mxu0
      %v419 = vadd.f32 %v252, %v380
      %v420 = vadd.f32 %v253, %v382
      %v421 = vadd.f32 %v254, %v385
      %v422 = vadd.f32 %v255, %v387
      %v423 = vadd.f32 %v256, %v390
      %v424 = vadd.f32 %v257, %v392
      %v425 = vadd.f32 %v258, %v395
      %v426 = vadd.f32 %v259, %v397
      %v427 = vadd.f32 %v260, %v400
      %v428 = vadd.f32 %v261, %v402
      %v429 = vadd.f32 %v262, %v405
      %v430 = vadd.f32 %v263, %v407
      %v431 = vadd.f32 %v264, %v410
      %v432 = vadd.f32 %v265, %v412
      %v433 = vadd.f32 %v266, %v415
      %v434 = vadd.f32 %v267, %v417
      %v435 = vld [vmem:[%s224 + $0x1] sm:$0xff]
      %v436 = vld [vmem:[%s224 + $0x11] sm:$0xff]
      %v437 = vld [vmem:[%s224 + $0x21] sm:$0xff]
      %v438 = vld [vmem:[%s224 + $0x31] sm:$0xff]
      %v439 = vld [vmem:[%s224 + $0x41] sm:$0xff]
      %v440 = vld [vmem:[%s224 + $0x51] sm:$0xff]
      %v441 = vld [vmem:[%s224 + $0x61] sm:$0xff]
      %v442 = vld [vmem:[%s224 + $0x71] sm:$0xff]
      %v443 = vld [vmem:[%s224 + $0x91] sm:$0xff]
      %v444 = vld [vmem:[%s224 + $0xa1] sm:$0xff]
      %v445 = vld [vmem:[%s224 + $0xb1] sm:$0xff]
      %v446 = vld [vmem:[%s224 + $0xc1] sm:$0xff]
      %v447 = vld [vmem:[%s224 + $0xd1] sm:$0xff]
      %v448 = vld [vmem:[%s224 + $0xe1] sm:$0xff]
      %v449 = vld [vmem:[%s224 + $0xf1] sm:$0xff]
      %v450 = vld [vmem:[%s224 + $0x101] sm:$0xff]
      %vm451 = vcmp.gt.f32.partialorder %v435, 0.0
      %vm452 = vcmp.gt.f32.partialorder %v436, 0.0
      %vm453 = vcmp.gt.f32.partialorder %v437, 0.0
      %vm454 = vcmp.gt.f32.partialorder %v438, 0.0
      %vm455 = vcmp.gt.f32.partialorder %v439, 0.0
      %vm456 = vcmp.gt.f32.partialorder %v440, 0.0
      %vm457 = vcmp.gt.f32.partialorder %v441, 0.0
      %vm458 = vcmp.gt.f32.partialorder %v442, 0.0
      %vm459 = vcmp.gt.f32.partialorder %v443, 0.0
      %vm460 = vcmp.gt.f32.partialorder %v444, 0.0
      %vm461 = vcmp.gt.f32.partialorder %v445, 0.0
      %vm462 = vcmp.gt.f32.partialorder %v446, 0.0
      %vm463 = vcmp.gt.f32.partialorder %v447, 0.0
      %vm464 = vcmp.gt.f32.partialorder %v448, 0.0
      %vm465 = vcmp.gt.f32.partialorder %v449, 0.0
      %vm466 = vcmp.gt.f32.partialorder %v450, 0.0
      %v467 = vmul.f32 %v435, 0.2
      %v468 = vmul.f32 %v436, 0.2
      %v469 = vmul.f32 %v437, 0.2
      %v470 = vmul.f32 %v438, 0.2
      %v471 = vmul.f32 %v439, 0.2
      %v472 = vmul.f32 %v440, 0.2
      %v473 = vmul.f32 %v441, 0.2
      %v474 = vmul.f32 %v442, 0.2
      %v475 = vmul.f32 %v443, 0.2
      %v476 = vmul.f32 %v444, 0.2
      %v477 = vmul.f32 %v445, 0.2
      %v478 = vmul.f32 %v446, 0.2
      %v479 = vmul.f32 %v447, 0.2
      %v480 = vmul.f32 %v448, 0.2
      %v481 = vmul.f32 %v449, 0.2
      %v482 = vmul.f32 %v450, 0.2
      %v483 = vsel %vm451, %v435, %v467
      %v484 = vsel %vm452, %v436, %v468
      %v485 = vsel %vm453, %v437, %v469
      %v486 = vsel %vm454, %v438, %v470
      %v487 = vsel %vm455, %v439, %v471
      %v488 = vsel %vm456, %v440, %v472
      %v489 = vsel %vm457, %v441, %v473
      %v490 = vsel %vm458, %v442, %v474
      %v491 = vsel %vm459, %v443, %v475
      %v492 = vsel %vm460, %v444, %v476
      %v493 = vsel %vm461, %v445, %v477
      %v494 = vsel %vm462, %v446, %v478
      %v495 = vsel %vm463, %v447, %v479
      %v496 = vsel %vm464, %v448, %v480
      %v497 = vsel %vm465, %v449, %v481
      %v498 = vsel %vm466, %v450, %v482
      %v499 = vpack.c.bf16 %v484, %v483
      %v500 = vpack.c.bf16 %v486, %v485
      %v501 = vpack.c.bf16 %v488, %v487
      %v502 = vpack.c.bf16 %v490, %v489
      %v503 = vpack.c.bf16 %v492, %v491
      %v504 = vpack.c.bf16 %v494, %v493
      %v505 = vpack.c.bf16 %v496, %v495
      %v506 = vpack.c.bf16 %v498, %v497
      %s507 = scalar_lea.vmem %s229, 2
      %v508 = vld [vmem:[%s507] sm:$0x3]
      %v510 = vsel %vm341, %v499, 0
      %v513 = vsel %vm341, %v500, 0
      %v516 = vsel %vm341, %v501, 0
      %v519 = vsel %vm341, %v502, 0
      %v522 = vsel %vm341, %v503, 0
      %v525 = vsel %vm341, %v504, 0
      %v528 = vsel %vm341, %v505, 0
      %v531 = vsel %vm341, %v506, 0
      %v534 = vsel %vm366, %v508, 0
      %536 = vmatpush.bf16.msra.mxu0 0
      %537 = vmatpush.bf16.msra.mxu0 0
      %538 = vmatpush.bf16.msra.mxu0 0
      %539 = vmatpush.bf16.msra.mxu0 0
      %540 = vmatpush.bf16.msra.mxu0 0
      %541 = vmatpush.bf16.msra.mxu0 0
      %542 = vmatpush.bf16.msra.mxu0 0
      %543 = vmatpush.bf16.msra.mxu0 %v534
      %544 = vmatmul.bf16.gmra.mxu0 %v510
      %v545 = vpop.f32.mrf.mxu0
      %v546 = vadd.f32 0.0, %v545
      %v547 = vpop.f32.mrf.mxu0
      %v548 = vadd.f32 0.0, %v547
      %549 = vmatmul.bf16.gmra.mxu0 %v513
      %v550 = vpop.f32.mrf.mxu0
      %v551 = vadd.f32 0.0, %v550
      %v552 = vpop.f32.mrf.mxu0
      %v553 = vadd.f32 0.0, %v552
      %554 = vmatmul.bf16.gmra.mxu0 %v516
      %v555 = vpop.f32.mrf.mxu0
      %v556 = vadd.f32 0.0, %v555
      %v557 = vpop.f32.mrf.mxu0
      %v558 = vadd.f32 0.0, %v557
      %559 = vmatmul.bf16.gmra.mxu0 %v519
      %v560 = vpop.f32.mrf.mxu0
      %v561 = vadd.f32 0.0, %v560
      %v562 = vpop.f32.mrf.mxu0
      %v563 = vadd.f32 0.0, %v562
      %564 = vmatmul.bf16.gmra.mxu0 %v522
      %v565 = vpop.f32.mrf.mxu0
      %v566 = vadd.f32 0.0, %v565
      %v567 = vpop.f32.mrf.mxu0
      %v568 = vadd.f32 0.0, %v567
      %569 = vmatmul.bf16.gmra.mxu0 %v525
      %v570 = vpop.f32.mrf.mxu0
      %v571 = vadd.f32 0.0, %v570
      %v572 = vpop.f32.mrf.mxu0
      %v573 = vadd.f32 0.0, %v572
      %574 = vmatmul.bf16.gmra.mxu0 %v528
      %v575 = vpop.f32.mrf.mxu0
      %v576 = vadd.f32 0.0, %v575
      %v577 = vpop.f32.mrf.mxu0
      %v578 = vadd.f32 0.0, %v577
      %579 = vmatmul.bf16.gmra.mxu0 %v531
      %v580 = vpop.f32.mrf.mxu0
      %v581 = vadd.f32 0.0, %v580
      %v582 = vpop.f32.mrf.mxu0
      %v583 = vadd.f32 0.0, %v582
      %584 = vdwg.mxu0
      %v585 = vadd.f32 %v419, %v546
      %v586 = vadd.f32 %v420, %v548
      %v587 = vadd.f32 %v421, %v551
      %v588 = vadd.f32 %v422, %v553
      %v589 = vadd.f32 %v423, %v556
      %v590 = vadd.f32 %v424, %v558
      %v591 = vadd.f32 %v425, %v561
      %v592 = vadd.f32 %v426, %v563
      %v593 = vadd.f32 %v427, %v566
      %v594 = vadd.f32 %v428, %v568
      %v595 = vadd.f32 %v429, %v571
      %v596 = vadd.f32 %v430, %v573
      %v597 = vadd.f32 %v431, %v576
      %v598 = vadd.f32 %v432, %v578
      %v599 = vadd.f32 %v433, %v581
      %v600 = vadd.f32 %v434, %v583
      %s601 = scalar_lea.vmem %s224, 16
      %v602 = vld [vmem:[%s601] sm:$0xff]
      %v603 = vld [vmem:[%s601 + $0x10] sm:$0xff]
      %v604 = vld [vmem:[%s601 + $0x20] sm:$0xff]
      %v605 = vld [vmem:[%s601 + $0x30] sm:$0xff]
      %v606 = vld [vmem:[%s601 + $0x40] sm:$0xff]
      %v607 = vld [vmem:[%s601 + $0x50] sm:$0xff]
      %v608 = vld [vmem:[%s601 + $0x60] sm:$0xff]
      %v609 = vld [vmem:[%s601 + $0x70] sm:$0xff]
      %v610 = vld [vmem:[%s601 + $0x90] sm:$0xff]
      %v611 = vld [vmem:[%s601 + $0xa0] sm:$0xff]
      %v612 = vld [vmem:[%s601 + $0xb0] sm:$0xff]
      %v613 = vld [vmem:[%s601 + $0xc0] sm:$0xff]
      %v614 = vld [vmem:[%s601 + $0xd0] sm:$0xff]
      %v615 = vld [vmem:[%s601 + $0xe0] sm:$0xff]
      %v616 = vld [vmem:[%s601 + $0xf0] sm:$0xff]
      %v617 = vld [vmem:[%s601 + $0x100] sm:$0xff]
      %vm618 = vcmp.gt.f32.partialorder %v602, 0.0
      %vm619 = vcmp.gt.f32.partialorder %v603, 0.0
      %vm620 = vcmp.gt.f32.partialorder %v604, 0.0
      %vm621 = vcmp.gt.f32.partialorder %v605, 0.0
      %vm622 = vcmp.gt.f32.partialorder %v606, 0.0
      %vm623 = vcmp.gt.f32.partialorder %v607, 0.0
      %vm624 = vcmp.gt.f32.partialorder %v608, 0.0
      %vm625 = vcmp.gt.f32.partialorder %v609, 0.0
      %vm626 = vcmp.gt.f32.partialorder %v610, 0.0
      %vm627 = vcmp.gt.f32.partialorder %v611, 0.0
      %vm628 = vcmp.gt.f32.partialorder %v612, 0.0
      %vm629 = vcmp.gt.f32.partialorder %v613, 0.0
      %vm630 = vcmp.gt.f32.partialorder %v614, 0.0
      %vm631 = vcmp.gt.f32.partialorder %v615, 0.0
      %vm632 = vcmp.gt.f32.partialorder %v616, 0.0
      %vm633 = vcmp.gt.f32.partialorder %v617, 0.0
      %v634 = vmul.f32 %v602, 0.2
      %v635 = vmul.f32 %v603, 0.2
      %v636 = vmul.f32 %v604, 0.2
      %v637 = vmul.f32 %v605, 0.2
      %v638 = vmul.f32 %v606, 0.2
      %v639 = vmul.f32 %v607, 0.2
      %v640 = vmul.f32 %v608, 0.2
      %v641 = vmul.f32 %v609, 0.2
      %v642 = vmul.f32 %v610, 0.2
      %v643 = vmul.f32 %v611, 0.2
      %v644 = vmul.f32 %v612, 0.2
      %v645 = vmul.f32 %v613, 0.2
      %v646 = vmul.f32 %v614, 0.2
      %v647 = vmul.f32 %v615, 0.2
      %v648 = vmul.f32 %v616, 0.2
      %v649 = vmul.f32 %v617, 0.2
      %v650 = vsel %vm618, %v602, %v634
      %v651 = vsel %vm619, %v603, %v635
      %v652 = vsel %vm620, %v604, %v636
      %v653 = vsel %vm621, %v605, %v637
      %v654 = vsel %vm622, %v606, %v638
      %v655 = vsel %vm623, %v607, %v639
      %v656 = vsel %vm624, %v608, %v640
      %v657 = vsel %vm625, %v609, %v641
      %v658 = vsel %vm626, %v610, %v642
      %v659 = vsel %vm627, %v611, %v643
      %v660 = vsel %vm628, %v612, %v644
      %v661 = vsel %vm629, %v613, %v645
      %v662 = vsel %vm630, %v614, %v646
      %v663 = vsel %vm631, %v615, %v647
      %v664 = vsel %vm632, %v616, %v648
      %v665 = vsel %vm633, %v617, %v649
      %v666 = vpack.c.bf16 %v651, %v650
      %v667 = vpack.c.bf16 %v653, %v652
      %v668 = vpack.c.bf16 %v655, %v654
      %v669 = vpack.c.bf16 %v657, %v656
      %v670 = vpack.c.bf16 %v659, %v658
      %v671 = vpack.c.bf16 %v661, %v660
      %v672 = vpack.c.bf16 %v663, %v662
      %v673 = vpack.c.bf16 %v665, %v664
      %s674 = scalar_lea.vmem %s229, 4
      %v675 = vld [vmem:[%s674] sm:$0x3]
      %v677 = vsel %vm341, %v666, 0
      %v680 = vsel %vm341, %v667, 0
      %v683 = vsel %vm341, %v668, 0
      %v686 = vsel %vm341, %v669, 0
      %v689 = vsel %vm341, %v670, 0
      %v692 = vsel %vm341, %v671, 0
      %v695 = vsel %vm341, %v672, 0
      %v698 = vsel %vm341, %v673, 0
      %v701 = vsel %vm366, %v675, 0
      %703 = vmatpush.bf16.msra.mxu0 0
      %704 = vmatpush.bf16.msra.mxu0 0
      %705 = vmatpush.bf16.msra.mxu0 0
      %706 = vmatpush.bf16.msra.mxu0 0
      %707 = vmatpush.bf16.msra.mxu0 0
      %708 = vmatpush.bf16.msra.mxu0 0
      %709 = vmatpush.bf16.msra.mxu0 0
      %710 = vmatpush.bf16.msra.mxu0 %v701
      %711 = vmatmul.bf16.gmra.mxu0 %v677
      %v712 = vpop.f32.mrf.mxu0
      %v713 = vadd.f32 0.0, %v712
      %v714 = vpop.f32.mrf.mxu0
      %v715 = vadd.f32 0.0, %v714
      %716 = vmatmul.bf16.gmra.mxu0 %v680
      %v717 = vpop.f32.mrf.mxu0
      %v718 = vadd.f32 0.0, %v717
      %v719 = vpop.f32.mrf.mxu0
      %v720 = vadd.f32 0.0, %v719
      %721 = vmatmul.bf16.gmra.mxu0 %v683
      %v722 = vpop.f32.mrf.mxu0
      %v723 = vadd.f32 0.0, %v722
      %v724 = vpop.f32.mrf.mxu0
      %v725 = vadd.f32 0.0, %v724
      %726 = vmatmul.bf16.gmra.mxu0 %v686
      %v727 = vpop.f32.mrf.mxu0
      %v728 = vadd.f32 0.0, %v727
      %v729 = vpop.f32.mrf.mxu0
      %v730 = vadd.f32 0.0, %v729
      %731 = vmatmul.bf16.gmra.mxu0 %v689
      %v732 = vpop.f32.mrf.mxu0
      %v733 = vadd.f32 0.0, %v732
      %v734 = vpop.f32.mrf.mxu0
      %v735 = vadd.f32 0.0, %v734
      %736 = vmatmul.bf16.gmra.mxu0 %v692
      %v737 = vpop.f32.mrf.mxu0
      %v738 = vadd.f32 0.0, %v737
      %v739 = vpop.f32.mrf.mxu0
      %v740 = vadd.f32 0.0, %v739
      %741 = vmatmul.bf16.gmra.mxu0 %v695
      %v742 = vpop.f32.mrf.mxu0
      %v743 = vadd.f32 0.0, %v742
      %v744 = vpop.f32.mrf.mxu0
      %v745 = vadd.f32 0.0, %v744
      %746 = vmatmul.bf16.gmra.mxu0 %v698
      %v747 = vpop.f32.mrf.mxu0
      %v748 = vadd.f32 0.0, %v747
      %v749 = vpop.f32.mrf.mxu0
      %v750 = vadd.f32 0.0, %v749
      %751 = vdwg.mxu0
      %v752 = vadd.f32 %v585, %v713
      %v753 = vadd.f32 %v586, %v715
      %v754 = vadd.f32 %v587, %v718
      %v755 = vadd.f32 %v588, %v720
      %v756 = vadd.f32 %v589, %v723
      %v757 = vadd.f32 %v590, %v725
      %v758 = vadd.f32 %v591, %v728
      %v759 = vadd.f32 %v592, %v730
      %v760 = vadd.f32 %v593, %v733
      %v761 = vadd.f32 %v594, %v735
      %v762 = vadd.f32 %v595, %v738
      %v763 = vadd.f32 %v596, %v740
      %v764 = vadd.f32 %v597, %v743
      %v765 = vadd.f32 %v598, %v745
      %v766 = vadd.f32 %v599, %v748
      %v767 = vadd.f32 %v600, %v750
      %v768 = vld [vmem:[%s601 + $0x1] sm:$0xff]
      %v769 = vld [vmem:[%s601 + $0x11] sm:$0xff]
      %v770 = vld [vmem:[%s601 + $0x21] sm:$0xff]
      %v771 = vld [vmem:[%s601 + $0x31] sm:$0xff]
      %v772 = vld [vmem:[%s601 + $0x41] sm:$0xff]
      %v773 = vld [vmem:[%s601 + $0x51] sm:$0xff]
      %v774 = vld [vmem:[%s601 + $0x61] sm:$0xff]
      %v775 = vld [vmem:[%s601 + $0x71] sm:$0xff]
      %v776 = vld [vmem:[%s601 + $0x91] sm:$0xff]
      %v777 = vld [vmem:[%s601 + $0xa1] sm:$0xff]
      %v778 = vld [vmem:[%s601 + $0xb1] sm:$0xff]
      %v779 = vld [vmem:[%s601 + $0xc1] sm:$0xff]
      %v780 = vld [vmem:[%s601 + $0xd1] sm:$0xff]
      %v781 = vld [vmem:[%s601 + $0xe1] sm:$0xff]
      %v782 = vld [vmem:[%s601 + $0xf1] sm:$0xff]
      %v783 = vld [vmem:[%s601 + $0x101] sm:$0xff]
      %vm784 = vcmp.gt.f32.partialorder %v768, 0.0
      %vm785 = vcmp.gt.f32.partialorder %v769, 0.0
      %vm786 = vcmp.gt.f32.partialorder %v770, 0.0
      %vm787 = vcmp.gt.f32.partialorder %v771, 0.0
      %vm788 = vcmp.gt.f32.partialorder %v772, 0.0
      %vm789 = vcmp.gt.f32.partialorder %v773, 0.0
      %vm790 = vcmp.gt.f32.partialorder %v774, 0.0
      %vm791 = vcmp.gt.f32.partialorder %v775, 0.0
      %vm792 = vcmp.gt.f32.partialorder %v776, 0.0
      %vm793 = vcmp.gt.f32.partialorder %v777, 0.0
      %vm794 = vcmp.gt.f32.partialorder %v778, 0.0
      %vm795 = vcmp.gt.f32.partialorder %v779, 0.0
      %vm796 = vcmp.gt.f32.partialorder %v780, 0.0
      %vm797 = vcmp.gt.f32.partialorder %v781, 0.0
      %vm798 = vcmp.gt.f32.partialorder %v782, 0.0
      %vm799 = vcmp.gt.f32.partialorder %v783, 0.0
      %v800 = vmul.f32 %v768, 0.2
      %v801 = vmul.f32 %v769, 0.2
      %v802 = vmul.f32 %v770, 0.2
      %v803 = vmul.f32 %v771, 0.2
      %v804 = vmul.f32 %v772, 0.2
      %v805 = vmul.f32 %v773, 0.2
      %v806 = vmul.f32 %v774, 0.2
      %v807 = vmul.f32 %v775, 0.2
      %v808 = vmul.f32 %v776, 0.2
      %v809 = vmul.f32 %v777, 0.2
      %v810 = vmul.f32 %v778, 0.2
      %v811 = vmul.f32 %v779, 0.2
      %v812 = vmul.f32 %v780, 0.2
      %v813 = vmul.f32 %v781, 0.2
      %v814 = vmul.f32 %v782, 0.2
      %v815 = vmul.f32 %v783, 0.2
      %v816 = vsel %vm784, %v768, %v800
      %v817 = vsel %vm785, %v769, %v801
      %v818 = vsel %vm786, %v770, %v802
      %v819 = vsel %vm787, %v771, %v803
      %v820 = vsel %vm788, %v772, %v804
      %v821 = vsel %vm789, %v773, %v805
      %v822 = vsel %vm790, %v774, %v806
      %v823 = vsel %vm791, %v775, %v807
      %v824 = vsel %vm792, %v776, %v808
      %v825 = vsel %vm793, %v777, %v809
      %v826 = vsel %vm794, %v778, %v810
      %v827 = vsel %vm795, %v779, %v811
      %v828 = vsel %vm796, %v780, %v812
      %v829 = vsel %vm797, %v781, %v813
      %v830 = vsel %vm798, %v782, %v814
      %v831 = vsel %vm799, %v783, %v815
      %v832 = vpack.c.bf16 %v817, %v816
      %v833 = vpack.c.bf16 %v819, %v818
      %v834 = vpack.c.bf16 %v821, %v820
      %v835 = vpack.c.bf16 %v823, %v822
      %v836 = vpack.c.bf16 %v825, %v824
      %v837 = vpack.c.bf16 %v827, %v826
      %v838 = vpack.c.bf16 %v829, %v828
      %v839 = vpack.c.bf16 %v831, %v830
      %s840 = scalar_lea.vmem %s229, 6
      %v841 = vld [vmem:[%s840] sm:$0x3]
      %v843 = vsel %vm341, %v832, 0
      %v846 = vsel %vm341, %v833, 0
      %v849 = vsel %vm341, %v834, 0
      %v852 = vsel %vm341, %v835, 0
      %v855 = vsel %vm341, %v836, 0
      %v858 = vsel %vm341, %v837, 0
      %v861 = vsel %vm341, %v838, 0
      %v864 = vsel %vm341, %v839, 0
      %v867 = vsel %vm366, %v841, 0
      %869 = vmatpush.bf16.msra.mxu0 0
      %870 = vmatpush.bf16.msra.mxu0 0
      %871 = vmatpush.bf16.msra.mxu0 0
      %872 = vmatpush.bf16.msra.mxu0 0
      %873 = vmatpush.bf16.msra.mxu0 0
      %874 = vmatpush.bf16.msra.mxu0 0
      %875 = vmatpush.bf16.msra.mxu0 0
      %876 = vmatpush.bf16.msra.mxu0 %v867
      %877 = vmatmul.bf16.gmra.mxu0 %v843
      %v878 = vpop.f32.mrf.mxu0
      %v879 = vadd.f32 0.0, %v878
      %v880 = vpop.f32.mrf.mxu0
      %v881 = vadd.f32 0.0, %v880
      %882 = vmatmul.bf16.gmra.mxu0 %v846
      %v883 = vpop.f32.mrf.mxu0
      %v884 = vadd.f32 0.0, %v883
      %v885 = vpop.f32.mrf.mxu0
      %v886 = vadd.f32 0.0, %v885
      %887 = vmatmul.bf16.gmra.mxu0 %v849
      %v888 = vpop.f32.mrf.mxu0
      %v889 = vadd.f32 0.0, %v888
      %v890 = vpop.f32.mrf.mxu0
      %v891 = vadd.f32 0.0, %v890
      %892 = vmatmul.bf16.gmra.mxu0 %v852
      %v893 = vpop.f32.mrf.mxu0
      %v894 = vadd.f32 0.0, %v893
      %v895 = vpop.f32.mrf.mxu0
      %v896 = vadd.f32 0.0, %v895
      %897 = vmatmul.bf16.gmra.mxu0 %v855
      %v898 = vpop.f32.mrf.mxu0
      %v899 = vadd.f32 0.0, %v898
      %v900 = vpop.f32.mrf.mxu0
      %v901 = vadd.f32 0.0, %v900
      %902 = vmatmul.bf16.gmra.mxu0 %v858
      %v903 = vpop.f32.mrf.mxu0
      %v904 = vadd.f32 0.0, %v903
      %v905 = vpop.f32.mrf.mxu0
      %v906 = vadd.f32 0.0, %v905
      %907 = vmatmul.bf16.gmra.mxu0 %v861
      %v908 = vpop.f32.mrf.mxu0
      %v909 = vadd.f32 0.0, %v908
      %v910 = vpop.f32.mrf.mxu0
      %v911 = vadd.f32 0.0, %v910
      %912 = vmatmul.bf16.gmra.mxu0 %v864
      %v913 = vpop.f32.mrf.mxu0
      %v914 = vadd.f32 0.0, %v913
      %v915 = vpop.f32.mrf.mxu0
      %v916 = vadd.f32 0.0, %v915
      %917 = vdwg.mxu0
      %v918 = vadd.f32 %v752, %v879
      %v919 = vadd.f32 %v753, %v881
      %v920 = vadd.f32 %v754, %v884
      %v921 = vadd.f32 %v755, %v886
      %v922 = vadd.f32 %v756, %v889
      %v923 = vadd.f32 %v757, %v891
      %v924 = vadd.f32 %v758, %v894
      %v925 = vadd.f32 %v759, %v896
      %v926 = vadd.f32 %v760, %v899
      %v927 = vadd.f32 %v761, %v901
      %v928 = vadd.f32 %v762, %v904
      %v929 = vadd.f32 %v763, %v906
      %v930 = vadd.f32 %v764, %v909
      %v931 = vadd.f32 %v765, %v911
      %v932 = vadd.f32 %v766, %v914
      %v933 = vadd.f32 %v767, %v916
      %vm934 = vcmask 64512
      %935 = vst.msk [vmem:[#allocation2] sm:$0xff] %vm934, %v918
      %936 = vst.msk [vmem:[#allocation2 + $0x8] sm:$0xff] %vm934, %v919
      %937 = vst.msk [vmem:[#allocation2 + $0x10] sm:$0xff] %vm934, %v920
      %938 = vst.msk [vmem:[#allocation2 + $0x18] sm:$0xff] %vm934, %v921
      %939 = vst.msk [vmem:[#allocation2 + $0x20] sm:$0xff] %vm934, %v922
      %940 = vst.msk [vmem:[#allocation2 + $0x28] sm:$0xff] %vm934, %v923
      %941 = vst.msk [vmem:[#allocation2 + $0x30] sm:$0xff] %vm934, %v924
      %942 = vst.msk [vmem:[#allocation2 + $0x38] sm:$0xff] %vm934, %v925
      %943 = vst.msk [vmem:[#allocation2 + $0x40] sm:$0xff] %vm934, %v926
      %944 = vst.msk [vmem:[#allocation2 + $0x48] sm:$0xff] %vm934, %v927
      %945 = vst.msk [vmem:[#allocation2 + $0x50] sm:$0xff] %vm934, %v928
      %946 = vst.msk [vmem:[#allocation2 + $0x58] sm:$0xff] %vm934, %v929
      %947 = vst.msk [vmem:[#allocation2 + $0x60] sm:$0xff] %vm934, %v930
      %948 = vst.msk [vmem:[#allocation2 + $0x68] sm:$0xff] %vm934, %v931
      %949 = vst.msk [vmem:[#allocation2 + $0x70] sm:$0xff] %vm934, %v932
      %950 = vst.msk [vmem:[#allocation2 + $0x78] sm:$0xff] %vm934, %v933
      %p951 = scmp.eq.s32.totalorder %s16, 3
      // Predicated region
      $region45: #{unet_innermost_forward.1} parent=39 // pred_check
        %p952 = pneg %p951
      $region46: #{unet_innermost_forward.1} parent=39 // pred_check_branch
        %954 = sbr.rel (%p952) target = $region48
      $region47: #{unet_innermost_forward.1} parent=39 // pred_region
        %v955 = vld [vmem:[#allocation2] sm:$0xff]
        %v956 = vld [vmem:[#allocation2 + $0x8] sm:$0xff]
        %v957 = vld [vmem:[#allocation2 + $0x10] sm:$0xff]
        %v958 = vld [vmem:[#allocation2 + $0x18] sm:$0xff]
        %v959 = vld [vmem:[#allocation2 + $0x20] sm:$0xff]
        %v960 = vld [vmem:[#allocation2 + $0x28] sm:$0xff]
        %v961 = vld [vmem:[#allocation2 + $0x30] sm:$0xff]
        %v962 = vld [vmem:[#allocation2 + $0x38] sm:$0xff]
        %v963 = vld [vmem:[#allocation2 + $0x40] sm:$0xff]
        %v964 = vld [vmem:[#allocation2 + $0x48] sm:$0xff]
        %v965 = vld [vmem:[#allocation2 + $0x50] sm:$0xff]
        %v966 = vld [vmem:[#allocation2 + $0x58] sm:$0xff]
        %v967 = vld [vmem:[#allocation2 + $0x60] sm:$0xff]
        %v968 = vld [vmem:[#allocation2 + $0x68] sm:$0xff]
        %v969 = vld [vmem:[#allocation2 + $0x70] sm:$0xff]
        %v970 = vld [vmem:[#allocation2 + $0x78] sm:$0xff]
        %v971 = vmax.f32 %v955, 0.0
        %v972 = vmax.f32 %v956, 0.0
        %v973 = vmax.f32 %v957, 0.0
        %v974 = vmax.f32 %v958, 0.0
        %v975 = vmax.f32 %v959, 0.0
        %v976 = vmax.f32 %v960, 0.0
        %v977 = vmax.f32 %v961, 0.0
        %v978 = vmax.f32 %v962, 0.0
        %v979 = vmax.f32 %v963, 0.0
        %v980 = vmax.f32 %v964, 0.0
        %v981 = vmax.f32 %v965, 0.0
        %v982 = vmax.f32 %v966, 0.0
        %v983 = vmax.f32 %v967, 0.0
        %v984 = vmax.f32 %v968, 0.0
        %v985 = vmax.f32 %v969, 0.0
        %v986 = vmax.f32 %v970, 0.0
        %987 = vst.msk [vmem:[#allocation3] sm:$0xff] %vm934, 0.0
        %vm988 = vcmask 58368
        %989 = vst.msk [vmem:[#allocation3 + $0x8] sm:$0x3] %vm988, 0.0
        %990 = vst.msk [vmem:[#allocation3 + $0xa0] sm:$0xff] %vm934, 0.0
        %991 = vst.msk [vmem:[#allocation3 + $0xa8] sm:$0x3] %vm988, 0.0
        %s992 = scalar_lea.vmem [#allocation3], 144
        %993 = vst.msk [vmem:[%s992] sm:$0xff] %vm934, 0.0
        %994 = vst.msk [vmem:[%s992 + $0x8] sm:$0x3] %vm988, 0.0
        %995 = vst.msk [vmem:[%s992 + $0xa0] sm:$0xff] %vm934, 0.0
        %996 = vst.msk [vmem:[%s992 + $0xa8] sm:$0x3] %vm988, 0.0
        %vm997 = vcmask 57344
        %998 = vst.msk [vmem:[#allocation3] sm:$0x1] %vm997, 0.0
        %999 = vst.msk [vmem:[#allocation3 + $0x10] sm:$0x1] %vm997, 0.0
        %1000 = vst.msk [vmem:[#allocation3 + $0x20] sm:$0x1] %vm997, 0.0
        %1001 = vst.msk [vmem:[#allocation3 + $0x30] sm:$0x1] %vm997, 0.0
        %1002 = vst.msk [vmem:[#allocation3 + $0x40] sm:$0x1] %vm997, 0.0
        %1003 = vst.msk [vmem:[#allocation3 + $0x50] sm:$0x1] %vm997, 0.0
        %1004 = vst.msk [vmem:[#allocation3 + $0x60] sm:$0x1] %vm997, 0.0
        %1005 = vst.msk [vmem:[#allocation3 + $0x70] sm:$0x1] %vm997, 0.0
        %1006 = vst.msk [vmem:[#allocation3 + $0x80] sm:$0x1] %vm997, 0.0
        %1007 = vst.msk [vmem:[#allocation3 + $0x90] sm:$0x1] %vm997, 0.0
        %1008 = vst.msk [vmem:[#allocation3 + $0xa0] sm:$0x1] %vm997, 0.0
        %1009 = vst.msk [vmem:[#allocation3 + $0xb0] sm:$0x1] %vm997, 0.0
        %1010 = vst.msk [vmem:[#allocation3 + $0xc0] sm:$0x1] %vm997, 0.0
        %1011 = vst.msk [vmem:[#allocation3 + $0xd0] sm:$0x1] %vm997, 0.0
        %1012 = vst.msk [vmem:[#allocation3 + $0xe0] sm:$0x1] %vm997, 0.0
        %1013 = vst.msk [vmem:[#allocation3 + $0xf0] sm:$0x1] %vm997, 0.0
        %1014 = vst.msk [vmem:[#allocation3 + $0x100] sm:$0x1] %vm997, 0.0
        %1015 = vst.msk [vmem:[#allocation3 + $0x110] sm:$0x1] %vm997, 0.0
        %1016 = vst.msk [vmem:[#allocation3 + $0x120] sm:$0x1] %vm997, 0.0
        %1017 = vst.msk [vmem:[#allocation3 + $0x130] sm:$0x1] %vm997, 0.0
        %1018 = vst.msk [vmem:[#allocation3 + $0x9] sm:$0x1] %vm997, 0.0
        %1019 = vst.msk [vmem:[#allocation3 + $0x19] sm:$0x1] %vm997, 0.0
        %1020 = vst.msk [vmem:[#allocation3 + $0x29] sm:$0x1] %vm997, 0.0
        %1021 = vst.msk [vmem:[#allocation3 + $0x39] sm:$0x1] %vm997, 0.0
        %1022 = vst.msk [vmem:[#allocation3 + $0x49] sm:$0x1] %vm997, 0.0
        %1023 = vst.msk [vmem:[#allocation3 + $0x59] sm:$0x1] %vm997, 0.0
        %1024 = vst.msk [vmem:[#allocation3 + $0x69] sm:$0x1] %vm997, 0.0
        %1025 = vst.msk [vmem:[#allocation3 + $0x79] sm:$0x1] %vm997, 0.0
        %1026 = vst.msk [vmem:[#allocation3 + $0x89] sm:$0x1] %vm997, 0.0
        %1027 = vst.msk [vmem:[#allocation3 + $0x99] sm:$0x1] %vm997, 0.0
        %1028 = vst.msk [vmem:[#allocation3 + $0xa9] sm:$0x1] %vm997, 0.0
        %1029 = vst.msk [vmem:[#allocation3 + $0xb9] sm:$0x1] %vm997, 0.0
        %1030 = vst.msk [vmem:[#allocation3 + $0xc9] sm:$0x1] %vm997, 0.0
        %1031 = vst.msk [vmem:[#allocation3 + $0xd9] sm:$0x1] %vm997, 0.0
        %1032 = vst.msk [vmem:[#allocation3 + $0xe9] sm:$0x1] %vm997, 0.0
        %1033 = vst.msk [vmem:[#allocation3 + $0xf9] sm:$0x1] %vm997, 0.0
        %1034 = vst.msk [vmem:[#allocation3 + $0x109] sm:$0x1] %vm997, 0.0
        %1035 = vst.msk [vmem:[#allocation3 + $0x119] sm:$0x1] %vm997, 0.0
        %1036 = vst.msk [vmem:[#allocation3 + $0x129] sm:$0x1] %vm997, 0.0
        %1037 = vst.msk [vmem:[#allocation3 + $0x139] sm:$0x1] %vm997, 0.0
        %s1038 = scalar_lea.vmem [#allocation3], 16
        %1039 = vst.msk [vmem:[%s1038 + $0x1] sm:$0xff] %vm934, %v971
        %1040 = vst.msk [vmem:[%s1038 + $0x11] sm:$0xff] %vm934, %v972
        %1041 = vst.msk [vmem:[%s1038 + $0x21] sm:$0xff] %vm934, %v973
        %1042 = vst.msk [vmem:[%s1038 + $0x31] sm:$0xff] %vm934, %v974
        %1043 = vst.msk [vmem:[%s1038 + $0x41] sm:$0xff] %vm934, %v975
        %1044 = vst.msk [vmem:[%s1038 + $0x51] sm:$0xff] %vm934, %v976
        %1045 = vst.msk [vmem:[%s1038 + $0x61] sm:$0xff] %vm934, %v977
        %1046 = vst.msk [vmem:[%s1038 + $0x71] sm:$0xff] %vm934, %v978
        %1047 = vst.msk [vmem:[%s1038 + $0xa1] sm:$0xff] %vm934, %v979
        %1048 = vst.msk [vmem:[%s1038 + $0xb1] sm:$0xff] %vm934, %v980
        %1049 = vst.msk [vmem:[%s1038 + $0xc1] sm:$0xff] %vm934, %v981
        %1050 = vst.msk [vmem:[%s1038 + $0xd1] sm:$0xff] %vm934, %v982
        %1051 = vst.msk [vmem:[%s1038 + $0xe1] sm:$0xff] %vm934, %v983
        %1052 = vst.msk [vmem:[%s1038 + $0xf1] sm:$0xff] %vm934, %v984
        %1053 = vst.msk [vmem:[%s1038 + $0x101] sm:$0xff] %vm934, %v985
        %1054 = vst.msk [vmem:[%s1038 + $0x111] sm:$0xff] %vm934, %v986
        %v1055 = vld [vmem:[%s1038 + $0x1] sm:$0xff]
        %v1056 = vld [vmem:[%s1038 + $0x11] sm:$0xff]
        %v1057 = vld [vmem:[%s1038 + $0x21] sm:$0xff]
        %v1058 = vld [vmem:[%s1038 + $0x31] sm:$0xff]
        %v1059 = vld [vmem:[%s1038 + $0x41] sm:$0xff]
        %v1060 = vld [vmem:[%s1038 + $0x51] sm:$0xff]
        %v1061 = vld [vmem:[%s1038 + $0x61] sm:$0xff]
        %v1062 = vld [vmem:[%s1038 + $0x71] sm:$0xff]
        %v1063 = vld [vmem:[%s1038 + $0xa1] sm:$0xff]
        %v1064 = vld [vmem:[%s1038 + $0xb1] sm:$0xff]
        %v1065 = vld [vmem:[%s1038 + $0xc1] sm:$0xff]
        %v1066 = vld [vmem:[%s1038 + $0xd1] sm:$0xff]
        %v1067 = vld [vmem:[%s1038 + $0xe1] sm:$0xff]
        %v1068 = vld [vmem:[%s1038 + $0xf1] sm:$0xff]
        %v1069 = vld [vmem:[%s1038 + $0x101] sm:$0xff]
        %v1070 = vld [vmem:[%s1038 + $0x111] sm:$0xff]
        %v1071 = vpack.c.bf16 %v1056, %v1055
        %v1072 = vpack.c.bf16 %v1058, %v1057
        %v1073 = vpack.c.bf16 %v1060, %v1059
        %v1074 = vpack.c.bf16 %v1062, %v1061
        %v1075 = vpack.c.bf16 %v1064, %v1063
        %v1076 = vpack.c.bf16 %v1066, %v1065
        %v1077 = vpack.c.bf16 %v1068, %v1067
        %v1078 = vpack.c.bf16 %v1070, %v1069
        %v1079 = vld [vmem:[%s2] sm:$0xf]
        %v1080 = vld [vmem:[%s1038] sm:$0xff]
        %v1081 = vld [vmem:[%s1038 + $0x10] sm:$0xff]
        %v1082 = vld [vmem:[%s1038 + $0x20] sm:$0xff]
        %v1083 = vld [vmem:[%s1038 + $0x30] sm:$0xff]
        %v1084 = vld [vmem:[%s1038 + $0x40] sm:$0xff]
        %v1085 = vld [vmem:[%s1038 + $0x50] sm:$0xff]
        %v1086 = vld [vmem:[%s1038 + $0x60] sm:$0xff]
        %v1087 = vld [vmem:[%s1038 + $0x70] sm:$0xff]
        %v1088 = vld [vmem:[%s1038 + $0xa0] sm:$0xff]
        %v1089 = vld [vmem:[%s1038 + $0xb0] sm:$0xff]
        %v1090 = vld [vmem:[%s1038 + $0xc0] sm:$0xff]
        %v1091 = vld [vmem:[%s1038 + $0xd0] sm:$0xff]
        %v1092 = vld [vmem:[%s1038 + $0xe0] sm:$0xff]
        %v1093 = vld [vmem:[%s1038 + $0xf0] sm:$0xff]
        %v1094 = vld [vmem:[%s1038 + $0x100] sm:$0xff]
        %v1095 = vld [vmem:[%s1038 + $0x110] sm:$0xff]
        %v1096 = vpack.c.bf16 %v1081, %v1080
        %v1097 = vpack.c.bf16 %v1083, %v1082
        %v1098 = vpack.c.bf16 %v1085, %v1084
        %v1099 = vpack.c.bf16 %v1087, %v1086
        %v1100 = vpack.c.bf16 %v1089, %v1088
        %v1101 = vpack.c.bf16 %v1091, %v1090
        %v1102 = vpack.c.bf16 %v1093, %v1092
        %v1103 = vpack.c.bf16 %v1095, %v1094
        %s1104 = scalar_lea.vmem %s2, 4
        %v1105 = vld [vmem:[%s1104] sm:$0xf]
        %v1107 = vsel %vm934, %v1096, 0
        %v1110 = vsel %vm934, %v1097, 0
        %v1113 = vsel %vm934, %v1098, 0
        %v1116 = vsel %vm934, %v1099, 0
        %v1119 = vsel %vm934, %v1100, 0
        %v1122 = vsel %vm934, %v1101, 0
        %v1125 = vsel %vm934, %v1102, 0
        %v1128 = vsel %vm934, %v1103, 0
        %vm1130 = vcmask 1043456
        %v1132 = vsel %vm1130, %v1105, 0
        %1134 = vmatpush.bf16.msra.mxu0 0
        %1135 = vmatpush.bf16.msra.mxu0 0
        %1136 = vmatpush.bf16.msra.mxu0 0
        %1137 = vmatpush.bf16.msra.mxu0 0
        %1138 = vmatpush.bf16.msra.mxu0 0
        %1139 = vmatpush.bf16.msra.mxu0 0
        %1140 = vmatpush.bf16.msra.mxu0 0
        %1141 = vmatpush.bf16.msra.mxu0 %v1132
        %1142 = vmatmul.bf16.gmra.mxu0 %v1107
        %v1143 = vpop.f32.mrf.mxu0
        %v1144 = vadd.f32 0.0, %v1143
        %v1145 = vpop.f32.mrf.mxu0
        %v1146 = vadd.f32 0.0, %v1145
        %1147 = vmatmul.bf16.gmra.mxu0 %v1110
        %v1148 = vpop.f32.mrf.mxu0
        %v1149 = vadd.f32 0.0, %v1148
        %v1150 = vpop.f32.mrf.mxu0
        %v1151 = vadd.f32 0.0, %v1150
        %1152 = vmatmul.bf16.gmra.mxu0 %v1113
        %v1153 = vpop.f32.mrf.mxu0
        %v1154 = vadd.f32 0.0, %v1153
        %v1155 = vpop.f32.mrf.mxu0
        %v1156 = vadd.f32 0.0, %v1155
        %1157 = vmatmul.bf16.gmra.mxu0 %v1116
        %v1158 = vpop.f32.mrf.mxu0
        %v1159 = vadd.f32 0.0, %v1158
        %v1160 = vpop.f32.mrf.mxu0
        %v1161 = vadd.f32 0.0, %v1160
        %1162 = vmatmul.bf16.gmra.mxu0 %v1119
        %v1163 = vpop.f32.mrf.mxu0
        %v1164 = vadd.f32 0.0, %v1163
        %v1165 = vpop.f32.mrf.mxu0
        %v1166 = vadd.f32 0.0, %v1165
        %1167 = vmatmul.bf16.gmra.mxu0 %v1122
        %v1168 = vpop.f32.mrf.mxu0
        %v1169 = vadd.f32 0.0, %v1168
        %v1170 = vpop.f32.mrf.mxu0
        %v1171 = vadd.f32 0.0, %v1170
        %1172 = vmatmul.bf16.gmra.mxu0 %v1125
        %v1173 = vpop.f32.mrf.mxu0
        %v1174 = vadd.f32 0.0, %v1173
        %v1175 = vpop.f32.mrf.mxu0
        %v1176 = vadd.f32 0.0, %v1175
        %1177 = vmatmul.bf16.gmra.mxu0 %v1128
        %v1178 = vpop.f32.mrf.mxu0
        %v1179 = vadd.f32 0.0, %v1178
        %v1180 = vpop.f32.mrf.mxu0
        %v1181 = vadd.f32 0.0, %v1180
        %1182 = vdwg.mxu0
        %v1184 = vsel %vm934, %v1071, 0
        %v1187 = vsel %vm934, %v1072, 0
        %v1190 = vsel %vm934, %v1073, 0
        %v1193 = vsel %vm934, %v1074, 0
        %v1196 = vsel %vm934, %v1075, 0
        %v1199 = vsel %vm934, %v1076, 0
        %v1202 = vsel %vm934, %v1077, 0
        %v1205 = vsel %vm934, %v1078, 0
        %v1208 = vsel %vm1130, %v1079, 0
        %1210 = vmatpush.bf16.msra.mxu0 0
        %1211 = vmatpush.bf16.msra.mxu0 0
        %1212 = vmatpush.bf16.msra.mxu0 0
        %1213 = vmatpush.bf16.msra.mxu0 0
        %1214 = vmatpush.bf16.msra.mxu0 0
        %1215 = vmatpush.bf16.msra.mxu0 0
        %1216 = vmatpush.bf16.msra.mxu0 0
        %1217 = vmatpush.bf16.msra.mxu0 %v1208
        %1218 = vmatmul.bf16.gmra.mxu0 %v1184
        %v1219 = vpop.f32.mrf.mxu0
        %v1220 = vadd.f32 %v1144, %v1219
        %v1221 = vpop.f32.mrf.mxu0
        %v1222 = vadd.f32 %v1146, %v1221
        %1223 = vmatmul.bf16.gmra.mxu0 %v1187
        %v1224 = vpop.f32.mrf.mxu0
        %v1225 = vadd.f32 %v1149, %v1224
        %v1226 = vpop.f32.mrf.mxu0
        %v1227 = vadd.f32 %v1151, %v1226
        %1228 = vmatmul.bf16.gmra.mxu0 %v1190
        %v1229 = vpop.f32.mrf.mxu0
        %v1230 = vadd.f32 %v1154, %v1229
        %v1231 = vpop.f32.mrf.mxu0
        %v1232 = vadd.f32 %v1156, %v1231
        %1233 = vmatmul.bf16.gmra.mxu0 %v1193
        %v1234 = vpop.f32.mrf.mxu0
        %v1235 = vadd.f32 %v1159, %v1234
        %v1236 = vpop.f32.mrf.mxu0
        %v1237 = vadd.f32 %v1161, %v1236
        %1238 = vmatmul.bf16.gmra.mxu0 %v1196
        %v1239 = vpop.f32.mrf.mxu0
        %v1240 = vadd.f32 %v1164, %v1239
        %v1241 = vpop.f32.mrf.mxu0
        %v1242 = vadd.f32 %v1166, %v1241
        %1243 = vmatmul.bf16.gmra.mxu0 %v1199
        %v1244 = vpop.f32.mrf.mxu0
        %v1245 = vadd.f32 %v1169, %v1244
        %v1246 = vpop.f32.mrf.mxu0
        %v1247 = vadd.f32 %v1171, %v1246
        %1248 = vmatmul.bf16.gmra.mxu0 %v1202
        %v1249 = vpop.f32.mrf.mxu0
        %v1250 = vadd.f32 %v1174, %v1249
        %v1251 = vpop.f32.mrf.mxu0
        %v1252 = vadd.f32 %v1176, %v1251
        %1253 = vmatmul.bf16.gmra.mxu0 %v1205
        %v1254 = vpop.f32.mrf.mxu0
        %v1255 = vadd.f32 %v1179, %v1254
        %v1256 = vpop.f32.mrf.mxu0
        %v1257 = vadd.f32 %v1181, %v1256
        %1258 = vdwg.mxu0
        %v1259 = vld [vmem:[#allocation3 + $0x1] sm:$0xff]
        %v1260 = vld [vmem:[#allocation3 + $0x11] sm:$0xff]
        %v1261 = vld [vmem:[#allocation3 + $0x21] sm:$0xff]
        %v1262 = vld [vmem:[#allocation3 + $0x31] sm:$0xff]
        %v1263 = vld [vmem:[#allocation3 + $0x41] sm:$0xff]
        %v1264 = vld [vmem:[#allocation3 + $0x51] sm:$0xff]
        %v1265 = vld [vmem:[#allocation3 + $0x61] sm:$0xff]
        %v1266 = vld [vmem:[#allocation3 + $0x71] sm:$0xff]
        %v1267 = vld [vmem:[#allocation3 + $0xa1] sm:$0xff]
        %v1268 = vld [vmem:[#allocation3 + $0xb1] sm:$0xff]
        %v1269 = vld [vmem:[#allocation3 + $0xc1] sm:$0xff]
        %v1270 = vld [vmem:[#allocation3 + $0xd1] sm:$0xff]
        %v1271 = vld [vmem:[#allocation3 + $0xe1] sm:$0xff]
        %v1272 = vld [vmem:[#allocation3 + $0xf1] sm:$0xff]
        %v1273 = vld [vmem:[#allocation3 + $0x101] sm:$0xff]
        %v1274 = vld [vmem:[#allocation3 + $0x111] sm:$0xff]
        %v1275 = vpack.c.bf16 %v1260, %v1259
        %v1276 = vpack.c.bf16 %v1262, %v1261
        %v1277 = vpack.c.bf16 %v1264, %v1263
        %v1278 = vpack.c.bf16 %v1266, %v1265
        %v1279 = vpack.c.bf16 %v1268, %v1267
        %v1280 = vpack.c.bf16 %v1270, %v1269
        %v1281 = vpack.c.bf16 %v1272, %v1271
        %v1282 = vpack.c.bf16 %v1274, %v1273
        %s1283 = scalar_lea.vmem %s2, 8
        %v1284 = vld [vmem:[%s1283] sm:$0xf]
        %v1286 = vsel %vm934, %v1275, 0
        %v1289 = vsel %vm934, %v1276, 0
        %v1292 = vsel %vm934, %v1277, 0
        %v1295 = vsel %vm934, %v1278, 0
        %v1298 = vsel %vm934, %v1279, 0
        %v1301 = vsel %vm934, %v1280, 0
        %v1304 = vsel %vm934, %v1281, 0
        %v1307 = vsel %vm934, %v1282, 0
        %v1310 = vsel %vm1130, %v1284, 0
        %1312 = vmatpush.bf16.msra.mxu0 0
        %1313 = vmatpush.bf16.msra.mxu0 0
        %1314 = vmatpush.bf16.msra.mxu0 0
        %1315 = vmatpush.bf16.msra.mxu0 0
        %1316 = vmatpush.bf16.msra.mxu0 0
        %1317 = vmatpush.bf16.msra.mxu0 0
        %1318 = vmatpush.bf16.msra.mxu0 0
        %1319 = vmatpush.bf16.msra.mxu0 %v1310
        %1320 = vmatmul.bf16.gmra.mxu0 %v1286
        %v1321 = vpop.f32.mrf.mxu0
        %v1322 = vadd.f32 0.0, %v1321
        %v1323 = vpop.f32.mrf.mxu0
        %v1324 = vadd.f32 0.0, %v1323
        %1325 = vmatmul.bf16.gmra.mxu0 %v1289
        %v1326 = vpop.f32.mrf.mxu0
        %v1327 = vadd.f32 0.0, %v1326
        %v1328 = vpop.f32.mrf.mxu0
        %v1329 = vadd.f32 0.0, %v1328
        %1330 = vmatmul.bf16.gmra.mxu0 %v1292
        %v1331 = vpop.f32.mrf.mxu0
        %v1332 = vadd.f32 0.0, %v1331
        %v1333 = vpop.f32.mrf.mxu0
        %v1334 = vadd.f32 0.0, %v1333
        %1335 = vmatmul.bf16.gmra.mxu0 %v1295
        %v1336 = vpop.f32.mrf.mxu0
        %v1337 = vadd.f32 0.0, %v1336
        %v1338 = vpop.f32.mrf.mxu0
        %v1339 = vadd.f32 0.0, %v1338
        %1340 = vmatmul.bf16.gmra.mxu0 %v1298
        %v1341 = vpop.f32.mrf.mxu0
        %v1342 = vadd.f32 0.0, %v1341
        %v1343 = vpop.f32.mrf.mxu0
        %v1344 = vadd.f32 0.0, %v1343
        %1345 = vmatmul.bf16.gmra.mxu0 %v1301
        %v1346 = vpop.f32.mrf.mxu0
        %v1347 = vadd.f32 0.0, %v1346
        %v1348 = vpop.f32.mrf.mxu0
        %v1349 = vadd.f32 0.0, %v1348
        %1350 = vmatmul.bf16.gmra.mxu0 %v1304
        %v1351 = vpop.f32.mrf.mxu0
        %v1352 = vadd.f32 0.0, %v1351
        %v1353 = vpop.f32.mrf.mxu0
        %v1354 = vadd.f32 0.0, %v1353
        %1355 = vmatmul.bf16.gmra.mxu0 %v1307
        %v1356 = vpop.f32.mrf.mxu0
        %v1357 = vadd.f32 0.0, %v1356
        %v1358 = vpop.f32.mrf.mxu0
        %v1359 = vadd.f32 0.0, %v1358
        %1360 = vdwg.mxu0
        %v1361 = vadd.f32 %v1220, %v1322
        %v1362 = vadd.f32 %v1222, %v1324
        %v1363 = vadd.f32 %v1225, %v1327
        %v1364 = vadd.f32 %v1227, %v1329
        %v1365 = vadd.f32 %v1230, %v1332
        %v1366 = vadd.f32 %v1232, %v1334
        %v1367 = vadd.f32 %v1235, %v1337
        %v1368 = vadd.f32 %v1237, %v1339
        %v1369 = vadd.f32 %v1240, %v1342
        %v1370 = vadd.f32 %v1242, %v1344
        %v1371 = vadd.f32 %v1245, %v1347
        %v1372 = vadd.f32 %v1247, %v1349
        %v1373 = vadd.f32 %v1250, %v1352
        %v1374 = vadd.f32 %v1252, %v1354
        %v1375 = vadd.f32 %v1255, %v1357
        %v1376 = vadd.f32 %v1257, %v1359
        %v1377 = vld [vmem:[#allocation3] sm:$0xff]
        %v1378 = vld [vmem:[#allocation3 + $0x10] sm:$0xff]
        %v1379 = vld [vmem:[#allocation3 + $0x20] sm:$0xff]
        %v1380 = vld [vmem:[#allocation3 + $0x30] sm:$0xff]
        %v1381 = vld [vmem:[#allocation3 + $0x40] sm:$0xff]
        %v1382 = vld [vmem:[#allocation3 + $0x50] sm:$0xff]
        %v1383 = vld [vmem:[#allocation3 + $0x60] sm:$0xff]
        %v1384 = vld [vmem:[#allocation3 + $0x70] sm:$0xff]
        %v1385 = vld [vmem:[#allocation3 + $0xa0] sm:$0xff]
        %v1386 = vld [vmem:[#allocation3 + $0xb0] sm:$0xff]
        %v1387 = vld [vmem:[#allocation3 + $0xc0] sm:$0xff]
        %v1388 = vld [vmem:[#allocation3 + $0xd0] sm:$0xff]
        %v1389 = vld [vmem:[#allocation3 + $0xe0] sm:$0xff]
        %v1390 = vld [vmem:[#allocation3 + $0xf0] sm:$0xff]
        %v1391 = vld [vmem:[#allocation3 + $0x100] sm:$0xff]
        %v1392 = vld [vmem:[#allocation3 + $0x110] sm:$0xff]
        %v1393 = vpack.c.bf16 %v1378, %v1377
        %v1394 = vpack.c.bf16 %v1380, %v1379
        %v1395 = vpack.c.bf16 %v1382, %v1381
        %v1396 = vpack.c.bf16 %v1384, %v1383
        %v1397 = vpack.c.bf16 %v1386, %v1385
        %v1398 = vpack.c.bf16 %v1388, %v1387
        %v1399 = vpack.c.bf16 %v1390, %v1389
        %v1400 = vpack.c.bf16 %v1392, %v1391
        %s1401 = scalar_lea.vmem %s2, 12
        %v1402 = vld [vmem:[%s1401] sm:$0xf]
        %v1404 = vsel %vm934, %v1393, 0
        %v1407 = vsel %vm934, %v1394, 0
        %v1410 = vsel %vm934, %v1395, 0
        %v1413 = vsel %vm934, %v1396, 0
        %v1416 = vsel %vm934, %v1397, 0
        %v1419 = vsel %vm934, %v1398, 0
        %v1422 = vsel %vm934, %v1399, 0
        %v1425 = vsel %vm934, %v1400, 0
        %v1428 = vsel %vm1130, %v1402, 0
        %1430 = vmatpush.bf16.msra.mxu0 0
        %1431 = vmatpush.bf16.msra.mxu0 0
        %1432 = vmatpush.bf16.msra.mxu0 0
        %1433 = vmatpush.bf16.msra.mxu0 0
        %1434 = vmatpush.bf16.msra.mxu0 0
        %1435 = vmatpush.bf16.msra.mxu0 0
        %1436 = vmatpush.bf16.msra.mxu0 0
        %1437 = vmatpush.bf16.msra.mxu0 %v1428
        %1438 = vmatmul.bf16.gmra.mxu0 %v1404
        %v1439 = vpop.f32.mrf.mxu0
        %v1440 = vadd.f32 0.0, %v1439
        %v1441 = vpop.f32.mrf.mxu0
        %v1442 = vadd.f32 0.0, %v1441
        %1443 = vmatmul.bf16.gmra.mxu0 %v1407
        %v1444 = vpop.f32.mrf.mxu0
        %v1445 = vadd.f32 0.0, %v1444
        %v1446 = vpop.f32.mrf.mxu0
        %v1447 = vadd.f32 0.0, %v1446
        %1448 = vmatmul.bf16.gmra.mxu0 %v1410
        %v1449 = vpop.f32.mrf.mxu0
        %v1450 = vadd.f32 0.0, %v1449
        %v1451 = vpop.f32.mrf.mxu0
        %v1452 = vadd.f32 0.0, %v1451
        %1453 = vmatmul.bf16.gmra.mxu0 %v1413
        %v1454 = vpop.f32.mrf.mxu0
        %v1455 = vadd.f32 0.0, %v1454
        %v1456 = vpop.f32.mrf.mxu0
        %v1457 = vadd.f32 0.0, %v1456
        %1458 = vmatmul.bf16.gmra.mxu0 %v1416
        %v1459 = vpop.f32.mrf.mxu0
        %v1460 = vadd.f32 0.0, %v1459
        %v1461 = vpop.f32.mrf.mxu0
        %v1462 = vadd.f32 0.0, %v1461
        %1463 = vmatmul.bf16.gmra.mxu0 %v1419
        %v1464 = vpop.f32.mrf.mxu0
        %v1465 = vadd.f32 0.0, %v1464
        %v1466 = vpop.f32.mrf.mxu0
        %v1467 = vadd.f32 0.0, %v1466
        %1468 = vmatmul.bf16.gmra.mxu0 %v1422
        %v1469 = vpop.f32.mrf.mxu0
        %v1470 = vadd.f32 0.0, %v1469
        %v1471 = vpop.f32.mrf.mxu0
        %v1472 = vadd.f32 0.0, %v1471
        %1473 = vmatmul.bf16.gmra.mxu0 %v1425
        %v1474 = vpop.f32.mrf.mxu0
        %v1475 = vadd.f32 0.0, %v1474
        %v1476 = vpop.f32.mrf.mxu0
        %v1477 = vadd.f32 0.0, %v1476
        %1478 = vdwg.mxu0
        %v1479 = vadd.f32 %v1361, %v1440
        %v1480 = vadd.f32 %v1362, %v1442
        %v1481 = vadd.f32 %v1363, %v1445
        %v1482 = vadd.f32 %v1364, %v1447
        %v1483 = vadd.f32 %v1365, %v1450
        %v1484 = vadd.f32 %v1366, %v1452
        %v1485 = vadd.f32 %v1367, %v1455
        %v1486 = vadd.f32 %v1368, %v1457
        %v1487 = vadd.f32 %v1369, %v1460
        %v1488 = vadd.f32 %v1370, %v1462
        %v1489 = vadd.f32 %v1371, %v1465
        %v1490 = vadd.f32 %v1372, %v1467
        %v1491 = vadd.f32 %v1373, %v1470
        %v1492 = vadd.f32 %v1374, %v1472
        %v1493 = vadd.f32 %v1375, %v1475
        %v1494 = vadd.f32 %v1376, %v1477
        %v1495 = vsel %vm341, %v1479, 0.0
        %v1496 = vsel %vm341, %v1480, 0.0
        %v1497 = vadd.f32 %v1495, %v1496
        %v1498 = vsel %vm341, %v1481, 0.0
        %v1499 = vadd.f32 %v1497, %v1498
        %v1500 = vsel %vm341, %v1482, 0.0
        %v1501 = vadd.f32 %v1499, %v1500
        %v1502 = vsel %vm341, %v1483, 0.0
        %v1503 = vadd.f32 %v1501, %v1502
        %v1504 = vsel %vm341, %v1484, 0.0
        %v1505 = vadd.f32 %v1503, %v1504
        %v1506 = vsel %vm341, %v1485, 0.0
        %v1507 = vadd.f32 %v1505, %v1506
        %v1508 = vsel %vm341, %v1486, 0.0
        %v1509 = vadd.f32 %v1507, %v1508
        %v1510 = vsel %vm341, %v1487, 0.0
        %v1511 = vadd.f32 %v1509, %v1510
        %v1512 = vsel %vm341, %v1488, 0.0
        %v1513 = vadd.f32 %v1511, %v1512
        %v1514 = vsel %vm341, %v1489, 0.0
        %v1515 = vadd.f32 %v1513, %v1514
        %v1516 = vsel %vm341, %v1490, 0.0
        %v1517 = vadd.f32 %v1515, %v1516
        %v1518 = vsel %vm341, %v1491, 0.0
        %v1519 = vadd.f32 %v1517, %v1518
        %v1520 = vsel %vm341, %v1492, 0.0
        %v1521 = vadd.f32 %v1519, %v1520
        %v1522 = vsel %vm341, %v1493, 0.0
        %v1523 = vadd.f32 %v1521, %v1522
        %v1524 = vsel %vm341, %v1494, 0.0
        %v1525 = vadd.f32 %v1523, %v1524
        %v1526 = vrot.slane %v1525, 4
        %v1527 = vadd.f32 %v1525, %v1526
        %v1528 = vrot.slane %v1527, 2
        %v1529 = vadd.f32 %v1527, %v1528
        %v1530 = vrot.slane %v1529, 1
        %v1531 = vadd.f32 %v1529, %v1530
        %v1532 = vrcp.pop 128.0
        %v1533 = vmul.f32 128.0, %v1532
        %v1534 = vsub.f32 1.0, %v1533
        %v1535 = vmul.f32 %v1532, %v1534
        %v1536 = vadd.f32 %v1532, %v1535
        %vm1537 = vweird.f32 %v1532
        %v1538 = vsel %vm1537, %v1532, %v1536
        %v1539 = vmul.f32 %v1531, %v1538
        %v1540 = vsub.f32 %v1479, %v1539
        %v1541 = vsub.f32 %v1480, %v1539
        %v1542 = vsub.f32 %v1481, %v1539
        %v1543 = vsub.f32 %v1482, %v1539
        %v1544 = vsub.f32 %v1483, %v1539
        %v1545 = vsub.f32 %v1484, %v1539
        %v1546 = vsub.f32 %v1485, %v1539
        %v1547 = vsub.f32 %v1486, %v1539
        %v1548 = vsub.f32 %v1487, %v1539
        %v1549 = vsub.f32 %v1488, %v1539
        %v1550 = vsub.f32 %v1489, %v1539
        %v1551 = vsub.f32 %v1490, %v1539
        %v1552 = vsub.f32 %v1491, %v1539
        %v1553 = vsub.f32 %v1492, %v1539
        %v1554 = vsub.f32 %v1493, %v1539
        %v1555 = vsub.f32 %v1494, %v1539
        %v1556 = vmul.f32 %v1540, %v1540
        %v1557 = vmul.f32 %v1541, %v1541
        %v1558 = vmul.f32 %v1542, %v1542
        %v1559 = vmul.f32 %v1543, %v1543
        %v1560 = vmul.f32 %v1544, %v1544
        %v1561 = vmul.f32 %v1545, %v1545
        %v1562 = vmul.f32 %v1546, %v1546
        %v1563 = vmul.f32 %v1547, %v1547
        %v1564 = vmul.f32 %v1548, %v1548
        %v1565 = vmul.f32 %v1549, %v1549
        %v1566 = vmul.f32 %v1550, %v1550
        %v1567 = vmul.f32 %v1551, %v1551
        %v1568 = vmul.f32 %v1552, %v1552
        %v1569 = vmul.f32 %v1553, %v1553
        %v1570 = vmul.f32 %v1554, %v1554
        %v1571 = vmul.f32 %v1555, %v1555
        %v1572 = vsel %vm341, %v1556, 0.0
        %v1573 = vsel %vm341, %v1557, 0.0
        %v1574 = vadd.f32 %v1572, %v1573
        %v1575 = vsel %vm341, %v1558, 0.0
        %v1576 = vadd.f32 %v1574, %v1575
        %v1577 = vsel %vm341, %v1559, 0.0
        %v1578 = vadd.f32 %v1576, %v1577
        %v1579 = vsel %vm341, %v1560, 0.0
        %v1580 = vadd.f32 %v1578, %v1579
        %v1581 = vsel %vm341, %v1561, 0.0
        %v1582 = vadd.f32 %v1580, %v1581
        %v1583 = vsel %vm341, %v1562, 0.0
        %v1584 = vadd.f32 %v1582, %v1583
        %v1585 = vsel %vm341, %v1563, 0.0
        %v1586 = vadd.f32 %v1584, %v1585
        %v1587 = vsel %vm341, %v1564, 0.0
        %v1588 = vadd.f32 %v1586, %v1587
        %v1589 = vsel %vm341, %v1565, 0.0
        %v1590 = vadd.f32 %v1588, %v1589
        %v1591 = vsel %vm341, %v1566, 0.0
        %v1592 = vadd.f32 %v1590, %v1591
        %v1593 = vsel %vm341, %v1567, 0.0
        %v1594 = vadd.f32 %v1592, %v1593
        %v1595 = vsel %vm341, %v1568, 0.0
        %v1596 = vadd.f32 %v1594, %v1595
        %v1597 = vsel %vm341, %v1569, 0.0
        %v1598 = vadd.f32 %v1596, %v1597
        %v1599 = vsel %vm341, %v1570, 0.0
        %v1600 = vadd.f32 %v1598, %v1599
        %v1601 = vsel %vm341, %v1571, 0.0
        %v1602 = vadd.f32 %v1600, %v1601
        %v1603 = vrot.slane %v1602, 4
        %v1604 = vadd.f32 %v1602, %v1603
        %v1605 = vrot.slane %v1604, 2
        %v1606 = vadd.f32 %v1604, %v1605
        %v1607 = vrot.slane %v1606, 1
        %v1608 = vadd.f32 %v1606, %v1607
        %v1609 = vld [vmem:[%s1038 + $0x2] sm:$0xff]
        %v1610 = vld [vmem:[%s1038 + $0x12] sm:$0xff]
        %v1611 = vld [vmem:[%s1038 + $0x22] sm:$0xff]
        %v1612 = vld [vmem:[%s1038 + $0x32] sm:$0xff]
        %v1613 = vld [vmem:[%s1038 + $0x42] sm:$0xff]
        %v1614 = vld [vmem:[%s1038 + $0x52] sm:$0xff]
        %v1615 = vld [vmem:[%s1038 + $0x62] sm:$0xff]
        %v1616 = vld [vmem:[%s1038 + $0x72] sm:$0xff]
        %v1617 = vld [vmem:[%s1038 + $0xa2] sm:$0xff]
        %v1618 = vld [vmem:[%s1038 + $0xb2] sm:$0xff]
        %v1619 = vld [vmem:[%s1038 + $0xc2] sm:$0xff]
        %v1620 = vld [vmem:[%s1038 + $0xd2] sm:$0xff]
        %v1621 = vld [vmem:[%s1038 + $0xe2] sm:$0xff]
        %v1622 = vld [vmem:[%s1038 + $0xf2] sm:$0xff]
        %v1623 = vld [vmem:[%s1038 + $0x102] sm:$0xff]
        %v1624 = vld [vmem:[%s1038 + $0x112] sm:$0xff]
        %v1625 = vpack.c.bf16 %v1610, %v1609
        %v1626 = vpack.c.bf16 %v1612, %v1611
        %v1627 = vpack.c.bf16 %v1614, %v1613
        %v1628 = vpack.c.bf16 %v1616, %v1615
        %v1629 = vpack.c.bf16 %v1618, %v1617
        %v1630 = vpack.c.bf16 %v1620, %v1619
        %v1631 = vpack.c.bf16 %v1622, %v1621
        %v1632 = vpack.c.bf16 %v1624, %v1623
        %s1633 = scalar_lea.vmem %s2, 16
        %v1634 = vld [vmem:[%s1633] sm:$0xf]
        %s1635 = scalar_lea.vmem %s2, 20
        %v1636 = vld [vmem:[%s1635] sm:$0xf]
        %v1638 = vsel %vm1130, %v1636, 0
        %1640 = vmatpush.bf16.msra.mxu0 0
        %1641 = vmatpush.bf16.msra.mxu0 0
        %1642 = vmatpush.bf16.msra.mxu0 0
        %1643 = vmatpush.bf16.msra.mxu0 0
        %1644 = vmatpush.bf16.msra.mxu0 0
        %1645 = vmatpush.bf16.msra.mxu0 0
        %1646 = vmatpush.bf16.msra.mxu0 0
        %1647 = vmatpush.bf16.msra.mxu0 %v1638
        %1648 = vmatmul.bf16.gmra.mxu0 %v1184
        %v1649 = vpop.f32.mrf.mxu0
        %v1650 = vadd.f32 0.0, %v1649
        %v1651 = vpop.f32.mrf.mxu0
        %v1652 = vadd.f32 0.0, %v1651
        %1653 = vmatmul.bf16.gmra.mxu0 %v1187
        %v1654 = vpop.f32.mrf.mxu0
        %v1655 = vadd.f32 0.0, %v1654
        %v1656 = vpop.f32.mrf.mxu0
        %v1657 = vadd.f32 0.0, %v1656
        %1658 = vmatmul.bf16.gmra.mxu0 %v1190
        %v1659 = vpop.f32.mrf.mxu0
        %v1660 = vadd.f32 0.0, %v1659
        %v1661 = vpop.f32.mrf.mxu0
        %v1662 = vadd.f32 0.0, %v1661
        %1663 = vmatmul.bf16.gmra.mxu0 %v1193
        %v1664 = vpop.f32.mrf.mxu0
        %v1665 = vadd.f32 0.0, %v1664
        %v1666 = vpop.f32.mrf.mxu0
        %v1667 = vadd.f32 0.0, %v1666
        %1668 = vmatmul.bf16.gmra.mxu0 %v1196
        %v1669 = vpop.f32.mrf.mxu0
        %v1670 = vadd.f32 0.0, %v1669
        %v1671 = vpop.f32.mrf.mxu0
        %v1672 = vadd.f32 0.0, %v1671
        %1673 = vmatmul.bf16.gmra.mxu0 %v1199
        %v1674 = vpop.f32.mrf.mxu0
        %v1675 = vadd.f32 0.0, %v1674
        %v1676 = vpop.f32.mrf.mxu0
        %v1677 = vadd.f32 0.0, %v1676
        %1678 = vmatmul.bf16.gmra.mxu0 %v1202
        %v1679 = vpop.f32.mrf.mxu0
        %v1680 = vadd.f32 0.0, %v1679
        %v1681 = vpop.f32.mrf.mxu0
        %v1682 = vadd.f32 0.0, %v1681
        %1683 = vmatmul.bf16.gmra.mxu0 %v1205
        %v1684 = vpop.f32.mrf.mxu0
        %v1685 = vadd.f32 0.0, %v1684
        %v1686 = vpop.f32.mrf.mxu0
        %v1687 = vadd.f32 0.0, %v1686
        %1688 = vdwg.mxu0
        %v1690 = vsel %vm934, %v1625, 0
        %v1693 = vsel %vm934, %v1626, 0
        %v1696 = vsel %vm934, %v1627, 0
        %v1699 = vsel %vm934, %v1628, 0
        %v1702 = vsel %vm934, %v1629, 0
        %v1705 = vsel %vm934, %v1630, 0
        %v1708 = vsel %vm934, %v1631, 0
        %v1711 = vsel %vm934, %v1632, 0
        %v1714 = vsel %vm1130, %v1634, 0
        %1716 = vmatpush.bf16.msra.mxu0 0
        %1717 = vmatpush.bf16.msra.mxu0 0
        %1718 = vmatpush.bf16.msra.mxu0 0
        %1719 = vmatpush.bf16.msra.mxu0 0
        %1720 = vmatpush.bf16.msra.mxu0 0
        %1721 = vmatpush.bf16.msra.mxu0 0
        %1722 = vmatpush.bf16.msra.mxu0 0
        %1723 = vmatpush.bf16.msra.mxu0 %v1714
        %1724 = vmatmul.bf16.gmra.mxu0 %v1690
        %v1725 = vpop.f32.mrf.mxu0
        %v1726 = vadd.f32 %v1650, %v1725
        %v1727 = vpop.f32.mrf.mxu0
        %v1728 = vadd.f32 %v1652, %v1727
        %1729 = vmatmul.bf16.gmra.mxu0 %v1693
        %v1730 = vpop.f32.mrf.mxu0
        %v1731 = vadd.f32 %v1655, %v1730
        %v1732 = vpop.f32.mrf.mxu0
        %v1733 = vadd.f32 %v1657, %v1732
        %1734 = vmatmul.bf16.gmra.mxu0 %v1696
        %v1735 = vpop.f32.mrf.mxu0
        %v1736 = vadd.f32 %v1660, %v1735
        %v1737 = vpop.f32.mrf.mxu0
        %v1738 = vadd.f32 %v1662, %v1737
        %1739 = vmatmul.bf16.gmra.mxu0 %v1699
        %v1740 = vpop.f32.mrf.mxu0
        %v1741 = vadd.f32 %v1665, %v1740
        %v1742 = vpop.f32.mrf.mxu0
        %v1743 = vadd.f32 %v1667, %v1742
        %1744 = vmatmul.bf16.gmra.mxu0 %v1702
        %v1745 = vpop.f32.mrf.mxu0
        %v1746 = vadd.f32 %v1670, %v1745
        %v1747 = vpop.f32.mrf.mxu0
        %v1748 = vadd.f32 %v1672, %v1747
        %1749 = vmatmul.bf16.gmra.mxu0 %v1705
        %v1750 = vpop.f32.mrf.mxu0
        %v1751 = vadd.f32 %v1675, %v1750
        %v1752 = vpop.f32.mrf.mxu0
        %v1753 = vadd.f32 %v1677, %v1752
        %1754 = vmatmul.bf16.gmra.mxu0 %v1708
        %v1755 = vpop.f32.mrf.mxu0
        %v1756 = vadd.f32 %v1680, %v1755
        %v1757 = vpop.f32.mrf.mxu0
        %v1758 = vadd.f32 %v1682, %v1757
        %1759 = vmatmul.bf16.gmra.mxu0 %v1711
        %v1760 = vpop.f32.mrf.mxu0
        %v1761 = vadd.f32 %v1685, %v1760
        %v1762 = vpop.f32.mrf.mxu0
        %v1763 = vadd.f32 %v1687, %v1762
        %1764 = vdwg.mxu0
        %v1765 = vld [vmem:[#allocation3 + $0x2] sm:$0xff]
        %v1766 = vld [vmem:[#allocation3 + $0x12] sm:$0xff]
        %v1767 = vld [vmem:[#allocation3 + $0x22] sm:$0xff]
        %v1768 = vld [vmem:[#allocation3 + $0x32] sm:$0xff]
        %v1769 = vld [vmem:[#allocation3 + $0x42] sm:$0xff]
        %v1770 = vld [vmem:[#allocation3 + $0x52] sm:$0xff]
        %v1771 = vld [vmem:[#allocation3 + $0x62] sm:$0xff]
        %v1772 = vld [vmem:[#allocation3 + $0x72] sm:$0xff]
        %v1773 = vld [vmem:[#allocation3 + $0xa2] sm:$0xff]
        %v1774 = vld [vmem:[#allocation3 + $0xb2] sm:$0xff]
        %v1775 = vld [vmem:[#allocation3 + $0xc2] sm:$0xff]
        %v1776 = vld [vmem:[#allocation3 + $0xd2] sm:$0xff]
        %v1777 = vld [vmem:[#allocation3 + $0xe2] sm:$0xff]
        %v1778 = vld [vmem:[#allocation3 + $0xf2] sm:$0xff]
        %v1779 = vld [vmem:[#allocation3 + $0x102] sm:$0xff]
        %v1780 = vld [vmem:[#allocation3 + $0x112] sm:$0xff]
        %v1781 = vpack.c.bf16 %v1766, %v1765
        %v1782 = vpack.c.bf16 %v1768, %v1767
        %v1783 = vpack.c.bf16 %v1770, %v1769
        %v1784 = vpack.c.bf16 %v1772, %v1771
        %v1785 = vpack.c.bf16 %v1774, %v1773
        %v1786 = vpack.c.bf16 %v1776, %v1775
        %v1787 = vpack.c.bf16 %v1778, %v1777
        %v1788 = vpack.c.bf16 %v1780, %v1779
        %s1789 = scalar_lea.vmem %s2, 24
        %v1790 = vld [vmem:[%s1789] sm:$0xf]
        %v1792 = vsel %vm934, %v1781, 0
        %v1795 = vsel %vm934, %v1782, 0
        %v1798 = vsel %vm934, %v1783, 0
        %v1801 = vsel %vm934, %v1784, 0
        %v1804 = vsel %vm934, %v1785, 0
        %v1807 = vsel %vm934, %v1786, 0
        %v1810 = vsel %vm934, %v1787, 0
        %v1813 = vsel %vm934, %v1788, 0
        %v1816 = vsel %vm1130, %v1790, 0
        %1818 = vmatpush.bf16.msra.mxu0 0
        %1819 = vmatpush.bf16.msra.mxu0 0
        %1820 = vmatpush.bf16.msra.mxu0 0
        %1821 = vmatpush.bf16.msra.mxu0 0
        %1822 = vmatpush.bf16.msra.mxu0 0
        %1823 = vmatpush.bf16.msra.mxu0 0
        %1824 = vmatpush.bf16.msra.mxu0 0
        %1825 = vmatpush.bf16.msra.mxu0 %v1816
        %1826 = vmatmul.bf16.gmra.mxu0 %v1792
        %v1827 = vpop.f32.mrf.mxu0
        %v1828 = vadd.f32 0.0, %v1827
        %v1829 = vpop.f32.mrf.mxu0
        %v1830 = vadd.f32 0.0, %v1829
        %1831 = vmatmul.bf16.gmra.mxu0 %v1795
        %v1832 = vpop.f32.mrf.mxu0
        %v1833 = vadd.f32 0.0, %v1832
        %v1834 = vpop.f32.mrf.mxu0
        %v1835 = vadd.f32 0.0, %v1834
        %1836 = vmatmul.bf16.gmra.mxu0 %v1798
        %v1837 = vpop.f32.mrf.mxu0
        %v1838 = vadd.f32 0.0, %v1837
        %v1839 = vpop.f32.mrf.mxu0
        %v1840 = vadd.f32 0.0, %v1839
        %1841 = vmatmul.bf16.gmra.mxu0 %v1801
        %v1842 = vpop.f32.mrf.mxu0
        %v1843 = vadd.f32 0.0, %v1842
        %v1844 = vpop.f32.mrf.mxu0
        %v1845 = vadd.f32 0.0, %v1844
        %1846 = vmatmul.bf16.gmra.mxu0 %v1804
        %v1847 = vpop.f32.mrf.mxu0
        %v1848 = vadd.f32 0.0, %v1847
        %v1849 = vpop.f32.mrf.mxu0
        %v1850 = vadd.f32 0.0, %v1849
        %1851 = vmatmul.bf16.gmra.mxu0 %v1807
        %v1852 = vpop.f32.mrf.mxu0
        %v1853 = vadd.f32 0.0, %v1852
        %v1854 = vpop.f32.mrf.mxu0
        %v1855 = vadd.f32 0.0, %v1854
        %1856 = vmatmul.bf16.gmra.mxu0 %v1810
        %v1857 = vpop.f32.mrf.mxu0
        %v1858 = vadd.f32 0.0, %v1857
        %v1859 = vpop.f32.mrf.mxu0
        %v1860 = vadd.f32 0.0, %v1859
        %1861 = vmatmul.bf16.gmra.mxu0 %v1813
        %v1862 = vpop.f32.mrf.mxu0
        %v1863 = vadd.f32 0.0, %v1862
        %v1864 = vpop.f32.mrf.mxu0
        %v1865 = vadd.f32 0.0, %v1864
        %1866 = vdwg.mxu0
        %v1867 = vadd.f32 %v1726, %v1828
        %v1868 = vadd.f32 %v1728, %v1830
        %v1869 = vadd.f32 %v1731, %v1833
        %v1870 = vadd.f32 %v1733, %v1835
        %v1871 = vadd.f32 %v1736, %v1838
        %v1872 = vadd.f32 %v1738, %v1840
        %v1873 = vadd.f32 %v1741, %v1843
        %v1874 = vadd.f32 %v1743, %v1845
        %v1875 = vadd.f32 %v1746, %v1848
        %v1876 = vadd.f32 %v1748, %v1850
        %v1877 = vadd.f32 %v1751, %v1853
        %v1878 = vadd.f32 %v1753, %v1855
        %v1879 = vadd.f32 %v1756, %v1858
        %v1880 = vadd.f32 %v1758, %v1860
        %v1881 = vadd.f32 %v1761, %v1863
        %v1882 = vadd.f32 %v1763, %v1865
        %s1883 = scalar_lea.vmem %s2, 28
        %v1884 = vld [vmem:[%s1883] sm:$0xf]
        %v1886 = vsel %vm1130, %v1884, 0
        %1888 = vmatpush.bf16.msra.mxu0 0
        %1889 = vmatpush.bf16.msra.mxu0 0
        %1890 = vmatpush.bf16.msra.mxu0 0
        %1891 = vmatpush.bf16.msra.mxu0 0
        %1892 = vmatpush.bf16.msra.mxu0 0
        %1893 = vmatpush.bf16.msra.mxu0 0
        %1894 = vmatpush.bf16.msra.mxu0 0
        %1895 = vmatpush.bf16.msra.mxu0 %v1886
        %1896 = vmatmul.bf16.gmra.mxu0 %v1286
        %v1897 = vpop.f32.mrf.mxu0
        %v1898 = vadd.f32 0.0, %v1897
        %v1899 = vpop.f32.mrf.mxu0
        %v1900 = vadd.f32 0.0, %v1899
        %1901 = vmatmul.bf16.gmra.mxu0 %v1289
        %v1902 = vpop.f32.mrf.mxu0
        %v1903 = vadd.f32 0.0, %v1902
        %v1904 = vpop.f32.mrf.mxu0
        %v1905 = vadd.f32 0.0, %v1904
        %1906 = vmatmul.bf16.gmra.mxu0 %v1292
        %v1907 = vpop.f32.mrf.mxu0
        %v1908 = vadd.f32 0.0, %v1907
        %v1909 = vpop.f32.mrf.mxu0
        %v1910 = vadd.f32 0.0, %v1909
        %1911 = vmatmul.bf16.gmra.mxu0 %v1295
        %v1912 = vpop.f32.mrf.mxu0
        %v1913 = vadd.f32 0.0, %v1912
        %v1914 = vpop.f32.mrf.mxu0
        %v1915 = vadd.f32 0.0, %v1914
        %1916 = vmatmul.bf16.gmra.mxu0 %v1298
        %v1917 = vpop.f32.mrf.mxu0
        %v1918 = vadd.f32 0.0, %v1917
        %v1919 = vpop.f32.mrf.mxu0
        %v1920 = vadd.f32 0.0, %v1919
        %1921 = vmatmul.bf16.gmra.mxu0 %v1301
        %v1922 = vpop.f32.mrf.mxu0
        %v1923 = vadd.f32 0.0, %v1922
        %v1924 = vpop.f32.mrf.mxu0
        %v1925 = vadd.f32 0.0, %v1924
        %1926 = vmatmul.bf16.gmra.mxu0 %v1304
        %v1927 = vpop.f32.mrf.mxu0
        %v1928 = vadd.f32 0.0, %v1927
        %v1929 = vpop.f32.mrf.mxu0
        %v1930 = vadd.f32 0.0, %v1929
        %1931 = vmatmul.bf16.gmra.mxu0 %v1307
        %v1932 = vpop.f32.mrf.mxu0
        %v1933 = vadd.f32 0.0, %v1932
        %v1934 = vpop.f32.mrf.mxu0
        %v1935 = vadd.f32 0.0, %v1934
        %1936 = vdwg.mxu0
        %v1937 = vadd.f32 %v1867, %v1898
        %v1938 = vadd.f32 %v1868, %v1900
        %v1939 = vadd.f32 %v1869, %v1903
        %v1940 = vadd.f32 %v1870, %v1905
        %v1941 = vadd.f32 %v1871, %v1908
        %v1942 = vadd.f32 %v1872, %v1910
        %v1943 = vadd.f32 %v1873, %v1913
        %v1944 = vadd.f32 %v1874, %v1915
        %v1945 = vadd.f32 %v1875, %v1918
        %v1946 = vadd.f32 %v1876, %v1920
        %v1947 = vadd.f32 %v1877, %v1923
        %v1948 = vadd.f32 %v1878, %v1925
        %v1949 = vadd.f32 %v1879, %v1928
        %v1950 = vadd.f32 %v1880, %v1930
        %v1951 = vadd.f32 %v1881, %v1933
        %v1952 = vadd.f32 %v1882, %v1935
        %v1953 = vsel %vm341, %v1937, 0.0
        %v1954 = vsel %vm341, %v1938, 0.0
        %v1955 = vadd.f32 %v1953, %v1954
        %v1956 = vsel %vm341, %v1939, 0.0
        %v1957 = vadd.f32 %v1955, %v1956
        %v1958 = vsel %vm341, %v1940, 0.0
        %v1959 = vadd.f32 %v1957, %v1958
        %v1960 = vsel %vm341, %v1941, 0.0
        %v1961 = vadd.f32 %v1959, %v1960
        %v1962 = vsel %vm341, %v1942, 0.0
        %v1963 = vadd.f32 %v1961, %v1962
        %v1964 = vsel %vm341, %v1943, 0.0
        %v1965 = vadd.f32 %v1963, %v1964
        %v1966 = vsel %vm341, %v1944, 0.0
        %v1967 = vadd.f32 %v1965, %v1966
        %v1968 = vsel %vm341, %v1945, 0.0
        %v1969 = vadd.f32 %v1967, %v1968
        %v1970 = vsel %vm341, %v1946, 0.0
        %v1971 = vadd.f32 %v1969, %v1970
        %v1972 = vsel %vm341, %v1947, 0.0
        %v1973 = vadd.f32 %v1971, %v1972
        %v1974 = vsel %vm341, %v1948, 0.0
        %v1975 = vadd.f32 %v1973, %v1974
        %v1976 = vsel %vm341, %v1949, 0.0
        %v1977 = vadd.f32 %v1975, %v1976
        %v1978 = vsel %vm341, %v1950, 0.0
        %v1979 = vadd.f32 %v1977, %v1978
        %v1980 = vsel %vm341, %v1951, 0.0
        %v1981 = vadd.f32 %v1979, %v1980
        %v1982 = vsel %vm341, %v1952, 0.0
        %v1983 = vadd.f32 %v1981, %v1982
        %v1984 = vrot.slane %v1983, 4
        %v1985 = vadd.f32 %v1983, %v1984
        %v1986 = vrot.slane %v1985, 2
        %v1987 = vadd.f32 %v1985, %v1986
        %v1988 = vrot.slane %v1987, 1
        %v1989 = vadd.f32 %v1987, %v1988
        %v1990 = vmul.f32 %v1989, %v1538
        %v1991 = vsub.f32 %v1937, %v1990
        %v1992 = vsub.f32 %v1938, %v1990
        %v1993 = vsub.f32 %v1939, %v1990
        %v1994 = vsub.f32 %v1940, %v1990
        %v1995 = vsub.f32 %v1941, %v1990
        %v1996 = vsub.f32 %v1942, %v1990
        %v1997 = vsub.f32 %v1943, %v1990
        %v1998 = vsub.f32 %v1944, %v1990
        %v1999 = vsub.f32 %v1945, %v1990
        %v2000 = vsub.f32 %v1946, %v1990
        %v2001 = vsub.f32 %v1947, %v1990
        %v2002 = vsub.f32 %v1948, %v1990
        %v2003 = vsub.f32 %v1949, %v1990
        %v2004 = vsub.f32 %v1950, %v1990
        %v2005 = vsub.f32 %v1951, %v1990
        %v2006 = vsub.f32 %v1952, %v1990
        %v2007 = vmul.f32 %v1991, %v1991
        %v2008 = vmul.f32 %v1992, %v1992
        %v2009 = vmul.f32 %v1993, %v1993
        %v2010 = vmul.f32 %v1994, %v1994
        %v2011 = vmul.f32 %v1995, %v1995
        %v2012 = vmul.f32 %v1996, %v1996
        %v2013 = vmul.f32 %v1997, %v1997
        %v2014 = vmul.f32 %v1998, %v1998
        %v2015 = vmul.f32 %v1999, %v1999
        %v2016 = vmul.f32 %v2000, %v2000
        %v2017 = vmul.f32 %v2001, %v2001
        %v2018 = vmul.f32 %v2002, %v2002
        %v2019 = vmul.f32 %v2003, %v2003
        %v2020 = vmul.f32 %v2004, %v2004
        %v2021 = vmul.f32 %v2005, %v2005
        %v2022 = vmul.f32 %v2006, %v2006
        %v2023 = vsel %vm341, %v2007, 0.0
        %v2024 = vsel %vm341, %v2008, 0.0
        %v2025 = vadd.f32 %v2023, %v2024
        %v2026 = vsel %vm341, %v2009, 0.0
        %v2027 = vadd.f32 %v2025, %v2026
        %v2028 = vsel %vm341, %v2010, 0.0
        %v2029 = vadd.f32 %v2027, %v2028
        %v2030 = vsel %vm341, %v2011, 0.0
        %v2031 = vadd.f32 %v2029, %v2030
        %v2032 = vsel %vm341, %v2012, 0.0
        %v2033 = vadd.f32 %v2031, %v2032
        %v2034 = vsel %vm341, %v2013, 0.0
        %v2035 = vadd.f32 %v2033, %v2034
        %v2036 = vsel %vm341, %v2014, 0.0
        %v2037 = vadd.f32 %v2035, %v2036
        %v2038 = vsel %vm341, %v2015, 0.0
        %v2039 = vadd.f32 %v2037, %v2038
        %v2040 = vsel %vm341, %v2016, 0.0
        %v2041 = vadd.f32 %v2039, %v2040
        %v2042 = vsel %vm341, %v2017, 0.0
        %v2043 = vadd.f32 %v2041, %v2042
        %v2044 = vsel %vm341, %v2018, 0.0
        %v2045 = vadd.f32 %v2043, %v2044
        %v2046 = vsel %vm341, %v2019, 0.0
        %v2047 = vadd.f32 %v2045, %v2046
        %v2048 = vsel %vm341, %v2020, 0.0
        %v2049 = vadd.f32 %v2047, %v2048
        %v2050 = vsel %vm341, %v2021, 0.0
        %v2051 = vadd.f32 %v2049, %v2050
        %v2052 = vsel %vm341, %v2022, 0.0
        %v2053 = vadd.f32 %v2051, %v2052
        %v2054 = vrot.slane %v2053, 4
        %v2055 = vadd.f32 %v2053, %v2054
        %v2056 = vrot.slane %v2055, 2
        %v2057 = vadd.f32 %v2055, %v2056
        %v2058 = vrot.slane %v2057, 1
        %v2059 = vadd.f32 %v2057, %v2058
        %s2060 = scalar_lea.vmem [#allocation3], 32
        %v2061 = vld [vmem:[%s2060 + $0x1] sm:$0xff]
        %v2062 = vld [vmem:[%s2060 + $0x11] sm:$0xff]
        %v2063 = vld [vmem:[%s2060 + $0x21] sm:$0xff]
        %v2064 = vld [vmem:[%s2060 + $0x31] sm:$0xff]
        %v2065 = vld [vmem:[%s2060 + $0x41] sm:$0xff]
        %v2066 = vld [vmem:[%s2060 + $0x51] sm:$0xff]
        %v2067 = vld [vmem:[%s2060 + $0x61] sm:$0xff]
        %v2068 = vld [vmem:[%s2060 + $0x71] sm:$0xff]
        %v2069 = vld [vmem:[%s2060 + $0xa1] sm:$0xff]
        %v2070 = vld [vmem:[%s2060 + $0xb1] sm:$0xff]
        %v2071 = vld [vmem:[%s2060 + $0xc1] sm:$0xff]
        %v2072 = vld [vmem:[%s2060 + $0xd1] sm:$0xff]
        %v2073 = vld [vmem:[%s2060 + $0xe1] sm:$0xff]
        %v2074 = vld [vmem:[%s2060 + $0xf1] sm:$0xff]
        %v2075 = vld [vmem:[%s2060 + $0x101] sm:$0xff]
        %v2076 = vld [vmem:[%s2060 + $0x111] sm:$0xff]
        %v2077 = vpack.c.bf16 %v2062, %v2061
        %v2078 = vpack.c.bf16 %v2064, %v2063
        %v2079 = vpack.c.bf16 %v2066, %v2065
        %v2080 = vpack.c.bf16 %v2068, %v2067
        %v2081 = vpack.c.bf16 %v2070, %v2069
        %v2082 = vpack.c.bf16 %v2072, %v2071
        %v2083 = vpack.c.bf16 %v2074, %v2073
        %v2084 = vpack.c.bf16 %v2076, %v2075
        %s2085 = scalar_lea.vmem %s2, 32
        %v2086 = vld [vmem:[%s2085] sm:$0xf]
        %v2087 = vld [vmem:[%s2060] sm:$0xff]
        %v2088 = vld [vmem:[%s2060 + $0x10] sm:$0xff]
        %v2089 = vld [vmem:[%s2060 + $0x20] sm:$0xff]
        %v2090 = vld [vmem:[%s2060 + $0x30] sm:$0xff]
        %v2091 = vld [vmem:[%s2060 + $0x40] sm:$0xff]
        %v2092 = vld [vmem:[%s2060 + $0x50] sm:$0xff]
        %v2093 = vld [vmem:[%s2060 + $0x60] sm:$0xff]
        %v2094 = vld [vmem:[%s2060 + $0x70] sm:$0xff]
        %v2095 = vld [vmem:[%s2060 + $0xa0] sm:$0xff]
        %v2096 = vld [vmem:[%s2060 + $0xb0] sm:$0xff]
        %v2097 = vld [vmem:[%s2060 + $0xc0] sm:$0xff]
        %v2098 = vld [vmem:[%s2060 + $0xd0] sm:$0xff]
        %v2099 = vld [vmem:[%s2060 + $0xe0] sm:$0xff]
        %v2100 = vld [vmem:[%s2060 + $0xf0] sm:$0xff]
        %v2101 = vld [vmem:[%s2060 + $0x100] sm:$0xff]
        %v2102 = vld [vmem:[%s2060 + $0x110] sm:$0xff]
        %v2103 = vpack.c.bf16 %v2088, %v2087
        %v2104 = vpack.c.bf16 %v2090, %v2089
        %v2105 = vpack.c.bf16 %v2092, %v2091
        %v2106 = vpack.c.bf16 %v2094, %v2093
        %v2107 = vpack.c.bf16 %v2096, %v2095
        %v2108 = vpack.c.bf16 %v2098, %v2097
        %v2109 = vpack.c.bf16 %v2100, %v2099
        %v2110 = vpack.c.bf16 %v2102, %v2101
        %s2111 = scalar_lea.vmem %s2, 36
        %v2112 = vld [vmem:[%s2111] sm:$0xf]
        %v2114 = vsel %vm934, %v2103, 0
        %v2117 = vsel %vm934, %v2104, 0
        %v2120 = vsel %vm934, %v2105, 0
        %v2123 = vsel %vm934, %v2106, 0
        %v2126 = vsel %vm934, %v2107, 0
        %v2129 = vsel %vm934, %v2108, 0
        %v2132 = vsel %vm934, %v2109, 0
        %v2135 = vsel %vm934, %v2110, 0
        %v2138 = vsel %vm1130, %v2112, 0
        %2140 = vmatpush.bf16.msra.mxu0 0
        %2141 = vmatpush.bf16.msra.mxu0 0
        %2142 = vmatpush.bf16.msra.mxu0 0
        %2143 = vmatpush.bf16.msra.mxu0 0
        %2144 = vmatpush.bf16.msra.mxu0 0
        %2145 = vmatpush.bf16.msra.mxu0 0
        %2146 = vmatpush.bf16.msra.mxu0 0
        %2147 = vmatpush.bf16.msra.mxu0 %v2138
        %2148 = vmatmul.bf16.gmra.mxu0 %v2114
        %v2149 = vpop.f32.mrf.mxu0
        %v2150 = vadd.f32 0.0, %v2149
        %v2151 = vpop.f32.mrf.mxu0
        %v2152 = vadd.f32 0.0, %v2151
        %2153 = vmatmul.bf16.gmra.mxu0 %v2117
        %v2154 = vpop.f32.mrf.mxu0
        %v2155 = vadd.f32 0.0, %v2154
        %v2156 = vpop.f32.mrf.mxu0
        %v2157 = vadd.f32 0.0, %v2156
        %2158 = vmatmul.bf16.gmra.mxu0 %v2120
        %v2159 = vpop.f32.mrf.mxu0
        %v2160 = vadd.f32 0.0, %v2159
        %v2161 = vpop.f32.mrf.mxu0
        %v2162 = vadd.f32 0.0, %v2161
        %2163 = vmatmul.bf16.gmra.mxu0 %v2123
        %v2164 = vpop.f32.mrf.mxu0
        %v2165 = vadd.f32 0.0, %v2164
        %v2166 = vpop.f32.mrf.mxu0
        %v2167 = vadd.f32 0.0, %v2166
        %2168 = vmatmul.bf16.gmra.mxu0 %v2126
        %v2169 = vpop.f32.mrf.mxu0
        %v2170 = vadd.f32 0.0, %v2169
        %v2171 = vpop.f32.mrf.mxu0
        %v2172 = vadd.f32 0.0, %v2171
        %2173 = vmatmul.bf16.gmra.mxu0 %v2129
        %v2174 = vpop.f32.mrf.mxu0
        %v2175 = vadd.f32 0.0, %v2174
        %v2176 = vpop.f32.mrf.mxu0
        %v2177 = vadd.f32 0.0, %v2176
        %2178 = vmatmul.bf16.gmra.mxu0 %v2132
        %v2179 = vpop.f32.mrf.mxu0
        %v2180 = vadd.f32 0.0, %v2179
        %v2181 = vpop.f32.mrf.mxu0
        %v2182 = vadd.f32 0.0, %v2181
        %2183 = vmatmul.bf16.gmra.mxu0 %v2135
        %v2184 = vpop.f32.mrf.mxu0
        %v2185 = vadd.f32 0.0, %v2184
        %v2186 = vpop.f32.mrf.mxu0
        %v2187 = vadd.f32 0.0, %v2186
        %2188 = vdwg.mxu0
        %v2190 = vsel %vm934, %v2077, 0
        %v2193 = vsel %vm934, %v2078, 0
        %v2196 = vsel %vm934, %v2079, 0
        %v2199 = vsel %vm934, %v2080, 0
        %v2202 = vsel %vm934, %v2081, 0
        %v2205 = vsel %vm934, %v2082, 0
        %v2208 = vsel %vm934, %v2083, 0
        %v2211 = vsel %vm934, %v2084, 0
        %v2214 = vsel %vm1130, %v2086, 0
        %2216 = vmatpush.bf16.msra.mxu0 0
        %2217 = vmatpush.bf16.msra.mxu0 0
        %2218 = vmatpush.bf16.msra.mxu0 0
        %2219 = vmatpush.bf16.msra.mxu0 0
        %2220 = vmatpush.bf16.msra.mxu0 0
        %2221 = vmatpush.bf16.msra.mxu0 0
        %2222 = vmatpush.bf16.msra.mxu0 0
        %2223 = vmatpush.bf16.msra.mxu0 %v2214
        %2224 = vmatmul.bf16.gmra.mxu0 %v2190
        %v2225 = vpop.f32.mrf.mxu0
        %v2226 = vadd.f32 %v2150, %v2225
        %v2227 = vpop.f32.mrf.mxu0
        %v2228 = vadd.f32 %v2152, %v2227
        %2229 = vmatmul.bf16.gmra.mxu0 %v2193
        %v2230 = vpop.f32.mrf.mxu0
        %v2231 = vadd.f32 %v2155, %v2230
        %v2232 = vpop.f32.mrf.mxu0
        %v2233 = vadd.f32 %v2157, %v2232
        %2234 = vmatmul.bf16.gmra.mxu0 %v2196
        %v2235 = vpop.f32.mrf.mxu0
        %v2236 = vadd.f32 %v2160, %v2235
        %v2237 = vpop.f32.mrf.mxu0
        %v2238 = vadd.f32 %v2162, %v2237
        %2239 = vmatmul.bf16.gmra.mxu0 %v2199
        %v2240 = vpop.f32.mrf.mxu0
        %v2241 = vadd.f32 %v2165, %v2240
        %v2242 = vpop.f32.mrf.mxu0
        %v2243 = vadd.f32 %v2167, %v2242
        %2244 = vmatmul.bf16.gmra.mxu0 %v2202
        %v2245 = vpop.f32.mrf.mxu0
        %v2246 = vadd.f32 %v2170, %v2245
        %v2247 = vpop.f32.mrf.mxu0
        %v2248 = vadd.f32 %v2172, %v2247
        %2249 = vmatmul.bf16.gmra.mxu0 %v2205
        %v2250 = vpop.f32.mrf.mxu0
        %v2251 = vadd.f32 %v2175, %v2250
        %v2252 = vpop.f32.mrf.mxu0
        %v2253 = vadd.f32 %v2177, %v2252
        %2254 = vmatmul.bf16.gmra.mxu0 %v2208
        %v2255 = vpop.f32.mrf.mxu0
        %v2256 = vadd.f32 %v2180, %v2255
        %v2257 = vpop.f32.mrf.mxu0
        %v2258 = vadd.f32 %v2182, %v2257
        %2259 = vmatmul.bf16.gmra.mxu0 %v2211
        %v2260 = vpop.f32.mrf.mxu0
        %v2261 = vadd.f32 %v2185, %v2260
        %v2262 = vpop.f32.mrf.mxu0
        %v2263 = vadd.f32 %v2187, %v2262
        %2264 = vdwg.mxu0
        %s2265 = scalar_lea.vmem %s2, 40
        %v2266 = vld [vmem:[%s2265] sm:$0xf]
        %v2268 = vsel %vm1130, %v2266, 0
        %2270 = vmatpush.bf16.msra.mxu0 0
        %2271 = vmatpush.bf16.msra.mxu0 0
        %2272 = vmatpush.bf16.msra.mxu0 0
        %2273 = vmatpush.bf16.msra.mxu0 0
        %2274 = vmatpush.bf16.msra.mxu0 0
        %2275 = vmatpush.bf16.msra.mxu0 0
        %2276 = vmatpush.bf16.msra.mxu0 0
        %2277 = vmatpush.bf16.msra.mxu0 %v2268
        %2278 = vmatmul.bf16.gmra.mxu0 %v1184
        %v2279 = vpop.f32.mrf.mxu0
        %v2280 = vadd.f32 0.0, %v2279
        %v2281 = vpop.f32.mrf.mxu0
        %v2282 = vadd.f32 0.0, %v2281
        %2283 = vmatmul.bf16.gmra.mxu0 %v1187
        %v2284 = vpop.f32.mrf.mxu0
        %v2285 = vadd.f32 0.0, %v2284
        %v2286 = vpop.f32.mrf.mxu0
        %v2287 = vadd.f32 0.0, %v2286
        %2288 = vmatmul.bf16.gmra.mxu0 %v1190
        %v2289 = vpop.f32.mrf.mxu0
        %v2290 = vadd.f32 0.0, %v2289
        %v2291 = vpop.f32.mrf.mxu0
        %v2292 = vadd.f32 0.0, %v2291
        %2293 = vmatmul.bf16.gmra.mxu0 %v1193
        %v2294 = vpop.f32.mrf.mxu0
        %v2295 = vadd.f32 0.0, %v2294
        %v2296 = vpop.f32.mrf.mxu0
        %v2297 = vadd.f32 0.0, %v2296
        %2298 = vmatmul.bf16.gmra.mxu0 %v1196
        %v2299 = vpop.f32.mrf.mxu0
        %v2300 = vadd.f32 0.0, %v2299
        %v2301 = vpop.f32.mrf.mxu0
        %v2302 = vadd.f32 0.0, %v2301
        %2303 = vmatmul.bf16.gmra.mxu0 %v1199
        %v2304 = vpop.f32.mrf.mxu0
        %v2305 = vadd.f32 0.0, %v2304
        %v2306 = vpop.f32.mrf.mxu0
        %v2307 = vadd.f32 0.0, %v2306
        %2308 = vmatmul.bf16.gmra.mxu0 %v1202
        %v2309 = vpop.f32.mrf.mxu0
        %v2310 = vadd.f32 0.0, %v2309
        %v2311 = vpop.f32.mrf.mxu0
        %v2312 = vadd.f32 0.0, %v2311
        %2313 = vmatmul.bf16.gmra.mxu0 %v1205
        %v2314 = vpop.f32.mrf.mxu0
        %v2315 = vadd.f32 0.0, %v2314
        %v2316 = vpop.f32.mrf.mxu0
        %v2317 = vadd.f32 0.0, %v2316
        %2318 = vdwg.mxu0
        %v2319 = vadd.f32 %v2226, %v2280
        %v2320 = vadd.f32 %v2228, %v2282
        %v2321 = vadd.f32 %v2231, %v2285
        %v2322 = vadd.f32 %v2233, %v2287
        %v2323 = vadd.f32 %v2236, %v2290
        %v2324 = vadd.f32 %v2238, %v2292
        %v2325 = vadd.f32 %v2241, %v2295
        %v2326 = vadd.f32 %v2243, %v2297
        %v2327 = vadd.f32 %v2246, %v2300
        %v2328 = vadd.f32 %v2248, %v2302
        %v2329 = vadd.f32 %v2251, %v2305
        %v2330 = vadd.f32 %v2253, %v2307
        %v2331 = vadd.f32 %v2256, %v2310
        %v2332 = vadd.f32 %v2258, %v2312
        %v2333 = vadd.f32 %v2261, %v2315
        %v2334 = vadd.f32 %v2263, %v2317
        %s2335 = scalar_lea.vmem %s2, 44
        %v2336 = vld [vmem:[%s2335] sm:$0xf]
        %v2338 = vsel %vm1130, %v2336, 0
        %2340 = vmatpush.bf16.msra.mxu0 0
        %2341 = vmatpush.bf16.msra.mxu0 0
        %2342 = vmatpush.bf16.msra.mxu0 0
        %2343 = vmatpush.bf16.msra.mxu0 0
        %2344 = vmatpush.bf16.msra.mxu0 0
        %2345 = vmatpush.bf16.msra.mxu0 0
        %2346 = vmatpush.bf16.msra.mxu0 0
        %2347 = vmatpush.bf16.msra.mxu0 %v2338
        %2348 = vmatmul.bf16.gmra.mxu0 %v1107
        %v2349 = vpop.f32.mrf.mxu0
        %v2350 = vadd.f32 0.0, %v2349
        %v2351 = vpop.f32.mrf.mxu0
        %v2352 = vadd.f32 0.0, %v2351
        %2353 = vmatmul.bf16.gmra.mxu0 %v1110
        %v2354 = vpop.f32.mrf.mxu0
        %v2355 = vadd.f32 0.0, %v2354
        %v2356 = vpop.f32.mrf.mxu0
        %v2357 = vadd.f32 0.0, %v2356
        %2358 = vmatmul.bf16.gmra.mxu0 %v1113
        %v2359 = vpop.f32.mrf.mxu0
        %v2360 = vadd.f32 0.0, %v2359
        %v2361 = vpop.f32.mrf.mxu0
        %v2362 = vadd.f32 0.0, %v2361
        %2363 = vmatmul.bf16.gmra.mxu0 %v1116
        %v2364 = vpop.f32.mrf.mxu0
        %v2365 = vadd.f32 0.0, %v2364
        %v2366 = vpop.f32.mrf.mxu0
        %v2367 = vadd.f32 0.0, %v2366
        %2368 = vmatmul.bf16.gmra.mxu0 %v1119
        %v2369 = vpop.f32.mrf.mxu0
        %v2370 = vadd.f32 0.0, %v2369
        %v2371 = vpop.f32.mrf.mxu0
        %v2372 = vadd.f32 0.0, %v2371
        %2373 = vmatmul.bf16.gmra.mxu0 %v1122
        %v2374 = vpop.f32.mrf.mxu0
        %v2375 = vadd.f32 0.0, %v2374
        %v2376 = vpop.f32.mrf.mxu0
        %v2377 = vadd.f32 0.0, %v2376
        %2378 = vmatmul.bf16.gmra.mxu0 %v1125
        %v2379 = vpop.f32.mrf.mxu0
        %v2380 = vadd.f32 0.0, %v2379
        %v2381 = vpop.f32.mrf.mxu0
        %v2382 = vadd.f32 0.0, %v2381
        %2383 = vmatmul.bf16.gmra.mxu0 %v1128
        %v2384 = vpop.f32.mrf.mxu0
        %v2385 = vadd.f32 0.0, %v2384
        %v2386 = vpop.f32.mrf.mxu0
        %v2387 = vadd.f32 0.0, %v2386
        %2388 = vdwg.mxu0
        %v2389 = vadd.f32 %v2319, %v2350
        %v2390 = vadd.f32 %v2320, %v2352
        %v2391 = vadd.f32 %v2321, %v2355
        %v2392 = vadd.f32 %v2322, %v2357
        %v2393 = vadd.f32 %v2323, %v2360
        %v2394 = vadd.f32 %v2324, %v2362
        %v2395 = vadd.f32 %v2325, %v2365
        %v2396 = vadd.f32 %v2326, %v2367
        %v2397 = vadd.f32 %v2327, %v2370
        %v2398 = vadd.f32 %v2328, %v2372
        %v2399 = vadd.f32 %v2329, %v2375
        %v2400 = vadd.f32 %v2330, %v2377
        %v2401 = vadd.f32 %v2331, %v2380
        %v2402 = vadd.f32 %v2332, %v2382
        %v2403 = vadd.f32 %v2333, %v2385
        %v2404 = vadd.f32 %v2334, %v2387
        %v2405 = vsel %vm341, %v2389, 0.0
        %v2406 = vsel %vm341, %v2390, 0.0
        %v2407 = vadd.f32 %v2405, %v2406
        %v2408 = vsel %vm341, %v2391, 0.0
        %v2409 = vadd.f32 %v2407, %v2408
        %v2410 = vsel %vm341, %v2392, 0.0
        %v2411 = vadd.f32 %v2409, %v2410
        %v2412 = vsel %vm341, %v2393, 0.0
        %v2413 = vadd.f32 %v2411, %v2412
        %v2414 = vsel %vm341, %v2394, 0.0
        %v2415 = vadd.f32 %v2413, %v2414
        %v2416 = vsel %vm341, %v2395, 0.0
        %v2417 = vadd.f32 %v2415, %v2416
        %v2418 = vsel %vm341, %v2396, 0.0
        %v2419 = vadd.f32 %v2417, %v2418
        %v2420 = vsel %vm341, %v2397, 0.0
        %v2421 = vadd.f32 %v2419, %v2420
        %v2422 = vsel %vm341, %v2398, 0.0
        %v2423 = vadd.f32 %v2421, %v2422
        %v2424 = vsel %vm341, %v2399, 0.0
        %v2425 = vadd.f32 %v2423, %v2424
        %v2426 = vsel %vm341, %v2400, 0.0
        %v2427 = vadd.f32 %v2425, %v2426
        %v2428 = vsel %vm341, %v2401, 0.0
        %v2429 = vadd.f32 %v2427, %v2428
        %v2430 = vsel %vm341, %v2402, 0.0
        %v2431 = vadd.f32 %v2429, %v2430
        %v2432 = vsel %vm341, %v2403, 0.0
        %v2433 = vadd.f32 %v2431, %v2432
        %v2434 = vsel %vm341, %v2404, 0.0
        %v2435 = vadd.f32 %v2433, %v2434
        %v2436 = vrot.slane %v2435, 4
        %v2437 = vadd.f32 %v2435, %v2436
        %v2438 = vrot.slane %v2437, 2
        %v2439 = vadd.f32 %v2437, %v2438
        %v2440 = vrot.slane %v2439, 1
        %v2441 = vadd.f32 %v2439, %v2440
        %v2442 = vmul.f32 %v2441, %v1538
        %v2443 = vsub.f32 %v2389, %v2442
        %v2444 = vsub.f32 %v2390, %v2442
        %v2445 = vsub.f32 %v2391, %v2442
        %v2446 = vsub.f32 %v2392, %v2442
        %v2447 = vsub.f32 %v2393, %v2442
        %v2448 = vsub.f32 %v2394, %v2442
        %v2449 = vsub.f32 %v2395, %v2442
        %v2450 = vsub.f32 %v2396, %v2442
        %v2451 = vsub.f32 %v2397, %v2442
        %v2452 = vsub.f32 %v2398, %v2442
        %v2453 = vsub.f32 %v2399, %v2442
        %v2454 = vsub.f32 %v2400, %v2442
        %v2455 = vsub.f32 %v2401, %v2442
        %v2456 = vsub.f32 %v2402, %v2442
        %v2457 = vsub.f32 %v2403, %v2442
        %v2458 = vsub.f32 %v2404, %v2442
        %v2459 = vmul.f32 %v2443, %v2443
        %v2460 = vmul.f32 %v2444, %v2444
        %v2461 = vmul.f32 %v2445, %v2445
        %v2462 = vmul.f32 %v2446, %v2446
        %v2463 = vmul.f32 %v2447, %v2447
        %v2464 = vmul.f32 %v2448, %v2448
        %v2465 = vmul.f32 %v2449, %v2449
        %v2466 = vmul.f32 %v2450, %v2450
        %v2467 = vmul.f32 %v2451, %v2451
        %v2468 = vmul.f32 %v2452, %v2452
        %v2469 = vmul.f32 %v2453, %v2453
        %v2470 = vmul.f32 %v2454, %v2454
        %v2471 = vmul.f32 %v2455, %v2455
        %v2472 = vmul.f32 %v2456, %v2456
        %v2473 = vmul.f32 %v2457, %v2457
        %v2474 = vmul.f32 %v2458, %v2458
        %v2475 = vsel %vm341, %v2459, 0.0
        %v2476 = vsel %vm341, %v2460, 0.0
        %v2477 = vadd.f32 %v2475, %v2476
        %v2478 = vsel %vm341, %v2461, 0.0
        %v2479 = vadd.f32 %v2477, %v2478
        %v2480 = vsel %vm341, %v2462, 0.0
        %v2481 = vadd.f32 %v2479, %v2480
        %v2482 = vsel %vm341, %v2463, 0.0
        %v2483 = vadd.f32 %v2481, %v2482
        %v2484 = vsel %vm341, %v2464, 0.0
        %v2485 = vadd.f32 %v2483, %v2484
        %v2486 = vsel %vm341, %v2465, 0.0
        %v2487 = vadd.f32 %v2485, %v2486
        %v2488 = vsel %vm341, %v2466, 0.0
        %v2489 = vadd.f32 %v2487, %v2488
        %v2490 = vsel %vm341, %v2467, 0.0
        %v2491 = vadd.f32 %v2489, %v2490
        %v2492 = vsel %vm341, %v2468, 0.0
        %v2493 = vadd.f32 %v2491, %v2492
        %v2494 = vsel %vm341, %v2469, 0.0
        %v2495 = vadd.f32 %v2493, %v2494
        %v2496 = vsel %vm341, %v2470, 0.0
        %v2497 = vadd.f32 %v2495, %v2496
        %v2498 = vsel %vm341, %v2471, 0.0
        %v2499 = vadd.f32 %v2497, %v2498
        %v2500 = vsel %vm341, %v2472, 0.0
        %v2501 = vadd.f32 %v2499, %v2500
        %v2502 = vsel %vm341, %v2473, 0.0
        %v2503 = vadd.f32 %v2501, %v2502
        %v2504 = vsel %vm341, %v2474, 0.0
        %v2505 = vadd.f32 %v2503, %v2504
        %v2506 = vrot.slane %v2505, 4
        %v2507 = vadd.f32 %v2505, %v2506
        %v2508 = vrot.slane %v2507, 2
        %v2509 = vadd.f32 %v2507, %v2508
        %v2510 = vrot.slane %v2509, 1
        %v2511 = vadd.f32 %v2509, %v2510
        %v2512 = vld [vmem:[%s2060 + $0x2] sm:$0xff]
        %v2513 = vld [vmem:[%s2060 + $0x12] sm:$0xff]
        %v2514 = vld [vmem:[%s2060 + $0x22] sm:$0xff]
        %v2515 = vld [vmem:[%s2060 + $0x32] sm:$0xff]
        %v2516 = vld [vmem:[%s2060 + $0x42] sm:$0xff]
        %v2517 = vld [vmem:[%s2060 + $0x52] sm:$0xff]
        %v2518 = vld [vmem:[%s2060 + $0x62] sm:$0xff]
        %v2519 = vld [vmem:[%s2060 + $0x72] sm:$0xff]
        %v2520 = vld [vmem:[%s2060 + $0xa2] sm:$0xff]
        %v2521 = vld [vmem:[%s2060 + $0xb2] sm:$0xff]
        %v2522 = vld [vmem:[%s2060 + $0xc2] sm:$0xff]
        %v2523 = vld [vmem:[%s2060 + $0xd2] sm:$0xff]
        %v2524 = vld [vmem:[%s2060 + $0xe2] sm:$0xff]
        %v2525 = vld [vmem:[%s2060 + $0xf2] sm:$0xff]
        %v2526 = vld [vmem:[%s2060 + $0x102] sm:$0xff]
        %v2527 = vld [vmem:[%s2060 + $0x112] sm:$0xff]
        %v2528 = vpack.c.bf16 %v2513, %v2512
        %v2529 = vpack.c.bf16 %v2515, %v2514
        %v2530 = vpack.c.bf16 %v2517, %v2516
        %v2531 = vpack.c.bf16 %v2519, %v2518
        %v2532 = vpack.c.bf16 %v2521, %v2520
        %v2533 = vpack.c.bf16 %v2523, %v2522
        %v2534 = vpack.c.bf16 %v2525, %v2524
        %v2535 = vpack.c.bf16 %v2527, %v2526
        %s2536 = scalar_lea.vmem %s2, 48
        %v2537 = vld [vmem:[%s2536] sm:$0xf]
        %s2538 = scalar_lea.vmem %s2, 52
        %v2539 = vld [vmem:[%s2538] sm:$0xf]
        %v2541 = vsel %vm1130, %v2539, 0
        %2543 = vmatpush.bf16.msra.mxu0 0
        %2544 = vmatpush.bf16.msra.mxu0 0
        %2545 = vmatpush.bf16.msra.mxu0 0
        %2546 = vmatpush.bf16.msra.mxu0 0
        %2547 = vmatpush.bf16.msra.mxu0 0
        %2548 = vmatpush.bf16.msra.mxu0 0
        %2549 = vmatpush.bf16.msra.mxu0 0
        %2550 = vmatpush.bf16.msra.mxu0 %v2541
        %2551 = vmatmul.bf16.gmra.mxu0 %v2190
        %v2552 = vpop.f32.mrf.mxu0
        %v2553 = vadd.f32 0.0, %v2552
        %v2554 = vpop.f32.mrf.mxu0
        %v2555 = vadd.f32 0.0, %v2554
        %2556 = vmatmul.bf16.gmra.mxu0 %v2193
        %v2557 = vpop.f32.mrf.mxu0
        %v2558 = vadd.f32 0.0, %v2557
        %v2559 = vpop.f32.mrf.mxu0
        %v2560 = vadd.f32 0.0, %v2559
        %2561 = vmatmul.bf16.gmra.mxu0 %v2196
        %v2562 = vpop.f32.mrf.mxu0
        %v2563 = vadd.f32 0.0, %v2562
        %v2564 = vpop.f32.mrf.mxu0
        %v2565 = vadd.f32 0.0, %v2564
        %2566 = vmatmul.bf16.gmra.mxu0 %v2199
        %v2567 = vpop.f32.mrf.mxu0
        %v2568 = vadd.f32 0.0, %v2567
        %v2569 = vpop.f32.mrf.mxu0
        %v2570 = vadd.f32 0.0, %v2569
        %2571 = vmatmul.bf16.gmra.mxu0 %v2202
        %v2572 = vpop.f32.mrf.mxu0
        %v2573 = vadd.f32 0.0, %v2572
        %v2574 = vpop.f32.mrf.mxu0
        %v2575 = vadd.f32 0.0, %v2574
        %2576 = vmatmul.bf16.gmra.mxu0 %v2205
        %v2577 = vpop.f32.mrf.mxu0
        %v2578 = vadd.f32 0.0, %v2577
        %v2579 = vpop.f32.mrf.mxu0
        %v2580 = vadd.f32 0.0, %v2579
        %2581 = vmatmul.bf16.gmra.mxu0 %v2208
        %v2582 = vpop.f32.mrf.mxu0
        %v2583 = vadd.f32 0.0, %v2582
        %v2584 = vpop.f32.mrf.mxu0
        %v2585 = vadd.f32 0.0, %v2584
        %2586 = vmatmul.bf16.gmra.mxu0 %v2211
        %v2587 = vpop.f32.mrf.mxu0
        %v2588 = vadd.f32 0.0, %v2587
        %v2589 = vpop.f32.mrf.mxu0
        %v2590 = vadd.f32 0.0, %v2589
        %2591 = vdwg.mxu0
        %v2593 = vsel %vm934, %v2528, 0
        %v2596 = vsel %vm934, %v2529, 0
        %v2599 = vsel %vm934, %v2530, 0
        %v2602 = vsel %vm934, %v2531, 0
        %v2605 = vsel %vm934, %v2532, 0
        %v2608 = vsel %vm934, %v2533, 0
        %v2611 = vsel %vm934, %v2534, 0
        %v2614 = vsel %vm934, %v2535, 0
        %v2617 = vsel %vm1130, %v2537, 0
        %2619 = vmatpush.bf16.msra.mxu0 0
        %2620 = vmatpush.bf16.msra.mxu0 0
        %2621 = vmatpush.bf16.msra.mxu0 0
        %2622 = vmatpush.bf16.msra.mxu0 0
        %2623 = vmatpush.bf16.msra.mxu0 0
        %2624 = vmatpush.bf16.msra.mxu0 0
        %2625 = vmatpush.bf16.msra.mxu0 0
        %2626 = vmatpush.bf16.msra.mxu0 %v2617
        %2627 = vmatmul.bf16.gmra.mxu0 %v2593
        %v2628 = vpop.f32.mrf.mxu0
        %v2629 = vadd.f32 %v2553, %v2628
        %v2630 = vpop.f32.mrf.mxu0
        %v2631 = vadd.f32 %v2555, %v2630
        %2632 = vmatmul.bf16.gmra.mxu0 %v2596
        %v2633 = vpop.f32.mrf.mxu0
        %v2634 = vadd.f32 %v2558, %v2633
        %v2635 = vpop.f32.mrf.mxu0
        %v2636 = vadd.f32 %v2560, %v2635
        %2637 = vmatmul.bf16.gmra.mxu0 %v2599
        %v2638 = vpop.f32.mrf.mxu0
        %v2639 = vadd.f32 %v2563, %v2638
        %v2640 = vpop.f32.mrf.mxu0
        %v2641 = vadd.f32 %v2565, %v2640
        %2642 = vmatmul.bf16.gmra.mxu0 %v2602
        %v2643 = vpop.f32.mrf.mxu0
        %v2644 = vadd.f32 %v2568, %v2643
        %v2645 = vpop.f32.mrf.mxu0
        %v2646 = vadd.f32 %v2570, %v2645
        %2647 = vmatmul.bf16.gmra.mxu0 %v2605
        %v2648 = vpop.f32.mrf.mxu0
        %v2649 = vadd.f32 %v2573, %v2648
        %v2650 = vpop.f32.mrf.mxu0
        %v2651 = vadd.f32 %v2575, %v2650
        %2652 = vmatmul.bf16.gmra.mxu0 %v2608
        %v2653 = vpop.f32.mrf.mxu0
        %v2654 = vadd.f32 %v2578, %v2653
        %v2655 = vpop.f32.mrf.mxu0
        %v2656 = vadd.f32 %v2580, %v2655
        %2657 = vmatmul.bf16.gmra.mxu0 %v2611
        %v2658 = vpop.f32.mrf.mxu0
        %v2659 = vadd.f32 %v2583, %v2658
        %v2660 = vpop.f32.mrf.mxu0
        %v2661 = vadd.f32 %v2585, %v2660
        %2662 = vmatmul.bf16.gmra.mxu0 %v2614
        %v2663 = vpop.f32.mrf.mxu0
        %v2664 = vadd.f32 %v2588, %v2663
        %v2665 = vpop.f32.mrf.mxu0
        %v2666 = vadd.f32 %v2590, %v2665
        %2667 = vdwg.mxu0
        %s2668 = scalar_lea.vmem %s2, 56
        %v2669 = vld [vmem:[%s2668] sm:$0xf]
        %v2671 = vsel %vm1130, %v2669, 0
        %2673 = vmatpush.bf16.msra.mxu0 0
        %2674 = vmatpush.bf16.msra.mxu0 0
        %2675 = vmatpush.bf16.msra.mxu0 0
        %2676 = vmatpush.bf16.msra.mxu0 0
        %2677 = vmatpush.bf16.msra.mxu0 0
        %2678 = vmatpush.bf16.msra.mxu0 0
        %2679 = vmatpush.bf16.msra.mxu0 0
        %2680 = vmatpush.bf16.msra.mxu0 %v2671
        %2681 = vmatmul.bf16.gmra.mxu0 %v1690
        %v2682 = vpop.f32.mrf.mxu0
        %v2683 = vadd.f32 0.0, %v2682
        %v2684 = vpop.f32.mrf.mxu0
        %v2685 = vadd.f32 0.0, %v2684
        %2686 = vmatmul.bf16.gmra.mxu0 %v1693
        %v2687 = vpop.f32.mrf.mxu0
        %v2688 = vadd.f32 0.0, %v2687
        %v2689 = vpop.f32.mrf.mxu0
        %v2690 = vadd.f32 0.0, %v2689
        %2691 = vmatmul.bf16.gmra.mxu0 %v1696
        %v2692 = vpop.f32.mrf.mxu0
        %v2693 = vadd.f32 0.0, %v2692
        %v2694 = vpop.f32.mrf.mxu0
        %v2695 = vadd.f32 0.0, %v2694
        %2696 = vmatmul.bf16.gmra.mxu0 %v1699
        %v2697 = vpop.f32.mrf.mxu0
        %v2698 = vadd.f32 0.0, %v2697
        %v2699 = vpop.f32.mrf.mxu0
        %v2700 = vadd.f32 0.0, %v2699
        %2701 = vmatmul.bf16.gmra.mxu0 %v1702
        %v2702 = vpop.f32.mrf.mxu0
        %v2703 = vadd.f32 0.0, %v2702
        %v2704 = vpop.f32.mrf.mxu0
        %v2705 = vadd.f32 0.0, %v2704
        %2706 = vmatmul.bf16.gmra.mxu0 %v1705
        %v2707 = vpop.f32.mrf.mxu0
        %v2708 = vadd.f32 0.0, %v2707
        %v2709 = vpop.f32.mrf.mxu0
        %v2710 = vadd.f32 0.0, %v2709
        %2711 = vmatmul.bf16.gmra.mxu0 %v1708
        %v2712 = vpop.f32.mrf.mxu0
        %v2713 = vadd.f32 0.0, %v2712
        %v2714 = vpop.f32.mrf.mxu0
        %v2715 = vadd.f32 0.0, %v2714
        %2716 = vmatmul.bf16.gmra.mxu0 %v1711
        %v2717 = vpop.f32.mrf.mxu0
        %v2718 = vadd.f32 0.0, %v2717
        %v2719 = vpop.f32.mrf.mxu0
        %v2720 = vadd.f32 0.0, %v2719
        %2721 = vdwg.mxu0
        %v2722 = vadd.f32 %v2629, %v2683
        %v2723 = vadd.f32 %v2631, %v2685
        %v2724 = vadd.f32 %v2634, %v2688
        %v2725 = vadd.f32 %v2636, %v2690
        %v2726 = vadd.f32 %v2639, %v2693
        %v2727 = vadd.f32 %v2641, %v2695
        %v2728 = vadd.f32 %v2644, %v2698
        %v2729 = vadd.f32 %v2646, %v2700
        %v2730 = vadd.f32 %v2649, %v2703
        %v2731 = vadd.f32 %v2651, %v2705
        %v2732 = vadd.f32 %v2654, %v2708
        %v2733 = vadd.f32 %v2656, %v2710
        %v2734 = vadd.f32 %v2659, %v2713
        %v2735 = vadd.f32 %v2661, %v2715
        %v2736 = vadd.f32 %v2664, %v2718
        %v2737 = vadd.f32 %v2666, %v2720
        %s2738 = scalar_lea.vmem %s2, 60
        %v2739 = vld [vmem:[%s2738] sm:$0xf]
        %v2741 = vsel %vm1130, %v2739, 0
        %2743 = vmatpush.bf16.msra.mxu0 0
        %2744 = vmatpush.bf16.msra.mxu0 0
        %2745 = vmatpush.bf16.msra.mxu0 0
        %2746 = vmatpush.bf16.msra.mxu0 0
        %2747 = vmatpush.bf16.msra.mxu0 0
        %2748 = vmatpush.bf16.msra.mxu0 0
        %2749 = vmatpush.bf16.msra.mxu0 0
        %2750 = vmatpush.bf16.msra.mxu0 %v2741
        %2751 = vmatmul.bf16.gmra.mxu0 %v1184
        %v2752 = vpop.f32.mrf.mxu0
        %v2753 = vadd.f32 0.0, %v2752
        %v2754 = vpop.f32.mrf.mxu0
        %v2755 = vadd.f32 0.0, %v2754
        %2756 = vmatmul.bf16.gmra.mxu0 %v1187
        %v2757 = vpop.f32.mrf.mxu0
        %v2758 = vadd.f32 0.0, %v2757
        %v2759 = vpop.f32.mrf.mxu0
        %v2760 = vadd.f32 0.0, %v2759
        %2761 = vmatmul.bf16.gmra.mxu0 %v1190
        %v2762 = vpop.f32.mrf.mxu0
        %v2763 = vadd.f32 0.0, %v2762
        %v2764 = vpop.f32.mrf.mxu0
        %v2765 = vadd.f32 0.0, %v2764
        %2766 = vmatmul.bf16.gmra.mxu0 %v1193
        %v2767 = vpop.f32.mrf.mxu0
        %v2768 = vadd.f32 0.0, %v2767
        %v2769 = vpop.f32.mrf.mxu0
        %v2770 = vadd.f32 0.0, %v2769
        %2771 = vmatmul.bf16.gmra.mxu0 %v1196
        %v2772 = vpop.f32.mrf.mxu0
        %v2773 = vadd.f32 0.0, %v2772
        %v2774 = vpop.f32.mrf.mxu0
        %v2775 = vadd.f32 0.0, %v2774
        %2776 = vmatmul.bf16.gmra.mxu0 %v1199
        %v2777 = vpop.f32.mrf.mxu0
        %v2778 = vadd.f32 0.0, %v2777
        %v2779 = vpop.f32.mrf.mxu0
        %v2780 = vadd.f32 0.0, %v2779
        %2781 = vmatmul.bf16.gmra.mxu0 %v1202
        %v2782 = vpop.f32.mrf.mxu0
        %v2783 = vadd.f32 0.0, %v2782
        %v2784 = vpop.f32.mrf.mxu0
        %v2785 = vadd.f32 0.0, %v2784
        %2786 = vmatmul.bf16.gmra.mxu0 %v1205
        %v2787 = vpop.f32.mrf.mxu0
        %v2788 = vadd.f32 0.0, %v2787
        %v2789 = vpop.f32.mrf.mxu0
        %v2790 = vadd.f32 0.0, %v2789
        %2791 = vdwg.mxu0
        %v2792 = vadd.f32 %v2722, %v2753
        %v2793 = vadd.f32 %v2723, %v2755
        %v2794 = vadd.f32 %v2724, %v2758
        %v2795 = vadd.f32 %v2725, %v2760
        %v2796 = vadd.f32 %v2726, %v2763
        %v2797 = vadd.f32 %v2727, %v2765
        %v2798 = vadd.f32 %v2728, %v2768
        %v2799 = vadd.f32 %v2729, %v2770
        %v2800 = vadd.f32 %v2730, %v2773
        %v2801 = vadd.f32 %v2731, %v2775
        %v2802 = vadd.f32 %v2732, %v2778
        %v2803 = vadd.f32 %v2733, %v2780
        %v2804 = vadd.f32 %v2734, %v2783
        %v2805 = vadd.f32 %v2735, %v2785
        %v2806 = vadd.f32 %v2736, %v2788
        %v2807 = vadd.f32 %v2737, %v2790
        %v2808 = vsel %vm341, %v2792, 0.0
        %v2809 = vsel %vm341, %v2793, 0.0
        %v2810 = vadd.f32 %v2808, %v2809
        %v2811 = vsel %vm341, %v2794, 0.0
        %v2812 = vadd.f32 %v2810, %v2811
        %v2813 = vsel %vm341, %v2795, 0.0
        %v2814 = vadd.f32 %v2812, %v2813
        %v2815 = vsel %vm341, %v2796, 0.0
        %v2816 = vadd.f32 %v2814, %v2815
        %v2817 = vsel %vm341, %v2797, 0.0
        %v2818 = vadd.f32 %v2816, %v2817
        %v2819 = vsel %vm341, %v2798, 0.0
        %v2820 = vadd.f32 %v2818, %v2819
        %v2821 = vsel %vm341, %v2799, 0.0
        %v2822 = vadd.f32 %v2820, %v2821
        %v2823 = vsel %vm341, %v2800, 0.0
        %v2824 = vadd.f32 %v2822, %v2823
        %v2825 = vsel %vm341, %v2801, 0.0
        %v2826 = vadd.f32 %v2824, %v2825
        %v2827 = vsel %vm341, %v2802, 0.0
        %v2828 = vadd.f32 %v2826, %v2827
        %v2829 = vsel %vm341, %v2803, 0.0
        %v2830 = vadd.f32 %v2828, %v2829
        %v2831 = vsel %vm341, %v2804, 0.0
        %v2832 = vadd.f32 %v2830, %v2831
        %v2833 = vsel %vm341, %v2805, 0.0
        %v2834 = vadd.f32 %v2832, %v2833
        %v2835 = vsel %vm341, %v2806, 0.0
        %v2836 = vadd.f32 %v2834, %v2835
        %v2837 = vsel %vm341, %v2807, 0.0
        %v2838 = vadd.f32 %v2836, %v2837
        %v2839 = vrot.slane %v2838, 4
        %v2840 = vadd.f32 %v2838, %v2839
        %v2841 = vrot.slane %v2840, 2
        %v2842 = vadd.f32 %v2840, %v2841
        %v2843 = vrot.slane %v2842, 1
        %v2844 = vadd.f32 %v2842, %v2843
        %v2845 = vmul.f32 %v2844, %v1538
        %v2846 = vsub.f32 %v2792, %v2845
        %v2847 = vsub.f32 %v2793, %v2845
        %v2848 = vsub.f32 %v2794, %v2845
        %v2849 = vsub.f32 %v2795, %v2845
        %v2850 = vsub.f32 %v2796, %v2845
        %v2851 = vsub.f32 %v2797, %v2845
        %v2852 = vsub.f32 %v2798, %v2845
        %v2853 = vsub.f32 %v2799, %v2845
        %v2854 = vsub.f32 %v2800, %v2845
        %v2855 = vsub.f32 %v2801, %v2845
        %v2856 = vsub.f32 %v2802, %v2845
        %v2857 = vsub.f32 %v2803, %v2845
        %v2858 = vsub.f32 %v2804, %v2845
        %v2859 = vsub.f32 %v2805, %v2845
        %v2860 = vsub.f32 %v2806, %v2845
        %v2861 = vsub.f32 %v2807, %v2845
        %v2862 = vmul.f32 %v2846, %v2846
        %v2863 = vmul.f32 %v2847, %v2847
        %v2864 = vmul.f32 %v2848, %v2848
        %v2865 = vmul.f32 %v2849, %v2849
        %v2866 = vmul.f32 %v2850, %v2850
        %v2867 = vmul.f32 %v2851, %v2851
        %v2868 = vmul.f32 %v2852, %v2852
        %v2869 = vmul.f32 %v2853, %v2853
        %v2870 = vmul.f32 %v2854, %v2854
        %v2871 = vmul.f32 %v2855, %v2855
        %v2872 = vmul.f32 %v2856, %v2856
        %v2873 = vmul.f32 %v2857, %v2857
        %v2874 = vmul.f32 %v2858, %v2858
        %v2875 = vmul.f32 %v2859, %v2859
        %v2876 = vmul.f32 %v2860, %v2860
        %v2877 = vmul.f32 %v2861, %v2861
        %v2878 = vsel %vm341, %v2862, 0.0
        %v2879 = vsel %vm341, %v2863, 0.0
        %v2880 = vadd.f32 %v2878, %v2879
        %v2881 = vsel %vm341, %v2864, 0.0
        %v2882 = vadd.f32 %v2880, %v2881
        %v2883 = vsel %vm341, %v2865, 0.0
        %v2884 = vadd.f32 %v2882, %v2883
        %v2885 = vsel %vm341, %v2866, 0.0
        %v2886 = vadd.f32 %v2884, %v2885
        %v2887 = vsel %vm341, %v2867, 0.0
        %v2888 = vadd.f32 %v2886, %v2887
        %v2889 = vsel %vm341, %v2868, 0.0
        %v2890 = vadd.f32 %v2888, %v2889
        %v2891 = vsel %vm341, %v2869, 0.0
        %v2892 = vadd.f32 %v2890, %v2891
        %v2893 = vsel %vm341, %v2870, 0.0
        %v2894 = vadd.f32 %v2892, %v2893
        %v2895 = vsel %vm341, %v2871, 0.0
        %v2896 = vadd.f32 %v2894, %v2895
        %v2897 = vsel %vm341, %v2872, 0.0
        %v2898 = vadd.f32 %v2896, %v2897
        %v2899 = vsel %vm341, %v2873, 0.0
        %v2900 = vadd.f32 %v2898, %v2899
        %v2901 = vsel %vm341, %v2874, 0.0
        %v2902 = vadd.f32 %v2900, %v2901
        %v2903 = vsel %vm341, %v2875, 0.0
        %v2904 = vadd.f32 %v2902, %v2903
        %v2905 = vsel %vm341, %v2876, 0.0
        %v2906 = vadd.f32 %v2904, %v2905
        %v2907 = vsel %vm341, %v2877, 0.0
        %v2908 = vadd.f32 %v2906, %v2907
        %v2909 = vrot.slane %v2908, 4
        %v2910 = vadd.f32 %v2908, %v2909
        %v2911 = vrot.slane %v2910, 2
        %v2912 = vadd.f32 %v2910, %v2911
        %v2913 = vrot.slane %v2912, 1
        %v2914 = vadd.f32 %v2912, %v2913
        %v2915 = vadd.f32 %v1539, %v1990
        %v2916 = vadd.f32 %v2915, %v2442
        %v2917 = vadd.f32 %v2916, %v2845
        %v2918 = vmul.f32 %v2917, 0.25
        %v2919 = vadd.f32 %v1608, %v2059
        %v2920 = vadd.f32 %v2919, %v2511
        %v2921 = vadd.f32 %v2920, %v2914
        %v2922 = vsub.f32 %v1539, %v2918
        %v2923 = vmul.f32 %v2922, 128.0
        %v2924 = vmul.f32 %v2923, %v2922
        %v2925 = vadd.f32 %v2921, %v2924
        %v2926 = vsub.f32 %v1990, %v2918
        %v2927 = vmul.f32 %v2926, 128.0
        %v2928 = vmul.f32 %v2927, %v2926
        %v2929 = vadd.f32 %v2925, %v2928
        %v2930 = vsub.f32 %v2442, %v2918
        %v2931 = vmul.f32 %v2930, 128.0
        %v2932 = vmul.f32 %v2931, %v2930
        %v2933 = vadd.f32 %v2929, %v2932
        %v2934 = vsub.f32 %v2845, %v2918
        %v2935 = vmul.f32 %v2934, 128.0
        %v2936 = vmul.f32 %v2935, %v2934
        %v2937 = vadd.f32 %v2933, %v2936
        %v2938 = vmul.f32 %v2937, 0.001953125
        %v2939 = vld [vmem:[%s3] sm:$0x1]
        %v2940 = vadd.f32 %v2938, 1e-05
        %v2941 = vrsqrt.pop %v2940
        %v2942 = vmul.f32 %v2941, %v2940
        %v2943 = vmul.f32 %v2942, %v2941
        %v2944 = vmul.f32 0.5, %v2943
        %v2945 = vsub.f32 1.5, %v2944
        %v2946 = vmul.f32 %v2941, %v2945
        %vm2947 = vweird.f32 %v2940
        %vm2948 = vweird.f32 %v2941
        %vm2949 = vmor %vm2947, %vm2948
        %v2950 = vsel %vm2949, %v2941, %v2946
        %v2951 = vmul.f32 %v2939, %v2950
        %v2952 = vld [vmem:[%s4] sm:$0x1]
        %v2953 = vmul.f32 %v2918, %v2951
        %v2954 = vsub.f32 %v2952, %v2953
        %v2956 = vperm.slane %v2951, 0
        %v2958 = vmul.f32 %v1479, %v2956
        %v2959 = vmul.f32 %v1480, %v2956
        %v2960 = vmul.f32 %v1481, %v2956
        %v2961 = vmul.f32 %v1482, %v2956
        %v2962 = vmul.f32 %v1483, %v2956
        %v2963 = vmul.f32 %v1484, %v2956
        %v2964 = vmul.f32 %v1485, %v2956
        %v2965 = vmul.f32 %v1486, %v2956
        %v2966 = vmul.f32 %v1487, %v2956
        %v2967 = vmul.f32 %v1488, %v2956
        %v2968 = vmul.f32 %v1489, %v2956
        %v2969 = vmul.f32 %v1490, %v2956
        %v2970 = vmul.f32 %v1491, %v2956
        %v2971 = vmul.f32 %v1492, %v2956
        %v2972 = vmul.f32 %v1493, %v2956
        %v2973 = vmul.f32 %v1494, %v2956
        %v2975 = vperm.slane %v2954, 0
        %v2977 = vadd.f32 %v2958, %v2975
        %v2978 = vadd.f32 %v2959, %v2975
        %v2979 = vadd.f32 %v2960, %v2975
        %v2980 = vadd.f32 %v2961, %v2975
        %v2981 = vadd.f32 %v2962, %v2975
        %v2982 = vadd.f32 %v2963, %v2975
        %v2983 = vadd.f32 %v2964, %v2975
        %v2984 = vadd.f32 %v2965, %v2975
        %v2985 = vadd.f32 %v2966, %v2975
        %v2986 = vadd.f32 %v2967, %v2975
        %v2987 = vadd.f32 %v2968, %v2975
        %v2988 = vadd.f32 %v2969, %v2975
        %v2989 = vadd.f32 %v2970, %v2975
        %v2990 = vadd.f32 %v2971, %v2975
        %v2991 = vadd.f32 %v2972, %v2975
        %v2992 = vadd.f32 %v2973, %v2975
        %2993 = vxpose.xlu0.b32.start [1/16] %v2977, 128
        %2994 = vxpose.xlu0.b32.cont [2/16] %v2978, 128
        %2995 = vxpose.xlu0.b32.cont [3/16] %v2979, 128
        %2996 = vxpose.xlu0.b32.cont [4/16] %v2980, 128
        %2997 = vxpose.xlu0.b32.cont [5/16] %v2981, 128
        %2998 = vxpose.xlu0.b32.cont [6/16] %v2982, 128
        %2999 = vxpose.xlu0.b32.cont [7/16] %v2983, 128
        %3000 = vxpose.xlu0.b32.cont [8/16] %v2984, 128
        %3001 = vxpose.xlu0.b32.cont [9/16] %v2985, 128
        %3002 = vxpose.xlu0.b32.cont [10/16] %v2986, 128
        %3003 = vxpose.xlu0.b32.cont [11/16] %v2987, 128
        %3004 = vxpose.xlu0.b32.cont [12/16] %v2988, 128
        %3005 = vxpose.xlu0.b32.cont [13/16] %v2989, 128
        %3006 = vxpose.xlu0.b32.cont [14/16] %v2990, 128
        %3007 = vxpose.xlu0.b32.cont [15/16] %v2991, 128
        %3008 = vxpose.xlu0.b32.end [16/16] %v2992, 128
        %v3009 = vpop.trf.xlu0
        %v3010 = vpop.trf.xlu0
        %v3011 = vpop.trf.xlu0
        %v3012 = vpop.trf.xlu0
        %v3013 = vpop.trf.xlu0
        %v3014 = vpop.trf.xlu0
        %v3015 = vpop.trf.xlu0
        %v3016 = vpop.trf.xlu0
        %v3017 = vpop.trf.xlu0
        %v3018 = vpop.trf.xlu0
        %v3019 = vpop.trf.xlu0
        %v3020 = vpop.trf.xlu0
        %v3021 = vpop.trf.xlu0
        %v3022 = vpop.trf.xlu0
        %v3023 = vpop.trf.xlu0
        %v3024 = vpop.trf.xlu0
        %3025 = vst [vmem:[%s5] sm:$0xf] %v3009
        %v3026 = vmul.f32 %v1937, %v2956
        %v3027 = vmul.f32 %v1938, %v2956
        %v3028 = vmul.f32 %v1939, %v2956
        %v3029 = vmul.f32 %v1940, %v2956
        %v3030 = vmul.f32 %v1941, %v2956
        %v3031 = vmul.f32 %v1942, %v2956
        %v3032 = vmul.f32 %v1943, %v2956
        %v3033 = vmul.f32 %v1944, %v2956
        %v3034 = vmul.f32 %v1945, %v2956
        %v3035 = vmul.f32 %v1946, %v2956
        %v3036 = vmul.f32 %v1947, %v2956
        %v3037 = vmul.f32 %v1948, %v2956
        %v3038 = vmul.f32 %v1949, %v2956
        %v3039 = vmul.f32 %v1950, %v2956
        %v3040 = vmul.f32 %v1951, %v2956
        %v3041 = vmul.f32 %v1952, %v2956
        %v3042 = vadd.f32 %v3026, %v2975
        %v3043 = vadd.f32 %v3027, %v2975
        %v3044 = vadd.f32 %v3028, %v2975
        %v3045 = vadd.f32 %v3029, %v2975
        %v3046 = vadd.f32 %v3030, %v2975
        %v3047 = vadd.f32 %v3031, %v2975
        %v3048 = vadd.f32 %v3032, %v2975
        %v3049 = vadd.f32 %v3033, %v2975
        %v3050 = vadd.f32 %v3034, %v2975
        %v3051 = vadd.f32 %v3035, %v2975
        %v3052 = vadd.f32 %v3036, %v2975
        %v3053 = vadd.f32 %v3037, %v2975
        %v3054 = vadd.f32 %v3038, %v2975
        %v3055 = vadd.f32 %v3039, %v2975
        %v3056 = vadd.f32 %v3040, %v2975
        %v3057 = vadd.f32 %v3041, %v2975
        %3058 = vxpose.xlu0.b32.start [1/16] %v3042, 128
        %3059 = vxpose.xlu0.b32.cont [2/16] %v3043, 128
        %3060 = vxpose.xlu0.b32.cont [3/16] %v3044, 128
        %3061 = vxpose.xlu0.b32.cont [4/16] %v3045, 128
        %3062 = vxpose.xlu0.b32.cont [5/16] %v3046, 128
        %3063 = vxpose.xlu0.b32.cont [6/16] %v3047, 128
        %3064 = vxpose.xlu0.b32.cont [7/16] %v3048, 128
        %3065 = vxpose.xlu0.b32.cont [8/16] %v3049, 128
        %3066 = vxpose.xlu0.b32.cont [9/16] %v3050, 128
        %3067 = vxpose.xlu0.b32.cont [10/16] %v3051, 128
        %3068 = vxpose.xlu0.b32.cont [11/16] %v3052, 128
        %3069 = vxpose.xlu0.b32.cont [12/16] %v3053, 128
        %3070 = vxpose.xlu0.b32.cont [13/16] %v3054, 128
        %3071 = vxpose.xlu0.b32.cont [14/16] %v3055, 128
        %3072 = vxpose.xlu0.b32.cont [15/16] %v3056, 128
        %3073 = vxpose.xlu0.b32.end [16/16] %v3057, 128
        %v3074 = vpop.trf.xlu0
        %v3075 = vpop.trf.xlu0
        %v3076 = vpop.trf.xlu0
        %v3077 = vpop.trf.xlu0
        %v3078 = vpop.trf.xlu0
        %v3079 = vpop.trf.xlu0
        %v3080 = vpop.trf.xlu0
        %v3081 = vpop.trf.xlu0
        %v3082 = vpop.trf.xlu0
        %v3083 = vpop.trf.xlu0
        %v3084 = vpop.trf.xlu0
        %v3085 = vpop.trf.xlu0
        %v3086 = vpop.trf.xlu0
        %v3087 = vpop.trf.xlu0
        %v3088 = vpop.trf.xlu0
        %v3089 = vpop.trf.xlu0
        %3090 = vst [vmem:[%s5 + $0x4] sm:$0xf] %v3074
        %v3091 = vmul.f32 %v2389, %v2956
        %v3092 = vmul.f32 %v2390, %v2956
        %v3093 = vmul.f32 %v2391, %v2956
        %v3094 = vmul.f32 %v2392, %v2956
        %v3095 = vmul.f32 %v2393, %v2956
        %v3096 = vmul.f32 %v2394, %v2956
        %v3097 = vmul.f32 %v2395, %v2956
        %v3098 = vmul.f32 %v2396, %v2956
        %v3099 = vmul.f32 %v2397, %v2956
        %v3100 = vmul.f32 %v2398, %v2956
        %v3101 = vmul.f32 %v2399, %v2956
        %v3102 = vmul.f32 %v2400, %v2956
        %v3103 = vmul.f32 %v2401, %v2956
        %v3104 = vmul.f32 %v2402, %v2956
        %v3105 = vmul.f32 %v2403, %v2956
        %v3106 = vmul.f32 %v2404, %v2956
        %v3107 = vadd.f32 %v3091, %v2975
        %v3108 = vadd.f32 %v3092, %v2975
        %v3109 = vadd.f32 %v3093, %v2975
        %v3110 = vadd.f32 %v3094, %v2975
        %v3111 = vadd.f32 %v3095, %v2975
        %v3112 = vadd.f32 %v3096, %v2975
        %v3113 = vadd.f32 %v3097, %v2975
        %v3114 = vadd.f32 %v3098, %v2975
        %v3115 = vadd.f32 %v3099, %v2975
        %v3116 = vadd.f32 %v3100, %v2975
        %v3117 = vadd.f32 %v3101, %v2975
        %v3118 = vadd.f32 %v3102, %v2975
        %v3119 = vadd.f32 %v3103, %v2975
        %v3120 = vadd.f32 %v3104, %v2975
        %v3121 = vadd.f32 %v3105, %v2975
        %v3122 = vadd.f32 %v3106, %v2975
        %3123 = vxpose.xlu0.b32.start [1/16] %v3107, 128
        %3124 = vxpose.xlu0.b32.cont [2/16] %v3108, 128
        %3125 = vxpose.xlu0.b32.cont [3/16] %v3109, 128
        %3126 = vxpose.xlu0.b32.cont [4/16] %v3110, 128
        %3127 = vxpose.xlu0.b32.cont [5/16] %v3111, 128
        %3128 = vxpose.xlu0.b32.cont [6/16] %v3112, 128
        %3129 = vxpose.xlu0.b32.cont [7/16] %v3113, 128
        %3130 = vxpose.xlu0.b32.cont [8/16] %v3114, 128
        %3131 = vxpose.xlu0.b32.cont [9/16] %v3115, 128
        %3132 = vxpose.xlu0.b32.cont [10/16] %v3116, 128
        %3133 = vxpose.xlu0.b32.cont [11/16] %v3117, 128
        %3134 = vxpose.xlu0.b32.cont [12/16] %v3118, 128
        %3135 = vxpose.xlu0.b32.cont [13/16] %v3119, 128
        %3136 = vxpose.xlu0.b32.cont [14/16] %v3120, 128
        %3137 = vxpose.xlu0.b32.cont [15/16] %v3121, 128
        %3138 = vxpose.xlu0.b32.end [16/16] %v3122, 128
        %v3139 = vpop.trf.xlu0
        %v3140 = vpop.trf.xlu0
        %v3141 = vpop.trf.xlu0
        %v3142 = vpop.trf.xlu0
        %v3143 = vpop.trf.xlu0
        %v3144 = vpop.trf.xlu0
        %v3145 = vpop.trf.xlu0
        %v3146 = vpop.trf.xlu0
        %v3147 = vpop.trf.xlu0
        %v3148 = vpop.trf.xlu0
        %v3149 = vpop.trf.xlu0
        %v3150 = vpop.trf.xlu0
        %v3151 = vpop.trf.xlu0
        %v3152 = vpop.trf.xlu0
        %v3153 = vpop.trf.xlu0
        %v3154 = vpop.trf.xlu0
        %3155 = vst [vmem:[%s5 + $0x8] sm:$0xf] %v3139
        %v3156 = vmul.f32 %v2792, %v2956
        %v3157 = vmul.f32 %v2793, %v2956
        %v3158 = vmul.f32 %v2794, %v2956
        %v3159 = vmul.f32 %v2795, %v2956
        %v3160 = vmul.f32 %v2796, %v2956
        %v3161 = vmul.f32 %v2797, %v2956
        %v3162 = vmul.f32 %v2798, %v2956
        %v3163 = vmul.f32 %v2799, %v2956
        %v3164 = vmul.f32 %v2800, %v2956
        %v3165 = vmul.f32 %v2801, %v2956
        %v3166 = vmul.f32 %v2802, %v2956
        %v3167 = vmul.f32 %v2803, %v2956
        %v3168 = vmul.f32 %v2804, %v2956
        %v3169 = vmul.f32 %v2805, %v2956
        %v3170 = vmul.f32 %v2806, %v2956
        %v3171 = vmul.f32 %v2807, %v2956
        %v3172 = vadd.f32 %v3156, %v2975
        %v3173 = vadd.f32 %v3157, %v2975
        %v3174 = vadd.f32 %v3158, %v2975
        %v3175 = vadd.f32 %v3159, %v2975
        %v3176 = vadd.f32 %v3160, %v2975
        %v3177 = vadd.f32 %v3161, %v2975
        %v3178 = vadd.f32 %v3162, %v2975
        %v3179 = vadd.f32 %v3163, %v2975
        %v3180 = vadd.f32 %v3164, %v2975
        %v3181 = vadd.f32 %v3165, %v2975
        %v3182 = vadd.f32 %v3166, %v2975
        %v3183 = vadd.f32 %v3167, %v2975
        %v3184 = vadd.f32 %v3168, %v2975
        %v3185 = vadd.f32 %v3169, %v2975
        %v3186 = vadd.f32 %v3170, %v2975
        %v3187 = vadd.f32 %v3171, %v2975
        %3188 = vxpose.xlu0.b32.start [1/16] %v3172, 128
        %3189 = vxpose.xlu0.b32.cont [2/16] %v3173, 128
        %3190 = vxpose.xlu0.b32.cont [3/16] %v3174, 128
        %3191 = vxpose.xlu0.b32.cont [4/16] %v3175, 128
        %3192 = vxpose.xlu0.b32.cont [5/16] %v3176, 128
        %3193 = vxpose.xlu0.b32.cont [6/16] %v3177, 128
        %3194 = vxpose.xlu0.b32.cont [7/16] %v3178, 128
        %3195 = vxpose.xlu0.b32.cont [8/16] %v3179, 128
        %3196 = vxpose.xlu0.b32.cont [9/16] %v3180, 128
        %3197 = vxpose.xlu0.b32.cont [10/16] %v3181, 128
        %3198 = vxpose.xlu0.b32.cont [11/16] %v3182, 128
        %3199 = vxpose.xlu0.b32.cont [12/16] %v3183, 128
        %3200 = vxpose.xlu0.b32.cont [13/16] %v3184, 128
        %3201 = vxpose.xlu0.b32.cont [14/16] %v3185, 128
        %3202 = vxpose.xlu0.b32.cont [15/16] %v3186, 128
        %3203 = vxpose.xlu0.b32.end [16/16] %v3187, 128
        %v3204 = vpop.trf.xlu0
        %v3205 = vpop.trf.xlu0
        %v3206 = vpop.trf.xlu0
        %v3207 = vpop.trf.xlu0
        %v3208 = vpop.trf.xlu0
        %v3209 = vpop.trf.xlu0
        %v3210 = vpop.trf.xlu0
        %v3211 = vpop.trf.xlu0
        %v3212 = vpop.trf.xlu0
        %v3213 = vpop.trf.xlu0
        %v3214 = vpop.trf.xlu0
        %v3215 = vpop.trf.xlu0
        %v3216 = vpop.trf.xlu0
        %v3217 = vpop.trf.xlu0
        %v3218 = vpop.trf.xlu0
        %v3219 = vpop.trf.xlu0
        %3220 = vst [vmem:[%s5 + $0xc] sm:$0xf] %v3204
      $region48: #{unet_innermost_forward.1} parent=39 // pred_fallthru
        _
      // Predicated region
      $region49: #{unet_innermost_forward.1} parent=39 // pred_check
        %p3221 = pneg %p144
      $region50: #{unet_innermost_forward.1} parent=39 // pred_check_branch
        %3223 = sbr.rel (%p3221) target = $region52
      $region51: #{unet_innermost_forward.1} parent=39 // pred_region
        _
      $region52: #{unet_innermost_forward.1} parent=39 // pred_fallthru
        _
      // Predicated region
      $region53: #{unet_innermost_forward.1} parent=39 // pred_check
        %p3224 = pneg %p144
      $region54: #{unet_innermost_forward.1} parent=39 // pred_check_branch
        %3226 = sbr.rel (%p3224) target = $region56
      $region55: #{unet_innermost_forward.1} parent=39 // pred_region
        _
      $region56: #{unet_innermost_forward.1} parent=39 // pred_fallthru
        _
    $region40: #{unet_innermost_forward.1} parent=5 // pred_fallthru
      _
    %p3227 = scmp.le.s32.totalorder 2, %s11
    // Predicated region
    $region57: #{unet_innermost_forward.1} parent=5 // pred_check
      %p3228 = pneg %p3227
    $region58: #{unet_innermost_forward.1} parent=5 // pred_check_branch
      %3230 = sbr.rel (%p3228) target = $region60
    $region59: #{unet_innermost_forward.1} parent=5 // pred_region
      %s3231 = ssub.s32 %s11, 2
    $region60: #{unet_innermost_forward.1} parent=5 // pred_fallthru
      _
  $region6: #{unet_innermost_forward.1} parent=0 // loop_footer
    %s15 = sadd.s32 1, %s11
  $region7: #{unet_innermost_forward.1} parent=0 // loop_footer_branch
    %10 = sbr.rel target = $region3
  $region8: #{unet_innermost_forward.1} parent=0 // loop_exit
    _

</llo_original>
